<compile_context>
chip_gen: v7x
topology: tpu7x:2x2x1
jax: 0.10.0
libtpu: 0.0.40
codegen_flags: <defaults>
</compile_context>

<pallas_src>
import numpy as np
import jax
import jax.numpy as jnp
from jax.experimental import pallas as pl
from jax.experimental.pallas import tpu as pltpu

# ----------------------------- config-like constants -----------------------------
ENT_INPUT_DIM = 64      # ent_feat_input_shape
WORD_DIM = 32           # PAIRWISE_REL_FEATURE.WORD_EMBEDDING_FEATURES_DIM
GEO_DIM = 256           # geometry_feat_dim (fixed in module)
HIDDEN = 32             # PAIRWISE_REL_FEATURE.HIDDEN_DIM
OUT_SIZE = 64           # rel_feat_input_shape == output_size
NUM_OBJ_CLASSES = 10
EPS = 1e-5
LEAKY_SLOPE = 0.01      # nn.LeakyReLU default
MAX_ROW_TILE = 512      # rows per grid step (VMEM use per step stays << 4 MiB)


def _leaky(x):
    return jnp.where(x >= 0, x, LEAKY_SLOPE * x)


def _round_up(n, m):
    return ((n + m - 1) // m) * m


def _row_tile(n, max_tile=MAX_ROW_TILE):
    return min(max_tile, _round_up(max(n, 1), 8))


def _pad_rows(x, n_pad):
    n = x.shape[0]
    if n == n_pad:
        return x
    return jnp.pad(x, ((0, n_pad - n), (0, 0)))


# ================================ Pallas kernels ================================

def _entity_kernel(ent_ref, word_ref, posbn_ref,
                   wp2, bp2, wh_ent, wh_word, wh_pos, bh, wup, bup,
                   ht_ref):
    # pos_embed tail: Linear(32->256) -> ReLU   (Linear(9->32)+BN hoisted to JAX)
    p = jnp.maximum(
        jnp.dot(posbn_ref[...], wp2[...], preferred_element_type=jnp.float32) + bp2[...],
        0.0)
    # ent4rel_hidden_fc: LeakyReLU -> Linear(cat(ent, word, pos) -> HIDDEN)
    # (feature concat folded into split weight segments)
    h = (jnp.dot(_leaky(ent_ref[...]), wh_ent[...], preferred_element_type=jnp.float32)
         + jnp.dot(_leaky(word_ref[...]), wh_word[...], preferred_element_type=jnp.float32)
         + jnp.dot(_leaky(p), wh_pos[...], preferred_element_type=jnp.float32)
         + bh[...])
    # pairwise_obj_feat_updim_fc: LeakyReLU -> Linear(HIDDEN -> 2*HIDDEN)
    # fused head|tail output: [:, :H] = head, [:, H:] = tail
    ht_ref[...] = jnp.dot(_leaky(h), wup[...], preferred_element_type=jnp.float32) + bup[...]


def _relation_kernel(ht_ref, geobn_ref, union_ref,
                     wg2, bg2, wf, bf, wu, bu, wo, bo,
                     out_ref):
    # pair_bbox_geo_embed tail: Linear(H -> 2H), fused head|tail columns
    geo = jnp.dot(geobn_ref[...], wg2[...], preferred_element_type=jnp.float32) + bg2[...]
    # ent_pair_feat4rel = [head|tail] * geo ; ent_pair_fuse_fc: LeakyReLU -> Linear(2H->H)
    fused = jnp.dot(_leaky(ht_ref[...] * geo), wf[...],
                    preferred_element_type=jnp.float32) + bf[...]
    # union_fuse_fc: LeakyReLU -> Linear(OUT_SIZE -> H)
    uf = jnp.dot(_leaky(union_ref[...]), wu[...], preferred_element_type=jnp.float32) + bu[...]
    x = fused + uf
    # output_fc: LeakyReLU -> Linear(H -> OUT_SIZE)
    out_ref[...] = jnp.dot(_leaky(x), wo[...], preferred_element_type=jnp.float32) + bo[...]


# ================================ kernel wrappers ================================

def run_entity_kernel(ent_feats, word_emb, pos_bn, p):
    n = ent_feats.shape[0]
    tile = _row_tile(n)
    n_pad = _round_up(n, tile)
    ent_p = _pad_rows(ent_feats, n_pad)
    word_p = _pad_rows(word_emb, n_pad)
    pos_p = _pad_rows(pos_bn, n_pad)

    weights = (p['wp2'], p['bp2'], p['wh_ent'], p['wh_word'], p['wh_pos'],
               p['bh'], p['wup'], p['bup'])

    def row(d):
        return pl.BlockSpec((tile, d), lambda i: (i, 0))

    def full(a):
        return pl.BlockSpec(a.shape, lambda i: (0, 0))

    w_bytes = sum(int(np.prod(w.shape)) for w in weights) * 4
    flops = 2 * n_pad * (HIDDEN * GEO_DIM + ENT_INPUT_DIM * HIDDEN + WORD_DIM * HIDDEN
                         + GEO_DIM * HIDDEN + HIDDEN * 2 * HIDDEN)
    bytes_accessed = n_pad * (ENT_INPUT_DIM + WORD_DIM + HIDDEN + 2 * HIDDEN) * 4 + w_bytes

    out = pl.pallas_call(
        _entity_kernel,
        out_shape=jax.ShapeDtypeStruct((n_pad, 2 * HIDDEN), jnp.float32),
        grid_spec=pltpu.PrefetchScalarGridSpec(
            num_scalar_prefetch=0,
            grid=(n_pad // tile,),
            in_specs=[row(ENT_INPUT_DIM), row(WORD_DIM), row(HIDDEN)]
                     + [full(w) for w in weights],
            out_specs=row(2 * HIDDEN)),
        compiler_params=pltpu.CompilerParams(
            dimension_semantics=("parallel",),
            vmem_limit_bytes=32 * 1024 * 1024),
        cost_estimate=pl.CostEstimate(flops=flops, transcendentals=0,
                                      bytes_accessed=bytes_accessed),
    )(ent_p, word_p, pos_p, *weights)
    return out[:n]


def run_relation_kernel(headtail_g, geo_bn, union_feats, p):
    n = headtail_g.shape[0]
    tile = _row_tile(n)
    n_pad = _round_up(n, tile)
    ht_p = _pad_rows(headtail_g, n_pad)
    geo_p = _pad_rows(geo_bn, n_pad)
    un_p = _pad_rows(union_feats, n_pad)

    weights = (p['wg2'], p['bg2'], p['wf'], p['bf'], p['wu'], p['bu'], p['wo'], p['bo'])

    def row(d):
        return pl.BlockSpec((tile, d), lambda i: (i, 0))

    def full(a):
        return pl.BlockSpec(a.shape, lambda i: (0, 0))

    w_bytes = sum(int(np.prod(w.shape)) for w in weights) * 4
    flops = 2 * n_pad * (HIDDEN * 2 * HIDDEN + 2 * HIDDEN * HIDDEN
                         + OUT_SIZE * HIDDEN + HIDDEN * OUT_SIZE)
    bytes_accessed = n_pad * (2 * HIDDEN + HIDDEN + OUT_SIZE + OUT_SIZE) * 4 + w_bytes

    out = pl.pallas_call(
        _relation_kernel,
        out_shape=jax.ShapeDtypeStruct((n_pad, OUT_SIZE), jnp.float32),
        grid_spec=pltpu.PrefetchScalarGridSpec(
            num_scalar_prefetch=0,
            grid=(n_pad // tile,),
            in_specs=[row(2 * HIDDEN), row(HIDDEN), row(OUT_SIZE)]
                     + [full(w) for w in weights],
            out_specs=row(OUT_SIZE)),
        compiler_params=pltpu.CompilerParams(
            dimension_semantics=("parallel",),
            vmem_limit_bytes=32 * 1024 * 1024),
        cost_estimate=pl.CostEstimate(flops=flops, transcendentals=0,
                                      bytes_accessed=bytes_accessed),
    )(ht_p, geo_p, un_p, *weights)
    return out[:n]


# ================================ glue (plain JAX) ================================

def encode_box_info(boxes, img_size):
    """boxes (N,4) xyxy, img_size (w,h) -> (N,9) normalized geometry encoding."""
    # TODO(synk): exact cvpods encode_box_info formula not in the spec excerpt; this is
    #             the standard motifs-style 9-D normalized encoding.
    wid, hei = float(img_size[0]), float(img_size[1])
    wh = boxes[:, 2:4] - boxes[:, 0:2] + 1.0
    ctr = boxes[:, 0:2] + 0.5 * wh
    w, h = wh[:, 0:1], wh[:, 1:2]
    x, y = ctr[:, 0:1], ctr[:, 1:2]
    x1, y1, x2, y2 = boxes[:, 0:1], boxes[:, 1:2], boxes[:, 2:3], boxes[:, 3:4]
    return jnp.concatenate(
        [w / wid, h / hei, x / wid, y / hei,
         x1 / wid, y1 / hei, x2 / wid, y2 / hei,
         (w * h) / (wid * hei)], axis=-1)


def get_box_info(boxes):
    """(N,4) xyxy -> (N,8): [x1,y1,x2,y2,cx,cy,w,h] (need_norm=False path)."""
    wh = boxes[:, 2:4] - boxes[:, 0:2] + 1.0
    ctr = boxes[:, 0:2] + 0.5 * wh
    return jnp.concatenate([boxes, ctr, wh], axis=1)


def get_box_pair_info(box1, box2):
    """(N,4),(N,4) -> (N,32): [info(b1), info(b2), info(union), info(intersection)]."""
    ub = jnp.stack([jnp.minimum(box1[:, 0], box2[:, 0]),
                    jnp.minimum(box1[:, 1], box2[:, 1]),
                    jnp.maximum(box1[:, 2], box2[:, 2]),
                    jnp.maximum(box1[:, 3], box2[:, 3])], axis=1)
    ib = jnp.stack([jnp.maximum(box1[:, 0], box2[:, 0]),
                    jnp.maximum(box1[:, 1], box2[:, 1]),
                    jnp.minimum(box1[:, 2], box2[:, 2]),
                    jnp.minimum(box1[:, 3], box2[:, 3])], axis=1)
    inter_info = get_box_info(ib)
    invalid = (ib[:, 2] < ib[:, 0]) | (ib[:, 3] < ib[:, 1])
    inter_info = jnp.where(invalid[:, None], 0.0, inter_info)
    return jnp.concatenate(
        [get_box_info(box1), get_box_info(box2), get_box_info(ub), inter_info], axis=1)


def _batchnorm_train(x, gamma, beta):
    mu = jnp.mean(x, axis=0, keepdims=True)
    var = jnp.mean((x - mu) ** 2, axis=0, keepdims=True)
    return (x - mu) * jax.lax.rsqrt(var + EPS) * gamma + beta


def _global_pair_indices(ent_batch_sizes, rel_pair_idxs):
    offsets = np.cumsum([0] + list(ent_batch_sizes))[:-1]
    head_idx = jnp.concatenate(
        [p[:, 0].astype(jnp.int32) + int(o) for p, o in zip(rel_pair_idxs, offsets)], axis=0)
    tail_idx = jnp.concatenate(
        [p[:, 1].astype(jnp.int32) + int(o) for p, o in zip(rel_pair_idxs, offsets)], axis=0)
    return head_idx, tail_idx


def relationship_feature_neck_forward(params, ent_boxes_list, ent_labels_list,
                                      image_sizes, rel_pair_idxs,
                                      rel_features_list, ent_features_list):
    ent_batch_sizes = [int(b.shape[0]) for b in ent_boxes_list]
    rel_batch_sizes = [int(r.shape[0]) for r in rel_features_list]

    # ---- entity-side preprocessing (tiny; full-batch BN hoisted here) ----
    ent_feats = jnp.concatenate(ent_features_list, axis=0)
    box9 = jnp.concatenate(
        [encode_box_info(b, s) for b, s in zip(ent_boxes_list, image_sizes)], axis=0)
    labels = jnp.concatenate(ent_labels_list, axis=0)
    word_emb = params['embed'][labels]          # predcls: embedding lookup on GT labels

    pre1 = jnp.dot(box9, params['wp1']) + params['bp1']          # Linear(9->32)
    pos_bn = _batchnorm_train(pre1, params['g1'], params['be1'])  # full-batch BN stats

    headtail = run_entity_kernel(ent_feats, word_emb, pos_bn, params)   # (N_ent, 2H)

    # ---- vectorized pair gather with global indices (no per-image Python loop) ----
    head_idx, tail_idx = _global_pair_indices(ent_batch_sizes, rel_pair_idxs)
    headtail_g = jnp.concatenate(
        [headtail[head_idx, :HIDDEN], headtail[tail_idx, HIDDEN:]], axis=-1)  # (N_rel, 2H)

    boxes_all = jnp.concatenate(ent_boxes_list, axis=0)
    pair32 = get_box_pair_info(boxes_all[head_idx], boxes_all[tail_idx])      # (N_rel, 32)

    pre_g = jnp.dot(pair32, params['wg1']) + params['bg1']        # Linear(32->H)
    geo_bn = jnp.maximum(
        _batchnorm_train(pre_g, params['gg'], params['bg']), 0.0)  # BN + ReLU (full batch)

    union_feats = jnp.concatenate(rel_features_list, axis=0)

    rel_out = run_relation_kernel(headtail_g, geo_bn, union_feats, params)

    # split back per image
    rel_features_out, off = [], 0
    for n in rel_batch_sizes:
        rel_features_out.append(rel_out[off:off + n])
        off += n
    return rel_features_out, ent_features_list, None


# ============================ pure-JAX reference (original structure) ============================

def reference_forward(params, ent_boxes_list, ent_labels_list, image_sizes,
                      rel_pair_idxs, rel_features_list, ent_features_list):
    ent_feats = jnp.concatenate(ent_features_list, axis=0)
    box9 = jnp.concatenate(
        [encode_box_info(b, s) for b, s in zip(ent_boxes_list, image_sizes)], axis=0)
    labels = jnp.concatenate(ent_labels_list, axis=0)
    word_emb = params['embed'][labels]

    # pos_embed: Linear(9,32) -> BN -> Linear(32,256) -> ReLU
    x = jnp.dot(box9, params['wp1']) + params['bp1']
    x = _batchnorm_train(x, params['g1'], params['be1'])
    pos = jnp.maximum(jnp.dot(x, params['wp2']) + params['bp2'], 0.0)

    feats4pair = jnp.concatenate([ent_feats, word_emb, pos], axis=-1)
    wh_full = jnp.concatenate([params['wh_ent'], params['wh_word'], params['wh_pos']], axis=0)
    h = jnp.dot(_leaky(feats4pair), wh_full) + params['bh']
    updim = jnp.dot(_leaky(h), params['wup']) + params['bup']
    updim = updim.reshape(-1, 2, HIDDEN)
    head, tail = updim[:, 0], updim[:, 1]

    # per-image loop (original structure)
    pair_feats, pair_boxes = [], []
    off = 0
    for boxes, pidx in zip(ent_boxes_list, rel_pair_idxs):
        n_e = boxes.shape[0]
        h_i, t_i = head[off:off + n_e], tail[off:off + n_e]
        pair_feats.append(jnp.concatenate([h_i[pidx[:, 0]], t_i[pidx[:, 1]]], axis=-1))
        pair_boxes.append(get_box_pair_info(boxes[pidx[:, 0]], boxes[pidx[:, 1]]))
        off += n_e
    ent_pair = jnp.concatenate(pair_feats, axis=0)
    pair32 = jnp.concatenate(pair_boxes, axis=0)

    g = jnp.dot(pair32, params['wg1']) + params['bg1']
    g = jnp.maximum(_batchnorm_train(g, params['gg'], params['bg']), 0.0)
    geo = jnp.dot(g, params['wg2']) + params['bg2']

    ent_pair = jnp.dot(_leaky(ent_pair * geo), params['wf']) + params['bf']
    union = jnp.concatenate(rel_features_list, axis=0)
    uf = jnp.dot(_leaky(union), params['wu']) + params['bu']
    out = jnp.dot(_leaky(ent_pair + uf), params['wo']) + params['bo']

    rel_features_out, off = [], 0
    for r in rel_features_list:
        n = r.shape[0]
        rel_features_out.append(out[off:off + n])
        off += n
    return rel_features_out, ent_features_list, None


# ================================ parameter init ================================

def init_params(key):
    ks = iter(jax.random.split(key, 24))

    def lin(i, o):
        bound = 1.0 / np.sqrt(i)
        w = jax.random.uniform(next(ks), (i, o), jnp.float32, -bound, bound)
        b = jax.random.uniform(next(ks), (1, o), jnp.float32, -bound, bound)
        return w, b

    p = {}
    p['embed'] = jax.random.normal(next(ks), (NUM_OBJ_CLASSES, WORD_DIM), jnp.float32)
    # pos_embed: Linear(9,32) + BN(32) + Linear(32,256)
    p['wp1'], p['bp1'] = lin(9, 32)
    p['g1'] = jnp.ones((1, 32), jnp.float32)
    p['be1'] = jnp.zeros((1, 32), jnp.float32)
    p['wp2'], p['bp2'] = lin(32, GEO_DIM)
    # ent4rel_hidden_fc: Linear(ENT+WORD+GEO, HIDDEN) stored as split row-segments
    fan_in = ENT_INPUT_DIM + WORD_DIM + GEO_DIM
    bound = 1.0 / np.sqrt(fan_in)
    p['wh_ent'] = jax.random.uniform(next(ks), (ENT_INPUT_DIM, HIDDEN), jnp.float32, -bound, bound)
    p['wh_word'] = jax.random.uniform(next(ks), (WORD_DIM, HIDDEN), jnp.float32, -bound, bound)
    p['wh_pos'] = jax.random.uniform(next(ks), (GEO_DIM, HIDDEN), jnp.float32, -bound, bound)
    p['bh'] = jax.random.uniform(next(ks), (1, HIDDEN), jnp.float32, -bound, bound)
    # pairwise_obj_feat_updim_fc: Linear(HIDDEN, 2*HIDDEN)  (fused head|tail columns)
    p['wup'], p['bup'] = lin(HIDDEN, 2 * HIDDEN)
    # pair_bbox_geo_embed: Linear(32,H) + BN(H) + Linear(H, 2H)  (fused head|tail columns)
    p['wg1'], p['bg1'] = lin(32, HIDDEN)
    p['gg'] = jnp.ones((1, HIDDEN), jnp.float32)
    p['bg'] = jnp.zeros((1, HIDDEN), jnp.float32)
    p['wg2'], p['bg2'] = lin(HIDDEN, 2 * HIDDEN)
    # ent_pair_fuse_fc: Linear(2H, H)
    p['wf'], p['bf'] = lin(2 * HIDDEN, HIDDEN)
    # union_fuse_fc: Linear(OUT_SIZE, H)
    p['wu'], p['bu'] = lin(OUT_SIZE, HIDDEN)
    # output_fc: Linear(H, OUT_SIZE)
    p['wo'], p['bo'] = lin(HIDDEN, OUT_SIZE)
    return p


# ==================================== main ====================================

if __name__ == "__main__":
    # Keep reference matmuls in full f32 so the Pallas/f32 comparison can be tight.
    jax.config.update("jax_default_matmul_precision", "float32")

    key = jax.random.PRNGKey(0)
    k_param, k_data = jax.random.split(key)
    params = init_params(k_param)

    # two images, small synthetic proposals/relations
    n_ents = [5, 3]
    n_rels = [6, 2]
    image_sizes = [(320.0, 240.0), (300.0, 200.0)]  # (w, h)

    dkeys = iter(jax.random.split(k_data, 16))
    ent_boxes_list, ent_labels_list, ent_features_list = [], [], []
    rel_pair_idxs, rel_features_list = [], []
    for n_e, n_r, (w, h) in zip(n_ents, n_rels, image_sizes):
        xy1 = jax.random.uniform(next(dkeys), (n_e, 2)) * jnp.array([0.6 * w, 0.6 * h])
        wh_ = jax.random.uniform(next(dkeys), (n_e, 2)) * jnp.array([0.3 * w, 0.3 * h]) + 8.0
        ent_boxes_list.append(jnp.concatenate([xy1, xy1 + wh_], axis=1).astype(jnp.float32))
        ent_labels_list.append(
            jax.random.randint(next(dkeys), (n_e,), 0, NUM_OBJ_CLASSES))
        ent_features_list.append(
            jax.random.normal(next(dkeys), (n_e, ENT_INPUT_DIM), jnp.float32))
        rel_pair_idxs.append(
            jax.random.randint(next(dkeys), (n_r, 2), 0, n_e))
        rel_features_list.append(
            jax.random.normal(next(dkeys), (n_r, OUT_SIZE), jnp.float32))

    rel_out, ent_out, extra = relationship_feature_neck_forward(
        params, ent_boxes_list, ent_labels_list, image_sizes,
        rel_pair_idxs, rel_features_list, ent_features_list)
    rel_out = [jax.block_until_ready(r) for r in rel_out]

    # pure-JAX reference replicating the original (un-fused, per-image-loop) structure
    rel_ref, _, _ = reference_forward(
        params, ent_boxes_list, ent_labels_list, image_sizes,
        rel_pair_idxs, rel_features_list, ent_features_list)
    rel_ref = [jax.block_until_ready(r) for r in rel_ref]

    for a, b, n in zip(rel_out, rel_ref, n_rels):
        assert a.shape == (n, OUT_SIZE) and a.dtype == jnp.float32
        np.testing.assert_allclose(np.asarray(a), np.asarray(b), rtol=1e-3, atol=1e-3)

    print("KERNEL_OK")
</pallas_src>

<mosaic_0001>
module attributes {stable_mosaic.version = 11 : i64} {
  func.func @_entity_kernel(%arg0: i32, %arg1: memref<8x64xf32, #tpu.memory_space<vmem>>, %arg2: memref<8x32xf32, #tpu.memory_space<vmem>>, %arg3: memref<8x32xf32, #tpu.memory_space<vmem>>, %arg4: memref<32x256xf32, #tpu.memory_space<vmem>>, %arg5: memref<1x256xf32, #tpu.memory_space<vmem>>, %arg6: memref<64x32xf32, #tpu.memory_space<vmem>>, %arg7: memref<32x32xf32, #tpu.memory_space<vmem>>, %arg8: memref<256x32xf32, #tpu.memory_space<vmem>>, %arg9: memref<1x32xf32, #tpu.memory_space<vmem>>, %arg10: memref<32x64xf32, #tpu.memory_space<vmem>>, %arg11: memref<1x64xf32, #tpu.memory_space<vmem>>, %arg12: memref<8x64xf32, #tpu.memory_space<vmem>>) attributes {dimension_semantics = [#tpu.dimension_semantics<parallel>], iteration_bounds = array<i64: 1>, scalar_prefetch = 0 : i64, scratch_operands = 0 : i64, tpu.core_type = #tpu.core_type<tc>, window_params = [{transform_indices = @transform_0, window_bounds = array<i64: 8, 64>}, {transform_indices = @transform_1, window_bounds = array<i64: 8, 32>}, {transform_indices = @transform_2, window_bounds = array<i64: 8, 32>}, {pipeline_mode = #tpu.pipeline_mode<synchronous>, transform_indices = @transform_3, window_bounds = array<i64: 32, 256>}, {pipeline_mode = #tpu.pipeline_mode<synchronous>, transform_indices = @transform_4, window_bounds = array<i64: 1, 256>}, {pipeline_mode = #tpu.pipeline_mode<synchronous>, transform_indices = @transform_5, window_bounds = array<i64: 64, 32>}, {pipeline_mode = #tpu.pipeline_mode<synchronous>, transform_indices = @transform_6, window_bounds = array<i64: 32, 32>}, {pipeline_mode = #tpu.pipeline_mode<synchronous>, transform_indices = @transform_7, window_bounds = array<i64: 256, 32>}, {pipeline_mode = #tpu.pipeline_mode<synchronous>, transform_indices = @transform_8, window_bounds = array<i64: 1, 32>}, {pipeline_mode = #tpu.pipeline_mode<synchronous>, transform_indices = @transform_9, window_bounds = array<i64: 32, 64>}, {pipeline_mode = #tpu.pipeline_mode<synchronous>, transform_indices = @transform_10, window_bounds = array<i64: 1, 64>}, {transform_indices = @transform_11, window_bounds = array<i64: 8, 64>}]} {
    %c0 = arith.constant 0 : index
    %c0_0 = arith.constant 0 : index
    %0 = vector.load %arg3[%c0, %c0_0] : memref<8x32xf32, #tpu.memory_space<vmem>>, vector<8x32xf32>
    %c0_1 = arith.constant 0 : index
    %c0_2 = arith.constant 0 : index
    %1 = vector.load %arg4[%c0_1, %c0_2] : memref<32x256xf32, #tpu.memory_space<vmem>>, vector<32x256xf32>
    %cst = arith.constant dense<0.000000e+00> : vector<8x256xf32>
    %2 = tpu.matmul %0, %1, %cst {dimension_numbers = #tpu.dot_dimension_numbers<[1], [0], [0], [1], [0, 0, 1, 1], [], []>, precision = #tpu.contract_precision<fp32>} : vector<8x32xf32>, vector<32x256xf32>, vector<8x256xf32> -> vector<8x256xf32>
    %c0_3 = arith.constant 0 : index
    %c0_4 = arith.constant 0 : index
    %3 = vector.load %arg5[%c0_3, %c0_4] : memref<1x256xf32, #tpu.memory_space<vmem>>, vector<1x256xf32>
    %4 = vector.broadcast %3 : vector<1x256xf32> to vector<8x256xf32>
    %5 = arith.addf %2, %4 : vector<8x256xf32>
    %cst_5 = arith.constant 0.000000e+00 : f32
    %6 = vector.broadcast %cst_5 : f32 to vector<8x256xf32>
    %7 = arith.maximumf %5, %6 : vector<8x256xf32>
    %c0_6 = arith.constant 0 : index
    %c0_7 = arith.constant 0 : index
    %8 = vector.load %arg1[%c0_6, %c0_7] : memref<8x64xf32, #tpu.memory_space<vmem>>, vector<8x64xf32>
    %cst_8 = arith.constant 0.000000e+00 : f32
    %9 = vector.broadcast %cst_8 : f32 to vector<8x64xf32>
    %10 = arith.cmpf oge, %8, %9 : vector<8x64xf32>
    %cst_9 = arith.constant 0.00999999977 : f32
    %11 = vector.broadcast %cst_9 : f32 to vector<8x64xf32>
    %12 = arith.mulf %11, %8 : vector<8x64xf32>
    %13 = arith.select %10, %8, %12 : vector<8x64xi1>, vector<8x64xf32>
    %c0_10 = arith.constant 0 : index
    %c0_11 = arith.constant 0 : index
    %14 = vector.load %arg6[%c0_10, %c0_11] : memref<64x32xf32, #tpu.memory_space<vmem>>, vector<64x32xf32>
    %cst_12 = arith.constant dense<0.000000e+00> : vector<8x32xf32>
    %15 = tpu.matmul %13, %14, %cst_12 {dimension_numbers = #tpu.dot_dimension_numbers<[1], [0], [0], [1], [0, 0, 1, 1], [], []>, precision = #tpu.contract_precision<fp32>} : vector<8x64xf32>, vector<64x32xf32>, vector<8x32xf32> -> vector<8x32xf32>
    %c0_13 = arith.constant 0 : index
    %c0_14 = arith.constant 0 : index
    %16 = vector.load %arg2[%c0_13, %c0_14] : memref<8x32xf32, #tpu.memory_space<vmem>>, vector<8x32xf32>
    %cst_15 = arith.constant 0.000000e+00 : f32
    %17 = vector.broadcast %cst_15 : f32 to vector<8x32xf32>
    %18 = arith.cmpf oge, %16, %17 : vector<8x32xf32>
    %cst_16 = arith.constant 0.00999999977 : f32
    %19 = vector.broadcast %cst_16 : f32 to vector<8x32xf32>
    %20 = arith.mulf %19, %16 : vector<8x32xf32>
    %21 = arith.select %18, %16, %20 : vector<8x32xi1>, vector<8x32xf32>
    %c0_17 = arith.constant 0 : index
    %c0_18 = arith.constant 0 : index
    %22 = vector.load %arg7[%c0_17, %c0_18] : memref<32x32xf32, #tpu.memory_space<vmem>>, vector<32x32xf32>
    %cst_19 = arith.constant dense<0.000000e+00> : vector<8x32xf32>
    %23 = tpu.matmul %21, %22, %cst_19 {dimension_numbers = #tpu.dot_dimension_numbers<[1], [0], [0], [1], [0, 0, 1, 1], [], []>, precision = #tpu.contract_precision<fp32>} : vector<8x32xf32>, vector<32x32xf32>, vector<8x32xf32> -> vector<8x32xf32>
    %24 = arith.addf %15, %23 : vector<8x32xf32>
    %cst_20 = arith.constant 0.000000e+00 : f32
    %25 = vector.broadcast %cst_20 : f32 to vector<8x256xf32>
    %26 = arith.cmpf oge, %7, %25 : vector<8x256xf32>
    %cst_21 = arith.constant 0.00999999977 : f32
    %27 = vector.broadcast %cst_21 : f32 to vector<8x256xf32>
    %28 = arith.mulf %27, %7 : vector<8x256xf32>
    %29 = arith.select %26, %7, %28 : vector<8x256xi1>, vector<8x256xf32>
    %c0_22 = arith.constant 0 : index
    %c0_23 = arith.constant 0 : index
    %30 = vector.load %arg8[%c0_22, %c0_23] : memref<256x32xf32, #tpu.memory_space<vmem>>, vector<256x32xf32>
    %cst_24 = arith.constant dense<0.000000e+00> : vector<8x32xf32>
    %31 = tpu.matmul %29, %30, %cst_24 {dimension_numbers = #tpu.dot_dimension_numbers<[1], [0], [0], [1], [0, 0, 1, 1], [], []>, precision = #tpu.contract_precision<fp32>} : vector<8x256xf32>, vector<256x32xf32>, vector<8x32xf32> -> vector<8x32xf32>
    %32 = arith.addf %24, %31 : vector<8x32xf32>
    %c0_25 = arith.constant 0 : index
    %c0_26 = arith.constant 0 : index
    %33 = vector.load %arg9[%c0_25, %c0_26] : memref<1x32xf32, #tpu.memory_space<vmem>>, vector<1x32xf32>
    %34 = vector.broadcast %33 : vector<1x32xf32> to vector<8x32xf32>
    %35 = arith.addf %32, %34 : vector<8x32xf32>
    %cst_27 = arith.constant 0.000000e+00 : f32
    %36 = vector.broadcast %cst_27 : f32 to vector<8x32xf32>
    %37 = arith.cmpf oge, %35, %36 : vector<8x32xf32>
    %cst_28 = arith.constant 0.00999999977 : f32
    %38 = vector.broadcast %cst_28 : f32 to vector<8x32xf32>
    %39 = arith.mulf %38, %35 : vector<8x32xf32>
    %40 = arith.select %37, %35, %39 : vector<8x32xi1>, vector<8x32xf32>
    %c0_29 = arith.constant 0 : index
    %c0_30 = arith.constant 0 : index
    %41 = vector.load %arg10[%c0_29, %c0_30] : memref<32x64xf32, #tpu.memory_space<vmem>>, vector<32x64xf32>
    %cst_31 = arith.constant dense<0.000000e+00> : vector<8x64xf32>
    %42 = tpu.matmul %40, %41, %cst_31 {dimension_numbers = #tpu.dot_dimension_numbers<[1], [0], [0], [1], [0, 0, 1, 1], [], []>, precision = #tpu.contract_precision<fp32>} : vector<8x32xf32>, vector<32x64xf32>, vector<8x64xf32> -> vector<8x64xf32>
    %c0_32 = arith.constant 0 : index
    %c0_33 = arith.constant 0 : index
    %43 = vector.load %arg11[%c0_32, %c0_33] : memref<1x64xf32, #tpu.memory_space<vmem>>, vector<1x64xf32>
    %44 = vector.broadcast %43 : vector<1x64xf32> to vector<8x64xf32>
    %45 = arith.addf %42, %44 : vector<8x64xf32>
    %c0_34 = arith.constant 0 : index
    %c0_35 = arith.constant 0 : index
    %46 = vector.load %arg12[%c0_34, %c0_35] : memref<8x64xf32, #tpu.memory_space<vmem>>, vector<8x64xf32>
    tpu.vector_store %arg12[%c0_34, %c0_35], %45 {strides = array<i32>} : memref<8x64xf32, #tpu.memory_space<vmem>>, vector<8x64xf32>,
    return
  }
  func.func @transform_0(%arg0: i32) -> (i32, i32) {
    %c0_i32 = arith.constant 0 : i32
    %c0_i32_0 = arith.constant 0 : i32
    return %arg0, %c0_i32 : i32, i32
  }
  func.func @transform_1(%arg0: i32) -> (i32, i32) {
    %c0_i32 = arith.constant 0 : i32
    %c0_i32_0 = arith.constant 0 : i32
    return %arg0, %c0_i32 : i32, i32
  }
  func.func @transform_2(%arg0: i32) -> (i32, i32) {
    %c0_i32 = arith.constant 0 : i32
    %c0_i32_0 = arith.constant 0 : i32
    return %arg0, %c0_i32 : i32, i32
  }
  func.func @transform_3(%arg0: i32) -> (i32, i32) {
    %c0_i32 = arith.constant 0 : i32
    %c0_i32_0 = arith.constant 0 : i32
    %c0_i32_1 = arith.constant 0 : i32
    return %c0_i32, %c0_i32_0 : i32, i32
  }
  func.func @transform_4(%arg0: i32) -> (i32, i32) {
    %c0_i32 = arith.constant 0 : i32
    %c0_i32_0 = arith.constant 0 : i32
    %c0_i32_1 = arith.constant 0 : i32
    return %c0_i32, %c0_i32_0 : i32, i32
  }
  func.func @transform_5(%arg0: i32) -> (i32, i32) {
    %c0_i32 = arith.constant 0 : i32
    %c0_i32_0 = arith.constant 0 : i32
    %c0_i32_1 = arith.constant 0 : i32
    return %c0_i32, %c0_i32_0 : i32, i32
  }
  func.func @transform_6(%arg0: i32) -> (i32, i32) {
    %c0_i32 = arith.constant 0 : i32
    %c0_i32_0 = arith.constant 0 : i32
    %c0_i32_1 = arith.constant 0 : i32
    return %c0_i32, %c0_i32_0 : i32, i32
  }
  func.func @transform_7(%arg0: i32) -> (i32, i32) {
    %c0_i32 = arith.constant 0 : i32
    %c0_i32_0 = arith.constant 0 : i32
    %c0_i32_1 = arith.constant 0 : i32
    return %c0_i32, %c0_i32_0 : i32, i32
  }
  func.func @transform_8(%arg0: i32) -> (i32, i32) {
    %c0_i32 = arith.constant 0 : i32
    %c0_i32_0 = arith.constant 0 : i32
    %c0_i32_1 = arith.constant 0 : i32
    return %c0_i32, %c0_i32_0 : i32, i32
  }
  func.func @transform_9(%arg0: i32) -> (i32, i32) {
    %c0_i32 = arith.constant 0 : i32
    %c0_i32_0 = arith.constant 0 : i32
    %c0_i32_1 = arith.constant 0 : i32
    return %c0_i32, %c0_i32_0 : i32, i32
  }
  func.func @transform_10(%arg0: i32) -> (i32, i32) {
    %c0_i32 = arith.constant 0 : i32
    %c0_i32_0 = arith.constant 0 : i32
    %c0_i32_1 = arith.constant 0 : i32
    return %c0_i32, %c0_i32_0 : i32, i32
  }
  func.func @transform_11(%arg0: i32) -> (i32, i32) {
    %c0_i32 = arith.constant 0 : i32
    %c0_i32_0 = arith.constant 0 : i32
    return %arg0, %c0_i32 : i32, i32
  }
}

</mosaic_0001>

<llo_original>
// kernel: tpu_custom_call.1
$region0: #{tpu_custom_call.1}
  #allocation0 [shape = 'u32[]', space=smem, size = 0x4, offset = 0x4, fixed_abs, tag = 'smem constant byte address 0x4 - core index']
  #allocation1 [shape = 'u32[144,128]{1,0:T(1,128)}', space=vmem, size = 0x12000, scoped, tag = 'internal scratch']
  %s0 = inlined_call_operand.vmem [shape: f32[8,64], index: 0, kind: input, shape index: {}]
  %s1 = inlined_call_operand.vmem [shape: f32[8,32], index: 1, kind: input, shape index: {}]
  %s2 = inlined_call_operand.vmem [shape: f32[8,32], index: 2, kind: input, shape index: {}]
  %s3 = inlined_call_operand.vmem [shape: f32[32,256], index: 3, kind: input, shape index: {}]
  %s4 = inlined_call_operand.vmem [shape: f32[1,256], index: 4, kind: input, shape index: {}]
  %s5 = inlined_call_operand.vmem [shape: f32[64,32], index: 5, kind: input, shape index: {}]
  %s6 = inlined_call_operand.vmem [shape: f32[32,32], index: 6, kind: input, shape index: {}]
  %s7 = inlined_call_operand.vmem [shape: f32[256,32], index: 7, kind: input, shape index: {}]
  %s8 = inlined_call_operand.vmem [shape: f32[1,32], index: 8, kind: input, shape index: {}]
  %s9 = inlined_call_operand.vmem [shape: f32[32,64], index: 9, kind: input, shape index: {}]
  %s10 = inlined_call_operand.vmem [shape: f32[1,64], index: 10, kind: input, shape index: {}]
  %s11 = inlined_call_operand.hbm [shape: f32[8,64], index: 11, kind: output, shape index: {}]
  %s12 = sld [smem:[#allocation0]]
  $region54: #{tpu_custom_call.1} parent=0
    _
  %s14 = ssub.s32 1, %s12
  %s15 = scalar_select 0, %s14, %s12
  $region1: #{tpu_custom_call.1} parent=0
    #allocation2 [shape = 'u8[4096]{0}', space=vmem, size = 0x1000, scoped, tag = 'output window, operand 0, single buffered']
    #allocation3 [shape = 's32[1]{0}', space=sflag, size = 0x4, scoped, tag = 'scoped memory for tpu_custom_call.1']
    %16 = vsyncpa [#allocation3], 0
    // Predicated region
    $region2: #{tpu_custom_call.1} parent=1 // pred_check
      _
    $region3: #{tpu_custom_call.1} parent=1 // pred_check_branch
      %18 = sbr.rel (0) target = $region5
    $region4: #{tpu_custom_call.1} parent=1 // pred_region
      _
    $region5: #{tpu_custom_call.1} parent=1 // pred_fallthru
      _
    // Predicated region
    $region6: #{tpu_custom_call.1} parent=1 // pred_check
      _
    $region7: #{tpu_custom_call.1} parent=1 // pred_check_branch
      %20 = sbr.rel (0) target = $region9
    $region8: #{tpu_custom_call.1} parent=1 // pred_region
      _
    $region9: #{tpu_custom_call.1} parent=1 // pred_fallthru
      _
    // Predicated region
    $region10: #{tpu_custom_call.1} parent=1 // pred_check
      _
    $region11: #{tpu_custom_call.1} parent=1 // pred_check_branch
      %22 = sbr.rel (0) target = $region13
    $region12: #{tpu_custom_call.1} parent=1 // pred_region
      _
    $region13: #{tpu_custom_call.1} parent=1 // pred_fallthru
      _
    // Predicated region
    $region14: #{tpu_custom_call.1} parent=1 // pred_check
      _
    $region15: #{tpu_custom_call.1} parent=1 // pred_check_branch
      %24 = sbr.rel (0) target = $region17
    $region16: #{tpu_custom_call.1} parent=1 // pred_region
      _
    $region17: #{tpu_custom_call.1} parent=1 // pred_fallthru
      _
    // Predicated region
    $region18: #{tpu_custom_call.1} parent=1 // pred_check
      _
    $region19: #{tpu_custom_call.1} parent=1 // pred_check_branch
      %26 = sbr.rel (0) target = $region21
    $region20: #{tpu_custom_call.1} parent=1 // pred_region
      _
    $region21: #{tpu_custom_call.1} parent=1 // pred_fallthru
      _
    // Predicated region
    $region22: #{tpu_custom_call.1} parent=1 // pred_check
      _
    $region23: #{tpu_custom_call.1} parent=1 // pred_check_branch
      %28 = sbr.rel (0) target = $region25
    $region24: #{tpu_custom_call.1} parent=1 // pred_region
      _
    $region25: #{tpu_custom_call.1} parent=1 // pred_fallthru
      _
    // Predicated region
    $region26: #{tpu_custom_call.1} parent=1 // pred_check
      _
    $region27: #{tpu_custom_call.1} parent=1 // pred_check_branch
      %30 = sbr.rel (0) target = $region29
    $region28: #{tpu_custom_call.1} parent=1 // pred_region
      _
    $region29: #{tpu_custom_call.1} parent=1 // pred_fallthru
      _
    // Predicated region
    $region30: #{tpu_custom_call.1} parent=1 // pred_check
      _
    $region31: #{tpu_custom_call.1} parent=1 // pred_check_branch
      %32 = sbr.rel (0) target = $region33
    $region32: #{tpu_custom_call.1} parent=1 // pred_region
      _
    $region33: #{tpu_custom_call.1} parent=1 // pred_fallthru
      _
    // Predicated region
    $region34: #{tpu_custom_call.1} parent=1 // pred_check
      _
    $region35: #{tpu_custom_call.1} parent=1 // pred_check_branch
      %34 = sbr.rel (0) target = $region37
    $region36: #{tpu_custom_call.1} parent=1 // pred_region
      _
    $region37: #{tpu_custom_call.1} parent=1 // pred_fallthru
      _
    // Predicated region
    $region38: #{tpu_custom_call.1} parent=1 // pred_check
      _
    $region39: #{tpu_custom_call.1} parent=1 // pred_check_branch
      %36 = sbr.rel (0) target = $region41
    $region40: #{tpu_custom_call.1} parent=1 // pred_region
      _
    $region41: #{tpu_custom_call.1} parent=1 // pred_fallthru
      _
    // Predicated region
    $region42: #{tpu_custom_call.1} parent=1 // pred_check
      _
    $region43: #{tpu_custom_call.1} parent=1 // pred_check_branch
      %38 = sbr.rel (0) target = $region45
    $region44: #{tpu_custom_call.1} parent=1 // pred_region
      _
    $region45: #{tpu_custom_call.1} parent=1 // pred_fallthru
      _
    %v39 = vld [vmem:[%s2] sm:$0xff]
    %v40 = vld [vmem:[%s3] sm:$0xff]
    %v41 = vld [vmem:[%s3 + $0x8] sm:$0xff]
    %v42 = vld [vmem:[%s3 + $0x10] sm:$0xff]
    %v43 = vld [vmem:[%s3 + $0x18] sm:$0xff]
    %v44 = vld [vmem:[%s3 + $0x20] sm:$0xff]
    %v45 = vld [vmem:[%s3 + $0x28] sm:$0xff]
    %v46 = vld [vmem:[%s3 + $0x30] sm:$0xff]
    %v47 = vld [vmem:[%s3 + $0x38] sm:$0xff]
    %v48 = vld [vmem:[%s4] sm:$0x3]
    %v50 = vlaneseq
    %v51 = vshrl.u32 %v50, 7
    %v52 = vsub.s32 0, %v51
    %v53 = vrot.slane %v48, %v52
    %v54 = vlaneseq
    %v55 = vshrl.u32 %v54, 7
    %v56 = vsub.s32 1, %v55
    %v57 = vrot.slane %v48, %v56
    %vm60 = vcmask 261120
    %v62 = vsel %vm60, %v39, 0
    %v64 = vand.u32 %v41, 4294901760
    %65 = vmatprep.subr.mxu0 %v64
    %v66 = vand.u32 %v40, 4294901760
    %67 = vmatpush1.msra.mxu0 %v66
    %v68 = vand.u32 %v43, 4294901760
    %69 = vmatprep.subr.mxu0 %v68
    %v70 = vand.u32 %v42, 4294901760
    %71 = vmatpush1.msra.mxu0 %v70
    %v72 = vand.u32 %v45, 4294901760
    %73 = vmatprep.subr.mxu0 %v72
    %v74 = vand.u32 %v44, 4294901760
    %75 = vmatpush1.msra.mxu0 %v74
    %v76 = vand.u32 %v47, 4294901760
    %77 = vmatprep.subr.mxu0 %v76
    %v78 = vand.u32 %v46, 4294901760
    %79 = vmatpush1.msra.mxu0 %v78
    %80 = vmatprep.subr.mxu0 0.0
    %81 = vmatpush1.msra.mxu0 0.0
    %82 = vmatprep.subr.mxu0 0.0
    %83 = vmatpush1.msra.mxu0 0.0
    %84 = vmatprep.subr.mxu0 0.0
    %85 = vmatpush1.msra.mxu0 0.0
    %86 = vmatprep.subr.mxu0 0.0
    %87 = vmatpush1.msra.mxu0 0.0
    %88 = vmatprep.subr.mxu0 0.0
    %89 = vmatpush1.msra.mxu0 0.0
    %90 = vmatprep.subr.mxu0 0.0
    %91 = vmatpush1.msra.mxu0 0.0
    %92 = vmatprep.subr.mxu0 0.0
    %93 = vmatpush1.msra.mxu0 0.0
    %94 = vmatprep.subr.mxu0 0.0
    %95 = vmatpush1.msra.mxu0 0.0
    %96 = vmatprep.subr.mxu0 0.0
    %97 = vmatpush1.msra.mxu0 0.0
    %98 = vmatprep.subr.mxu0 0.0
    %99 = vmatpush1.msra.mxu0 0.0
    %100 = vmatprep.subr.mxu0 0.0
    %101 = vmatpush1.msra.mxu0 0.0
    %102 = vmatprep.subr.mxu0 0.0
    %103 = vmatpush1.msra.mxu0 0.0
    %104 = vmatprep.subr.mxu0 0.0
    %105 = vmatpush1.msra.mxu0 0.0
    %106 = vmatprep.subr.mxu0 0.0
    %107 = vmatpush1.msra.mxu0 0.0
    %108 = vmatprep.subr.mxu0 0.0
    %109 = vmatpush1.msra.mxu0 0.0
    %110 = vmatprep.subr.mxu0 0.0
    %111 = vmatpush1.msra.mxu0 0.0
    %112 = vmatprep.subr.mxu0 0.0
    %113 = vmatpush1.msra.mxu0 0.0
    %114 = vmatprep.subr.mxu0 0.0
    %115 = vmatpush1.msra.mxu0 0.0
    %116 = vmatprep.subr.mxu0 0.0
    %117 = vmatpush1.msra.mxu0 0.0
    %118 = vmatprep.subr.mxu0 0.0
    %119 = vmatpush1.msra.mxu0 0.0
    %120 = vmatprep.subr.mxu0 0.0
    %121 = vmatpush1.msra.mxu0 0.0
    %122 = vmatprep.subr.mxu0 0.0
    %123 = vmatpush1.msra.mxu0 0.0
    %124 = vmatprep.subr.mxu0 0.0
    %125 = vmatpush1.msra.mxu0 0.0
    %126 = vmatprep.subr.mxu0 0.0
    %127 = vmatpush1.msra.mxu0 0.0
    %128 = vmatprep.subr.mxu0 0.0
    %129 = vmatpush1.msra.mxu0 0.0
    %130 = vmatprep.subr.mxu0 0.0
    %131 = vmatpush1.msra.mxu0 0.0
    %132 = vmatprep.subr.mxu0 0.0
    %133 = vmatpush1.msra.mxu0 0.0
    %134 = vmatprep.subr.mxu0 0.0
    %135 = vmatpush1.msra.mxu0 0.0
    %136 = vmatprep.mubr.f32.mxu0 0.0
    %v137 = vand.u32 %v62, 4294901760
    %v138 = vsub.f32 %v62, %v137
    %v139 = vand.u32 %v138, 4294901760
    %v140 = vsub.f32 %v138, %v139
    %v141 = vand.u32 %v140, 4294901760
    %142 = vmatmul.mubr.f32.gmra.mrb[0].mxu0 %v141
    %v143 = vpop.f32.mrb[0].mxu0
    %v144 = vadd.f32 %v53, %v143
    %v145 = vpop.f32.mrb[0].mxu0
    %v146 = vadd.f32 %v57, %v145
    %147 = vdwg.mxu0
    %v148 = vand.u32 %v41, 4294901760
    %v149 = vsub.f32 %v41, %v148
    %v150 = vand.u32 %v149, 4294901760
    %v151 = vsub.f32 %v149, %v150
    %v152 = vand.u32 %v151, 4294901760
    %153 = vmatprep.subr.mxu0 %v152
    %v154 = vand.u32 %v40, 4294901760
    %v155 = vsub.f32 %v40, %v154
    %v156 = vand.u32 %v155, 4294901760
    %v157 = vsub.f32 %v155, %v156
    %v158 = vand.u32 %v157, 4294901760
    %159 = vmatpush1.msra.mxu0 %v158
    %v160 = vand.u32 %v43, 4294901760
    %v161 = vsub.f32 %v43, %v160
    %v162 = vand.u32 %v161, 4294901760
    %v163 = vsub.f32 %v161, %v162
    %v164 = vand.u32 %v163, 4294901760
    %165 = vmatprep.subr.mxu0 %v164
    %v166 = vand.u32 %v42, 4294901760
    %v167 = vsub.f32 %v42, %v166
    %v168 = vand.u32 %v167, 4294901760
    %v169 = vsub.f32 %v167, %v168
    %v170 = vand.u32 %v169, 4294901760
    %171 = vmatpush1.msra.mxu0 %v170
    %v172 = vand.u32 %v45, 4294901760
    %v173 = vsub.f32 %v45, %v172
    %v174 = vand.u32 %v173, 4294901760
    %v175 = vsub.f32 %v173, %v174
    %v176 = vand.u32 %v175, 4294901760
    %177 = vmatprep.subr.mxu0 %v176
    %v178 = vand.u32 %v44, 4294901760
    %v179 = vsub.f32 %v44, %v178
    %v180 = vand.u32 %v179, 4294901760
    %v181 = vsub.f32 %v179, %v180
    %v182 = vand.u32 %v181, 4294901760
    %183 = vmatpush1.msra.mxu0 %v182
    %v184 = vand.u32 %v47, 4294901760
    %v185 = vsub.f32 %v47, %v184
    %v186 = vand.u32 %v185, 4294901760
    %v187 = vsub.f32 %v185, %v186
    %v188 = vand.u32 %v187, 4294901760
    %189 = vmatprep.subr.mxu0 %v188
    %v190 = vand.u32 %v46, 4294901760
    %v191 = vsub.f32 %v46, %v190
    %v192 = vand.u32 %v191, 4294901760
    %v193 = vsub.f32 %v191, %v192
    %v194 = vand.u32 %v193, 4294901760
    %195 = vmatpush1.msra.mxu0 %v194
    %196 = vmatprep.subr.mxu0 0.0
    %197 = vmatpush1.msra.mxu0 0.0
    %198 = vmatprep.subr.mxu0 0.0
    %199 = vmatpush1.msra.mxu0 0.0
    %200 = vmatprep.subr.mxu0 0.0
    %201 = vmatpush1.msra.mxu0 0.0
    %202 = vmatprep.subr.mxu0 0.0
    %203 = vmatpush1.msra.mxu0 0.0
    %204 = vmatprep.subr.mxu0 0.0
    %205 = vmatpush1.msra.mxu0 0.0
    %206 = vmatprep.subr.mxu0 0.0
    %207 = vmatpush1.msra.mxu0 0.0
    %208 = vmatprep.subr.mxu0 0.0
    %209 = vmatpush1.msra.mxu0 0.0
    %210 = vmatprep.subr.mxu0 0.0
    %211 = vmatpush1.msra.mxu0 0.0
    %212 = vmatprep.subr.mxu0 0.0
    %213 = vmatpush1.msra.mxu0 0.0
    %214 = vmatprep.subr.mxu0 0.0
    %215 = vmatpush1.msra.mxu0 0.0
    %216 = vmatprep.subr.mxu0 0.0
    %217 = vmatpush1.msra.mxu0 0.0
    %218 = vmatprep.subr.mxu0 0.0
    %219 = vmatpush1.msra.mxu0 0.0
    %220 = vmatprep.subr.mxu0 0.0
    %221 = vmatpush1.msra.mxu0 0.0
    %222 = vmatprep.subr.mxu0 0.0
    %223 = vmatpush1.msra.mxu0 0.0
    %224 = vmatprep.subr.mxu0 0.0
    %225 = vmatpush1.msra.mxu0 0.0
    %226 = vmatprep.subr.mxu0 0.0
    %227 = vmatpush1.msra.mxu0 0.0
    %228 = vmatprep.subr.mxu0 0.0
    %229 = vmatpush1.msra.mxu0 0.0
    %230 = vmatprep.subr.mxu0 0.0
    %231 = vmatpush1.msra.mxu0 0.0
    %232 = vmatprep.subr.mxu0 0.0
    %233 = vmatpush1.msra.mxu0 0.0
    %234 = vmatprep.subr.mxu0 0.0
    %235 = vmatpush1.msra.mxu0 0.0
    %236 = vmatprep.subr.mxu0 0.0
    %237 = vmatpush1.msra.mxu0 0.0
    %238 = vmatprep.subr.mxu0 0.0
    %239 = vmatpush1.msra.mxu0 0.0
    %240 = vmatprep.subr.mxu0 0.0
    %241 = vmatpush1.msra.mxu0 0.0
    %242 = vmatprep.subr.mxu0 0.0
    %243 = vmatpush1.msra.mxu0 0.0
    %244 = vmatprep.subr.mxu0 0.0
    %245 = vmatpush1.msra.mxu0 0.0
    %246 = vmatprep.subr.mxu0 0.0
    %247 = vmatpush1.msra.mxu0 0.0
    %248 = vmatprep.subr.mxu0 0.0
    %249 = vmatpush1.msra.mxu0 0.0
    %250 = vmatprep.subr.mxu0 0.0
    %251 = vmatpush1.msra.mxu0 0.0
    %252 = vmatprep.mubr.f32.mxu0 0.0
    %v253 = vand.u32 %v62, 4294901760
    %254 = vmatmul.mubr.f32.gmra.mrb[0].mxu0 %v253
    %v255 = vpop.f32.mrb[0].mxu0
    %v256 = vadd.f32 %v144, %v255
    %v257 = vpop.f32.mrb[0].mxu0
    %v258 = vadd.f32 %v146, %v257
    %259 = vdwg.mxu0
    %v260 = vand.u32 %v41, 4294901760
    %v261 = vsub.f32 %v41, %v260
    %262 = vmatprep.subr.mxu0 %v261
    %v263 = vand.u32 %v40, 4294901760
    %v264 = vsub.f32 %v40, %v263
    %265 = vmatpush1.msra.mxu0 %v264
    %v266 = vand.u32 %v43, 4294901760
    %v267 = vsub.f32 %v43, %v266
    %268 = vmatprep.subr.mxu0 %v267
    %v269 = vand.u32 %v42, 4294901760
    %v270 = vsub.f32 %v42, %v269
    %271 = vmatpush1.msra.mxu0 %v270
    %v272 = vand.u32 %v45, 4294901760
    %v273 = vsub.f32 %v45, %v272
    %274 = vmatprep.subr.mxu0 %v273
    %v275 = vand.u32 %v44, 4294901760
    %v276 = vsub.f32 %v44, %v275
    %277 = vmatpush1.msra.mxu0 %v276
    %v278 = vand.u32 %v47, 4294901760
    %v279 = vsub.f32 %v47, %v278
    %280 = vmatprep.subr.mxu0 %v279
    %v281 = vand.u32 %v46, 4294901760
    %v282 = vsub.f32 %v46, %v281
    %283 = vmatpush1.msra.mxu0 %v282
    %284 = vmatprep.subr.mxu0 0.0
    %285 = vmatpush1.msra.mxu0 0.0
    %286 = vmatprep.subr.mxu0 0.0
    %287 = vmatpush1.msra.mxu0 0.0
    %288 = vmatprep.subr.mxu0 0.0
    %289 = vmatpush1.msra.mxu0 0.0
    %290 = vmatprep.subr.mxu0 0.0
    %291 = vmatpush1.msra.mxu0 0.0
    %292 = vmatprep.subr.mxu0 0.0
    %293 = vmatpush1.msra.mxu0 0.0
    %294 = vmatprep.subr.mxu0 0.0
    %295 = vmatpush1.msra.mxu0 0.0
    %296 = vmatprep.subr.mxu0 0.0
    %297 = vmatpush1.msra.mxu0 0.0
    %298 = vmatprep.subr.mxu0 0.0
    %299 = vmatpush1.msra.mxu0 0.0
    %300 = vmatprep.subr.mxu0 0.0
    %301 = vmatpush1.msra.mxu0 0.0
    %302 = vmatprep.subr.mxu0 0.0
    %303 = vmatpush1.msra.mxu0 0.0
    %304 = vmatprep.subr.mxu0 0.0
    %305 = vmatpush1.msra.mxu0 0.0
    %306 = vmatprep.subr.mxu0 0.0
    %307 = vmatpush1.msra.mxu0 0.0
    %308 = vmatprep.subr.mxu0 0.0
    %309 = vmatpush1.msra.mxu0 0.0
    %310 = vmatprep.subr.mxu0 0.0
    %311 = vmatpush1.msra.mxu0 0.0
    %312 = vmatprep.subr.mxu0 0.0
    %313 = vmatpush1.msra.mxu0 0.0
    %314 = vmatprep.subr.mxu0 0.0
    %315 = vmatpush1.msra.mxu0 0.0
    %316 = vmatprep.subr.mxu0 0.0
    %317 = vmatpush1.msra.mxu0 0.0
    %318 = vmatprep.subr.mxu0 0.0
    %319 = vmatpush1.msra.mxu0 0.0
    %320 = vmatprep.subr.mxu0 0.0
    %321 = vmatpush1.msra.mxu0 0.0
    %322 = vmatprep.subr.mxu0 0.0
    %323 = vmatpush1.msra.mxu0 0.0
    %324 = vmatprep.subr.mxu0 0.0
    %325 = vmatpush1.msra.mxu0 0.0
    %326 = vmatprep.subr.mxu0 0.0
    %327 = vmatpush1.msra.mxu0 0.0
    %328 = vmatprep.subr.mxu0 0.0
    %329 = vmatpush1.msra.mxu0 0.0
    %330 = vmatprep.subr.mxu0 0.0
    %331 = vmatpush1.msra.mxu0 0.0
    %332 = vmatprep.subr.mxu0 0.0
    %333 = vmatpush1.msra.mxu0 0.0
    %334 = vmatprep.subr.mxu0 0.0
    %335 = vmatpush1.msra.mxu0 0.0
    %336 = vmatprep.subr.mxu0 0.0
    %337 = vmatpush1.msra.mxu0 0.0
    %338 = vmatprep.subr.mxu0 0.0
    %339 = vmatpush1.msra.mxu0 0.0
    %340 = vmatprep.mubr.f32.mxu0 0.0
    %v341 = vand.u32 %v62, 4294901760
    %v342 = vsub.f32 %v62, %v341
    %343 = vmatmul.mubr.f32.gmra.mrb[0].mxu0 %v342
    %v344 = vpop.f32.mrb[0].mxu0
    %v345 = vadd.f32 %v256, %v344
    %v346 = vpop.f32.mrb[0].mxu0
    %v347 = vadd.f32 %v258, %v346
    %348 = vdwg.mxu0
    %v349 = vand.u32 %v41, 4294901760
    %350 = vmatprep.subr.mxu0 %v349
    %v351 = vand.u32 %v40, 4294901760
    %352 = vmatpush1.msra.mxu0 %v351
    %v353 = vand.u32 %v43, 4294901760
    %354 = vmatprep.subr.mxu0 %v353
    %v355 = vand.u32 %v42, 4294901760
    %356 = vmatpush1.msra.mxu0 %v355
    %v357 = vand.u32 %v45, 4294901760
    %358 = vmatprep.subr.mxu0 %v357
    %v359 = vand.u32 %v44, 4294901760
    %360 = vmatpush1.msra.mxu0 %v359
    %v361 = vand.u32 %v47, 4294901760
    %362 = vmatprep.subr.mxu0 %v361
    %v363 = vand.u32 %v46, 4294901760
    %364 = vmatpush1.msra.mxu0 %v363
    %365 = vmatprep.subr.mxu0 0.0
    %366 = vmatpush1.msra.mxu0 0.0
    %367 = vmatprep.subr.mxu0 0.0
    %368 = vmatpush1.msra.mxu0 0.0
    %369 = vmatprep.subr.mxu0 0.0
    %370 = vmatpush1.msra.mxu0 0.0
    %371 = vmatprep.subr.mxu0 0.0
    %372 = vmatpush1.msra.mxu0 0.0
    %373 = vmatprep.subr.mxu0 0.0
    %374 = vmatpush1.msra.mxu0 0.0
    %375 = vmatprep.subr.mxu0 0.0
    %376 = vmatpush1.msra.mxu0 0.0
    %377 = vmatprep.subr.mxu0 0.0
    %378 = vmatpush1.msra.mxu0 0.0
    %379 = vmatprep.subr.mxu0 0.0
    %380 = vmatpush1.msra.mxu0 0.0
    %381 = vmatprep.subr.mxu0 0.0
    %382 = vmatpush1.msra.mxu0 0.0
    %383 = vmatprep.subr.mxu0 0.0
    %384 = vmatpush1.msra.mxu0 0.0
    %385 = vmatprep.subr.mxu0 0.0
    %386 = vmatpush1.msra.mxu0 0.0
    %387 = vmatprep.subr.mxu0 0.0
    %388 = vmatpush1.msra.mxu0 0.0
    %389 = vmatprep.subr.mxu0 0.0
    %390 = vmatpush1.msra.mxu0 0.0
    %391 = vmatprep.subr.mxu0 0.0
    %392 = vmatpush1.msra.mxu0 0.0
    %393 = vmatprep.subr.mxu0 0.0
    %394 = vmatpush1.msra.mxu0 0.0
    %395 = vmatprep.subr.mxu0 0.0
    %396 = vmatpush1.msra.mxu0 0.0
    %397 = vmatprep.subr.mxu0 0.0
    %398 = vmatpush1.msra.mxu0 0.0
    %399 = vmatprep.subr.mxu0 0.0
    %400 = vmatpush1.msra.mxu0 0.0
    %401 = vmatprep.subr.mxu0 0.0
    %402 = vmatpush1.msra.mxu0 0.0
    %403 = vmatprep.subr.mxu0 0.0
    %404 = vmatpush1.msra.mxu0 0.0
    %405 = vmatprep.subr.mxu0 0.0
    %406 = vmatpush1.msra.mxu0 0.0
    %407 = vmatprep.subr.mxu0 0.0
    %408 = vmatpush1.msra.mxu0 0.0
    %409 = vmatprep.subr.mxu0 0.0
    %410 = vmatpush1.msra.mxu0 0.0
    %411 = vmatprep.subr.mxu0 0.0
    %412 = vmatpush1.msra.mxu0 0.0
    %413 = vmatprep.subr.mxu0 0.0
    %414 = vmatpush1.msra.mxu0 0.0
    %415 = vmatprep.subr.mxu0 0.0
    %416 = vmatpush1.msra.mxu0 0.0
    %417 = vmatprep.subr.mxu0 0.0
    %418 = vmatpush1.msra.mxu0 0.0
    %419 = vmatprep.subr.mxu0 0.0
    %420 = vmatpush1.msra.mxu0 0.0
    %421 = vmatprep.mubr.f32.mxu0 0.0
    %v422 = vand.u32 %v62, 4294901760
    %v423 = vsub.f32 %v62, %v422
    %v424 = vand.u32 %v423, 4294901760
    %425 = vmatmul.mubr.f32.gmra.mrb[0].mxu0 %v424
    %v426 = vpop.f32.mrb[0].mxu0
    %v427 = vadd.f32 %v345, %v426
    %v428 = vpop.f32.mrb[0].mxu0
    %v429 = vadd.f32 %v347, %v428
    %430 = vdwg.mxu0
    %v431 = vand.u32 %v41, 4294901760
    %v432 = vsub.f32 %v41, %v431
    %v433 = vand.u32 %v432, 4294901760
    %434 = vmatprep.subr.mxu0 %v433
    %v435 = vand.u32 %v40, 4294901760
    %v436 = vsub.f32 %v40, %v435
    %v437 = vand.u32 %v436, 4294901760
    %438 = vmatpush1.msra.mxu0 %v437
    %v439 = vand.u32 %v43, 4294901760
    %v440 = vsub.f32 %v43, %v439
    %v441 = vand.u32 %v440, 4294901760
    %442 = vmatprep.subr.mxu0 %v441
    %v443 = vand.u32 %v42, 4294901760
    %v444 = vsub.f32 %v42, %v443
    %v445 = vand.u32 %v444, 4294901760
    %446 = vmatpush1.msra.mxu0 %v445
    %v447 = vand.u32 %v45, 4294901760
    %v448 = vsub.f32 %v45, %v447
    %v449 = vand.u32 %v448, 4294901760
    %450 = vmatprep.subr.mxu0 %v449
    %v451 = vand.u32 %v44, 4294901760
    %v452 = vsub.f32 %v44, %v451
    %v453 = vand.u32 %v452, 4294901760
    %454 = vmatpush1.msra.mxu0 %v453
    %v455 = vand.u32 %v47, 4294901760
    %v456 = vsub.f32 %v47, %v455
    %v457 = vand.u32 %v456, 4294901760
    %458 = vmatprep.subr.mxu0 %v457
    %v459 = vand.u32 %v46, 4294901760
    %v460 = vsub.f32 %v46, %v459
    %v461 = vand.u32 %v460, 4294901760
    %462 = vmatpush1.msra.mxu0 %v461
    %463 = vmatprep.subr.mxu0 0.0
    %464 = vmatpush1.msra.mxu0 0.0
    %465 = vmatprep.subr.mxu0 0.0
    %466 = vmatpush1.msra.mxu0 0.0
    %467 = vmatprep.subr.mxu0 0.0
    %468 = vmatpush1.msra.mxu0 0.0
    %469 = vmatprep.subr.mxu0 0.0
    %470 = vmatpush1.msra.mxu0 0.0
    %471 = vmatprep.subr.mxu0 0.0
    %472 = vmatpush1.msra.mxu0 0.0
    %473 = vmatprep.subr.mxu0 0.0
    %474 = vmatpush1.msra.mxu0 0.0
    %475 = vmatprep.subr.mxu0 0.0
    %476 = vmatpush1.msra.mxu0 0.0
    %477 = vmatprep.subr.mxu0 0.0
    %478 = vmatpush1.msra.mxu0 0.0
    %479 = vmatprep.subr.mxu0 0.0
    %480 = vmatpush1.msra.mxu0 0.0
    %481 = vmatprep.subr.mxu0 0.0
    %482 = vmatpush1.msra.mxu0 0.0
    %483 = vmatprep.subr.mxu0 0.0
    %484 = vmatpush1.msra.mxu0 0.0
    %485 = vmatprep.subr.mxu0 0.0
    %486 = vmatpush1.msra.mxu0 0.0
    %487 = vmatprep.subr.mxu0 0.0
    %488 = vmatpush1.msra.mxu0 0.0
    %489 = vmatprep.subr.mxu0 0.0
    %490 = vmatpush1.msra.mxu0 0.0
    %491 = vmatprep.subr.mxu0 0.0
    %492 = vmatpush1.msra.mxu0 0.0
    %493 = vmatprep.subr.mxu0 0.0
    %494 = vmatpush1.msra.mxu0 0.0
    %495 = vmatprep.subr.mxu0 0.0
    %496 = vmatpush1.msra.mxu0 0.0
    %497 = vmatprep.subr.mxu0 0.0
    %498 = vmatpush1.msra.mxu0 0.0
    %499 = vmatprep.subr.mxu0 0.0
    %500 = vmatpush1.msra.mxu0 0.0
    %501 = vmatprep.subr.mxu0 0.0
    %502 = vmatpush1.msra.mxu0 0.0
    %503 = vmatprep.subr.mxu0 0.0
    %504 = vmatpush1.msra.mxu0 0.0
    %505 = vmatprep.subr.mxu0 0.0
    %506 = vmatpush1.msra.mxu0 0.0
    %507 = vmatprep.subr.mxu0 0.0
    %508 = vmatpush1.msra.mxu0 0.0
    %509 = vmatprep.subr.mxu0 0.0
    %510 = vmatpush1.msra.mxu0 0.0
    %511 = vmatprep.subr.mxu0 0.0
    %512 = vmatpush1.msra.mxu0 0.0
    %513 = vmatprep.subr.mxu0 0.0
    %514 = vmatpush1.msra.mxu0 0.0
    %515 = vmatprep.subr.mxu0 0.0
    %516 = vmatpush1.msra.mxu0 0.0
    %517 = vmatprep.subr.mxu0 0.0
    %518 = vmatpush1.msra.mxu0 0.0
    %519 = vmatprep.mubr.f32.mxu0 0.0
    %v520 = vand.u32 %v62, 4294901760
    %521 = vmatmul.mubr.f32.gmra.mrb[0].mxu0 %v520
    %v522 = vpop.f32.mrb[0].mxu0
    %v523 = vadd.f32 %v427, %v522
    %v524 = vpop.f32.mrb[0].mxu0
    %v525 = vadd.f32 %v429, %v524
    %526 = vdwg.mxu0
    %v527 = vand.u32 %v41, 4294901760
    %528 = vmatprep.subr.mxu0 %v527
    %v529 = vand.u32 %v40, 4294901760
    %530 = vmatpush1.msra.mxu0 %v529
    %v531 = vand.u32 %v43, 4294901760
    %532 = vmatprep.subr.mxu0 %v531
    %v533 = vand.u32 %v42, 4294901760
    %534 = vmatpush1.msra.mxu0 %v533
    %v535 = vand.u32 %v45, 4294901760
    %536 = vmatprep.subr.mxu0 %v535
    %v537 = vand.u32 %v44, 4294901760
    %538 = vmatpush1.msra.mxu0 %v537
    %v539 = vand.u32 %v47, 4294901760
    %540 = vmatprep.subr.mxu0 %v539
    %v541 = vand.u32 %v46, 4294901760
    %542 = vmatpush1.msra.mxu0 %v541
    %543 = vmatprep.subr.mxu0 0.0
    %544 = vmatpush1.msra.mxu0 0.0
    %545 = vmatprep.subr.mxu0 0.0
    %546 = vmatpush1.msra.mxu0 0.0
    %547 = vmatprep.subr.mxu0 0.0
    %548 = vmatpush1.msra.mxu0 0.0
    %549 = vmatprep.subr.mxu0 0.0
    %550 = vmatpush1.msra.mxu0 0.0
    %551 = vmatprep.subr.mxu0 0.0
    %552 = vmatpush1.msra.mxu0 0.0
    %553 = vmatprep.subr.mxu0 0.0
    %554 = vmatpush1.msra.mxu0 0.0
    %555 = vmatprep.subr.mxu0 0.0
    %556 = vmatpush1.msra.mxu0 0.0
    %557 = vmatprep.subr.mxu0 0.0
    %558 = vmatpush1.msra.mxu0 0.0
    %559 = vmatprep.subr.mxu0 0.0
    %560 = vmatpush1.msra.mxu0 0.0
    %561 = vmatprep.subr.mxu0 0.0
    %562 = vmatpush1.msra.mxu0 0.0
    %563 = vmatprep.subr.mxu0 0.0
    %564 = vmatpush1.msra.mxu0 0.0
    %565 = vmatprep.subr.mxu0 0.0
    %566 = vmatpush1.msra.mxu0 0.0
    %567 = vmatprep.subr.mxu0 0.0
    %568 = vmatpush1.msra.mxu0 0.0
    %569 = vmatprep.subr.mxu0 0.0
    %570 = vmatpush1.msra.mxu0 0.0
    %571 = vmatprep.subr.mxu0 0.0
    %572 = vmatpush1.msra.mxu0 0.0
    %573 = vmatprep.subr.mxu0 0.0
    %574 = vmatpush1.msra.mxu0 0.0
    %575 = vmatprep.subr.mxu0 0.0
    %576 = vmatpush1.msra.mxu0 0.0
    %577 = vmatprep.subr.mxu0 0.0
    %578 = vmatpush1.msra.mxu0 0.0
    %579 = vmatprep.subr.mxu0 0.0
    %580 = vmatpush1.msra.mxu0 0.0
    %581 = vmatprep.subr.mxu0 0.0
    %582 = vmatpush1.msra.mxu0 0.0
    %583 = vmatprep.subr.mxu0 0.0
    %584 = vmatpush1.msra.mxu0 0.0
    %585 = vmatprep.subr.mxu0 0.0
    %586 = vmatpush1.msra.mxu0 0.0
    %587 = vmatprep.subr.mxu0 0.0
    %588 = vmatpush1.msra.mxu0 0.0
    %589 = vmatprep.subr.mxu0 0.0
    %590 = vmatpush1.msra.mxu0 0.0
    %591 = vmatprep.subr.mxu0 0.0
    %592 = vmatpush1.msra.mxu0 0.0
    %593 = vmatprep.subr.mxu0 0.0
    %594 = vmatpush1.msra.mxu0 0.0
    %595 = vmatprep.subr.mxu0 0.0
    %596 = vmatpush1.msra.mxu0 0.0
    %597 = vmatprep.subr.mxu0 0.0
    %598 = vmatpush1.msra.mxu0 0.0
    %599 = vmatprep.mubr.f32.mxu0 0.0
    %v600 = vand.u32 %v62, 4294901760
    %601 = vmatmul.mubr.f32.gmra.mrb[0].mxu0 %v600
    %v602 = vpop.f32.mrb[0].mxu0
    %v603 = vadd.f32 %v523, %v602
    %v604 = vpop.f32.mrb[0].mxu0
    %v605 = vadd.f32 %v525, %v604
    %606 = vdwg.mxu0
    %v607 = vmax.f32 %v603, 0.0
    %v608 = vmax.f32 %v605, 0.0
    %v609 = vld [vmem:[%s0] sm:$0xff]
    %vm610 = vcmp.ge.f32.partialorder %v609, 0.0
    %v611 = vmul.f32 %v609, 0.01
    %v612 = vsel %vm610, %v609, %v611
    %v613 = vld [vmem:[%s5] sm:$0xff]
    %v614 = vld [vmem:[%s5 + $0x8] sm:$0xff]
    %v615 = vld [vmem:[%s5 + $0x10] sm:$0xff]
    %v616 = vld [vmem:[%s5 + $0x18] sm:$0xff]
    %v617 = vld [vmem:[%s5 + $0x20] sm:$0xff]
    %v618 = vld [vmem:[%s5 + $0x28] sm:$0xff]
    %v619 = vld [vmem:[%s5 + $0x30] sm:$0xff]
    %v620 = vld [vmem:[%s5 + $0x38] sm:$0xff]
    %v621 = vld [vmem:[%s1] sm:$0xff]
    %vm622 = vcmp.ge.f32.partialorder %v621, 0.0
    %v623 = vmul.f32 %v621, 0.01
    %v624 = vsel %vm622, %v621, %v623
    %v625 = vld [vmem:[%s6] sm:$0xff]
    %v626 = vld [vmem:[%s6 + $0x8] sm:$0xff]
    %v627 = vld [vmem:[%s6 + $0x10] sm:$0xff]
    %v628 = vld [vmem:[%s6 + $0x18] sm:$0xff]
    %v630 = vsel %vm60, %v624, 0
    %632 = vmatprep.subr.mxu0 0.0
    %v633 = vand.u32 %v625, 4294901760
    %634 = vmatpush1.msra.mxu0 %v633
    %635 = vmatprep.subr.mxu0 0.0
    %v636 = vand.u32 %v626, 4294901760
    %637 = vmatpush1.msra.mxu0 %v636
    %638 = vmatprep.subr.mxu0 0.0
    %v639 = vand.u32 %v627, 4294901760
    %640 = vmatpush1.msra.mxu0 %v639
    %641 = vmatprep.subr.mxu0 0.0
    %v642 = vand.u32 %v628, 4294901760
    %643 = vmatpush1.msra.mxu0 %v642
    %644 = vmatprep.subr.mxu0 0.0
    %645 = vmatpush1.msra.mxu0 0.0
    %646 = vmatprep.subr.mxu0 0.0
    %647 = vmatpush1.msra.mxu0 0.0
    %648 = vmatprep.subr.mxu0 0.0
    %649 = vmatpush1.msra.mxu0 0.0
    %650 = vmatprep.subr.mxu0 0.0
    %651 = vmatpush1.msra.mxu0 0.0
    %652 = vmatprep.subr.mxu0 0.0
    %653 = vmatpush1.msra.mxu0 0.0
    %654 = vmatprep.subr.mxu0 0.0
    %655 = vmatpush1.msra.mxu0 0.0
    %656 = vmatprep.subr.mxu0 0.0
    %657 = vmatpush1.msra.mxu0 0.0
    %658 = vmatprep.subr.mxu0 0.0
    %659 = vmatpush1.msra.mxu0 0.0
    %660 = vmatprep.subr.mxu0 0.0
    %661 = vmatpush1.msra.mxu0 0.0
    %662 = vmatprep.subr.mxu0 0.0
    %663 = vmatpush1.msra.mxu0 0.0
    %664 = vmatprep.subr.mxu0 0.0
    %665 = vmatpush1.msra.mxu0 0.0
    %666 = vmatprep.subr.mxu0 0.0
    %667 = vmatpush1.msra.mxu0 0.0
    %668 = vmatprep.subr.mxu0 0.0
    %669 = vmatpush1.msra.mxu0 0.0
    %670 = vmatprep.subr.mxu0 0.0
    %671 = vmatpush1.msra.mxu0 0.0
    %672 = vmatprep.subr.mxu0 0.0
    %673 = vmatpush1.msra.mxu0 0.0
    %674 = vmatprep.subr.mxu0 0.0
    %675 = vmatpush1.msra.mxu0 0.0
    %676 = vmatprep.subr.mxu0 0.0
    %677 = vmatpush1.msra.mxu0 0.0
    %678 = vmatprep.subr.mxu0 0.0
    %679 = vmatpush1.msra.mxu0 0.0
    %680 = vmatprep.subr.mxu0 0.0
    %681 = vmatpush1.msra.mxu0 0.0
    %682 = vmatprep.subr.mxu0 0.0
    %683 = vmatpush1.msra.mxu0 0.0
    %684 = vmatprep.subr.mxu0 0.0
    %685 = vmatpush1.msra.mxu0 0.0
    %686 = vmatprep.subr.mxu0 0.0
    %687 = vmatpush1.msra.mxu0 0.0
    %688 = vmatprep.subr.mxu0 0.0
    %689 = vmatpush1.msra.mxu0 0.0
    %690 = vmatprep.subr.mxu0 0.0
    %691 = vmatpush1.msra.mxu0 0.0
    %692 = vmatprep.subr.mxu0 0.0
    %693 = vmatpush1.msra.mxu0 0.0
    %694 = vmatprep.subr.mxu0 0.0
    %695 = vmatpush1.msra.mxu0 0.0
    %696 = vmatprep.subr.mxu0 0.0
    %697 = vmatpush1.msra.mxu0 0.0
    %698 = vmatprep.subr.mxu0 0.0
    %699 = vmatpush1.msra.mxu0 0.0
    %700 = vmatprep.mubr.f32.mxu0 0.0
    %v701 = vand.u32 %v630, 4294901760
    %v702 = vsub.f32 %v630, %v701
    %v703 = vand.u32 %v702, 4294901760
    %v704 = vsub.f32 %v702, %v703
    %v705 = vand.u32 %v704, 4294901760
    %706 = vmatmul.mubr.f32.gmra.mrb[0].mxu0 %v705
    %v707 = vpop.f32.mrb[0].mxu0
    %v708 = vadd.f32 0.0, %v707
    %v709 = vpop.f32.mrb[0].mxu0
    %710 = vdwg.mxu0
    %711 = vmatprep.subr.mxu0 0.0
    %v712 = vand.u32 %v625, 4294901760
    %v713 = vsub.f32 %v625, %v712
    %v714 = vand.u32 %v713, 4294901760
    %v715 = vsub.f32 %v713, %v714
    %v716 = vand.u32 %v715, 4294901760
    %717 = vmatpush1.msra.mxu0 %v716
    %718 = vmatprep.subr.mxu0 0.0
    %v719 = vand.u32 %v626, 4294901760
    %v720 = vsub.f32 %v626, %v719
    %v721 = vand.u32 %v720, 4294901760
    %v722 = vsub.f32 %v720, %v721
    %v723 = vand.u32 %v722, 4294901760
    %724 = vmatpush1.msra.mxu0 %v723
    %725 = vmatprep.subr.mxu0 0.0
    %v726 = vand.u32 %v627, 4294901760
    %v727 = vsub.f32 %v627, %v726
    %v728 = vand.u32 %v727, 4294901760
    %v729 = vsub.f32 %v727, %v728
    %v730 = vand.u32 %v729, 4294901760
    %731 = vmatpush1.msra.mxu0 %v730
    %732 = vmatprep.subr.mxu0 0.0
    %v733 = vand.u32 %v628, 4294901760
    %v734 = vsub.f32 %v628, %v733
    %v735 = vand.u32 %v734, 4294901760
    %v736 = vsub.f32 %v734, %v735
    %v737 = vand.u32 %v736, 4294901760
    %738 = vmatpush1.msra.mxu0 %v737
    %739 = vmatprep.subr.mxu0 0.0
    %740 = vmatpush1.msra.mxu0 0.0
    %741 = vmatprep.subr.mxu0 0.0
    %742 = vmatpush1.msra.mxu0 0.0
    %743 = vmatprep.subr.mxu0 0.0
    %744 = vmatpush1.msra.mxu0 0.0
    %745 = vmatprep.subr.mxu0 0.0
    %746 = vmatpush1.msra.mxu0 0.0
    %747 = vmatprep.subr.mxu0 0.0
    %748 = vmatpush1.msra.mxu0 0.0
    %749 = vmatprep.subr.mxu0 0.0
    %750 = vmatpush1.msra.mxu0 0.0
    %751 = vmatprep.subr.mxu0 0.0
    %752 = vmatpush1.msra.mxu0 0.0
    %753 = vmatprep.subr.mxu0 0.0
    %754 = vmatpush1.msra.mxu0 0.0
    %755 = vmatprep.subr.mxu0 0.0
    %756 = vmatpush1.msra.mxu0 0.0
    %757 = vmatprep.subr.mxu0 0.0
    %758 = vmatpush1.msra.mxu0 0.0
    %759 = vmatprep.subr.mxu0 0.0
    %760 = vmatpush1.msra.mxu0 0.0
    %761 = vmatprep.subr.mxu0 0.0
    %762 = vmatpush1.msra.mxu0 0.0
    %763 = vmatprep.subr.mxu0 0.0
    %764 = vmatpush1.msra.mxu0 0.0
    %765 = vmatprep.subr.mxu0 0.0
    %766 = vmatpush1.msra.mxu0 0.0
    %767 = vmatprep.subr.mxu0 0.0
    %768 = vmatpush1.msra.mxu0 0.0
    %769 = vmatprep.subr.mxu0 0.0
    %770 = vmatpush1.msra.mxu0 0.0
    %771 = vmatprep.subr.mxu0 0.0
    %772 = vmatpush1.msra.mxu0 0.0
    %773 = vmatprep.subr.mxu0 0.0
    %774 = vmatpush1.msra.mxu0 0.0
    %775 = vmatprep.subr.mxu0 0.0
    %776 = vmatpush1.msra.mxu0 0.0
    %777 = vmatprep.subr.mxu0 0.0
    %778 = vmatpush1.msra.mxu0 0.0
    %779 = vmatprep.subr.mxu0 0.0
    %780 = vmatpush1.msra.mxu0 0.0
    %781 = vmatprep.subr.mxu0 0.0
    %782 = vmatpush1.msra.mxu0 0.0
    %783 = vmatprep.subr.mxu0 0.0
    %784 = vmatpush1.msra.mxu0 0.0
    %785 = vmatprep.subr.mxu0 0.0
    %786 = vmatpush1.msra.mxu0 0.0
    %787 = vmatprep.subr.mxu0 0.0
    %788 = vmatpush1.msra.mxu0 0.0
    %789 = vmatprep.subr.mxu0 0.0
    %790 = vmatpush1.msra.mxu0 0.0
    %791 = vmatprep.subr.mxu0 0.0
    %792 = vmatpush1.msra.mxu0 0.0
    %793 = vmatprep.subr.mxu0 0.0
    %794 = vmatpush1.msra.mxu0 0.0
    %795 = vmatprep.mubr.f32.mxu0 0.0
    %v796 = vand.u32 %v630, 4294901760
    %797 = vmatmul.mubr.f32.gmra.mrb[0].mxu0 %v796
    %v798 = vpop.f32.mrb[0].mxu0
    %v799 = vadd.f32 %v708, %v798
    %v800 = vpop.f32.mrb[0].mxu0
    %801 = vdwg.mxu0
    %802 = vmatprep.subr.mxu0 0.0
    %v803 = vand.u32 %v625, 4294901760
    %v804 = vsub.f32 %v625, %v803
    %805 = vmatpush1.msra.mxu0 %v804
    %806 = vmatprep.subr.mxu0 0.0
    %v807 = vand.u32 %v626, 4294901760
    %v808 = vsub.f32 %v626, %v807
    %809 = vmatpush1.msra.mxu0 %v808
    %810 = vmatprep.subr.mxu0 0.0
    %v811 = vand.u32 %v627, 4294901760
    %v812 = vsub.f32 %v627, %v811
    %813 = vmatpush1.msra.mxu0 %v812
    %814 = vmatprep.subr.mxu0 0.0
    %v815 = vand.u32 %v628, 4294901760
    %v816 = vsub.f32 %v628, %v815
    %817 = vmatpush1.msra.mxu0 %v816
    %818 = vmatprep.subr.mxu0 0.0
    %819 = vmatpush1.msra.mxu0 0.0
    %820 = vmatprep.subr.mxu0 0.0
    %821 = vmatpush1.msra.mxu0 0.0
    %822 = vmatprep.subr.mxu0 0.0
    %823 = vmatpush1.msra.mxu0 0.0
    %824 = vmatprep.subr.mxu0 0.0
    %825 = vmatpush1.msra.mxu0 0.0
    %826 = vmatprep.subr.mxu0 0.0
    %827 = vmatpush1.msra.mxu0 0.0
    %828 = vmatprep.subr.mxu0 0.0
    %829 = vmatpush1.msra.mxu0 0.0
    %830 = vmatprep.subr.mxu0 0.0
    %831 = vmatpush1.msra.mxu0 0.0
    %832 = vmatprep.subr.mxu0 0.0
    %833 = vmatpush1.msra.mxu0 0.0
    %834 = vmatprep.subr.mxu0 0.0
    %835 = vmatpush1.msra.mxu0 0.0
    %836 = vmatprep.subr.mxu0 0.0
    %837 = vmatpush1.msra.mxu0 0.0
    %838 = vmatprep.subr.mxu0 0.0
    %839 = vmatpush1.msra.mxu0 0.0
    %840 = vmatprep.subr.mxu0 0.0
    %841 = vmatpush1.msra.mxu0 0.0
    %842 = vmatprep.subr.mxu0 0.0
    %843 = vmatpush1.msra.mxu0 0.0
    %844 = vmatprep.subr.mxu0 0.0
    %845 = vmatpush1.msra.mxu0 0.0
    %846 = vmatprep.subr.mxu0 0.0
    %847 = vmatpush1.msra.mxu0 0.0
    %848 = vmatprep.subr.mxu0 0.0
    %849 = vmatpush1.msra.mxu0 0.0
    %850 = vmatprep.subr.mxu0 0.0
    %851 = vmatpush1.msra.mxu0 0.0
    %852 = vmatprep.subr.mxu0 0.0
    %853 = vmatpush1.msra.mxu0 0.0
    %854 = vmatprep.subr.mxu0 0.0
    %855 = vmatpush1.msra.mxu0 0.0
    %856 = vmatprep.subr.mxu0 0.0
    %857 = vmatpush1.msra.mxu0 0.0
    %858 = vmatprep.subr.mxu0 0.0
    %859 = vmatpush1.msra.mxu0 0.0
    %860 = vmatprep.subr.mxu0 0.0
    %861 = vmatpush1.msra.mxu0 0.0
    %862 = vmatprep.subr.mxu0 0.0
    %863 = vmatpush1.msra.mxu0 0.0
    %864 = vmatprep.subr.mxu0 0.0
    %865 = vmatpush1.msra.mxu0 0.0
    %866 = vmatprep.subr.mxu0 0.0
    %867 = vmatpush1.msra.mxu0 0.0
    %868 = vmatprep.subr.mxu0 0.0
    %869 = vmatpush1.msra.mxu0 0.0
    %870 = vmatprep.subr.mxu0 0.0
    %871 = vmatpush1.msra.mxu0 0.0
    %872 = vmatprep.subr.mxu0 0.0
    %873 = vmatpush1.msra.mxu0 0.0
    %874 = vmatprep.mubr.f32.mxu0 0.0
    %v875 = vand.u32 %v630, 4294901760
    %v876 = vsub.f32 %v630, %v875
    %877 = vmatmul.mubr.f32.gmra.mrb[0].mxu0 %v876
    %v878 = vpop.f32.mrb[0].mxu0
    %v879 = vadd.f32 %v799, %v878
    %v880 = vpop.f32.mrb[0].mxu0
    %881 = vdwg.mxu0
    %882 = vmatprep.subr.mxu0 0.0
    %v883 = vand.u32 %v625, 4294901760
    %884 = vmatpush1.msra.mxu0 %v883
    %885 = vmatprep.subr.mxu0 0.0
    %v886 = vand.u32 %v626, 4294901760
    %887 = vmatpush1.msra.mxu0 %v886
    %888 = vmatprep.subr.mxu0 0.0
    %v889 = vand.u32 %v627, 4294901760
    %890 = vmatpush1.msra.mxu0 %v889
    %891 = vmatprep.subr.mxu0 0.0
    %v892 = vand.u32 %v628, 4294901760
    %893 = vmatpush1.msra.mxu0 %v892
    %894 = vmatprep.subr.mxu0 0.0
    %895 = vmatpush1.msra.mxu0 0.0
    %896 = vmatprep.subr.mxu0 0.0
    %897 = vmatpush1.msra.mxu0 0.0
    %898 = vmatprep.subr.mxu0 0.0
    %899 = vmatpush1.msra.mxu0 0.0
    %900 = vmatprep.subr.mxu0 0.0
    %901 = vmatpush1.msra.mxu0 0.0
    %902 = vmatprep.subr.mxu0 0.0
    %903 = vmatpush1.msra.mxu0 0.0
    %904 = vmatprep.subr.mxu0 0.0
    %905 = vmatpush1.msra.mxu0 0.0
    %906 = vmatprep.subr.mxu0 0.0
    %907 = vmatpush1.msra.mxu0 0.0
    %908 = vmatprep.subr.mxu0 0.0
    %909 = vmatpush1.msra.mxu0 0.0
    %910 = vmatprep.subr.mxu0 0.0
    %911 = vmatpush1.msra.mxu0 0.0
    %912 = vmatprep.subr.mxu0 0.0
    %913 = vmatpush1.msra.mxu0 0.0
    %914 = vmatprep.subr.mxu0 0.0
    %915 = vmatpush1.msra.mxu0 0.0
    %916 = vmatprep.subr.mxu0 0.0
    %917 = vmatpush1.msra.mxu0 0.0
    %918 = vmatprep.subr.mxu0 0.0
    %919 = vmatpush1.msra.mxu0 0.0
    %920 = vmatprep.subr.mxu0 0.0
    %921 = vmatpush1.msra.mxu0 0.0
    %922 = vmatprep.subr.mxu0 0.0
    %923 = vmatpush1.msra.mxu0 0.0
    %924 = vmatprep.subr.mxu0 0.0
    %925 = vmatpush1.msra.mxu0 0.0
    %926 = vmatprep.subr.mxu0 0.0
    %927 = vmatpush1.msra.mxu0 0.0
    %928 = vmatprep.subr.mxu0 0.0
    %929 = vmatpush1.msra.mxu0 0.0
    %930 = vmatprep.subr.mxu0 0.0
    %931 = vmatpush1.msra.mxu0 0.0
    %932 = vmatprep.subr.mxu0 0.0
    %933 = vmatpush1.msra.mxu0 0.0
    %934 = vmatprep.subr.mxu0 0.0
    %935 = vmatpush1.msra.mxu0 0.0
    %936 = vmatprep.subr.mxu0 0.0
    %937 = vmatpush1.msra.mxu0 0.0
    %938 = vmatprep.subr.mxu0 0.0
    %939 = vmatpush1.msra.mxu0 0.0
    %940 = vmatprep.subr.mxu0 0.0
    %941 = vmatpush1.msra.mxu0 0.0
    %942 = vmatprep.subr.mxu0 0.0
    %943 = vmatpush1.msra.mxu0 0.0
    %944 = vmatprep.subr.mxu0 0.0
    %945 = vmatpush1.msra.mxu0 0.0
    %946 = vmatprep.subr.mxu0 0.0
    %947 = vmatpush1.msra.mxu0 0.0
    %948 = vmatprep.subr.mxu0 0.0
    %949 = vmatpush1.msra.mxu0 0.0
    %950 = vmatprep.mubr.f32.mxu0 0.0
    %v951 = vand.u32 %v630, 4294901760
    %v952 = vsub.f32 %v630, %v951
    %v953 = vand.u32 %v952, 4294901760
    %954 = vmatmul.mubr.f32.gmra.mrb[0].mxu0 %v953
    %v955 = vpop.f32.mrb[0].mxu0
    %v956 = vadd.f32 %v879, %v955
    %v957 = vpop.f32.mrb[0].mxu0
    %958 = vdwg.mxu0
    %959 = vmatprep.subr.mxu0 0.0
    %v960 = vand.u32 %v625, 4294901760
    %v961 = vsub.f32 %v625, %v960
    %v962 = vand.u32 %v961, 4294901760
    %963 = vmatpush1.msra.mxu0 %v962
    %964 = vmatprep.subr.mxu0 0.0
    %v965 = vand.u32 %v626, 4294901760
    %v966 = vsub.f32 %v626, %v965
    %v967 = vand.u32 %v966, 4294901760
    %968 = vmatpush1.msra.mxu0 %v967
    %969 = vmatprep.subr.mxu0 0.0
    %v970 = vand.u32 %v627, 4294901760
    %v971 = vsub.f32 %v627, %v970
    %v972 = vand.u32 %v971, 4294901760
    %973 = vmatpush1.msra.mxu0 %v972
    %974 = vmatprep.subr.mxu0 0.0
    %v975 = vand.u32 %v628, 4294901760
    %v976 = vsub.f32 %v628, %v975
    %v977 = vand.u32 %v976, 4294901760
    %978 = vmatpush1.msra.mxu0 %v977
    %979 = vmatprep.subr.mxu0 0.0
    %980 = vmatpush1.msra.mxu0 0.0
    %981 = vmatprep.subr.mxu0 0.0
    %982 = vmatpush1.msra.mxu0 0.0
    %983 = vmatprep.subr.mxu0 0.0
    %984 = vmatpush1.msra.mxu0 0.0
    %985 = vmatprep.subr.mxu0 0.0
    %986 = vmatpush1.msra.mxu0 0.0
    %987 = vmatprep.subr.mxu0 0.0
    %988 = vmatpush1.msra.mxu0 0.0
    %989 = vmatprep.subr.mxu0 0.0
    %990 = vmatpush1.msra.mxu0 0.0
    %991 = vmatprep.subr.mxu0 0.0
    %992 = vmatpush1.msra.mxu0 0.0
    %993 = vmatprep.subr.mxu0 0.0
    %994 = vmatpush1.msra.mxu0 0.0
    %995 = vmatprep.subr.mxu0 0.0
    %996 = vmatpush1.msra.mxu0 0.0
    %997 = vmatprep.subr.mxu0 0.0
    %998 = vmatpush1.msra.mxu0 0.0
    %999 = vmatprep.subr.mxu0 0.0
    %1000 = vmatpush1.msra.mxu0 0.0
    %1001 = vmatprep.subr.mxu0 0.0
    %1002 = vmatpush1.msra.mxu0 0.0
    %1003 = vmatprep.subr.mxu0 0.0
    %1004 = vmatpush1.msra.mxu0 0.0
    %1005 = vmatprep.subr.mxu0 0.0
    %1006 = vmatpush1.msra.mxu0 0.0
    %1007 = vmatprep.subr.mxu0 0.0
    %1008 = vmatpush1.msra.mxu0 0.0
    %1009 = vmatprep.subr.mxu0 0.0
    %1010 = vmatpush1.msra.mxu0 0.0
    %1011 = vmatprep.subr.mxu0 0.0
    %1012 = vmatpush1.msra.mxu0 0.0
    %1013 = vmatprep.subr.mxu0 0.0
    %1014 = vmatpush1.msra.mxu0 0.0
    %1015 = vmatprep.subr.mxu0 0.0
    %1016 = vmatpush1.msra.mxu0 0.0
    %1017 = vmatprep.subr.mxu0 0.0
    %1018 = vmatpush1.msra.mxu0 0.0
    %1019 = vmatprep.subr.mxu0 0.0
    %1020 = vmatpush1.msra.mxu0 0.0
    %1021 = vmatprep.subr.mxu0 0.0
    %1022 = vmatpush1.msra.mxu0 0.0
    %1023 = vmatprep.subr.mxu0 0.0
    %1024 = vmatpush1.msra.mxu0 0.0
    %1025 = vmatprep.subr.mxu0 0.0
    %1026 = vmatpush1.msra.mxu0 0.0
    %1027 = vmatprep.subr.mxu0 0.0
    %1028 = vmatpush1.msra.mxu0 0.0
    %1029 = vmatprep.subr.mxu0 0.0
    %1030 = vmatpush1.msra.mxu0 0.0
    %1031 = vmatprep.subr.mxu0 0.0
    %1032 = vmatpush1.msra.mxu0 0.0
    %1033 = vmatprep.subr.mxu0 0.0
    %1034 = vmatpush1.msra.mxu0 0.0
    %1035 = vmatprep.mubr.f32.mxu0 0.0
    %v1036 = vand.u32 %v630, 4294901760
    %1037 = vmatmul.mubr.f32.gmra.mrb[0].mxu0 %v1036
    %v1038 = vpop.f32.mrb[0].mxu0
    %v1039 = vadd.f32 %v956, %v1038
    %v1040 = vpop.f32.mrb[0].mxu0
    %1041 = vdwg.mxu0
    %1042 = vmatprep.subr.mxu0 0.0
    %v1043 = vand.u32 %v625, 4294901760
    %1044 = vmatpush1.msra.mxu0 %v1043
    %1045 = vmatprep.subr.mxu0 0.0
    %v1046 = vand.u32 %v626, 4294901760
    %1047 = vmatpush1.msra.mxu0 %v1046
    %1048 = vmatprep.subr.mxu0 0.0
    %v1049 = vand.u32 %v627, 4294901760
    %1050 = vmatpush1.msra.mxu0 %v1049
    %1051 = vmatprep.subr.mxu0 0.0
    %v1052 = vand.u32 %v628, 4294901760
    %1053 = vmatpush1.msra.mxu0 %v1052
    %1054 = vmatprep.subr.mxu0 0.0
    %1055 = vmatpush1.msra.mxu0 0.0
    %1056 = vmatprep.subr.mxu0 0.0
    %1057 = vmatpush1.msra.mxu0 0.0
    %1058 = vmatprep.subr.mxu0 0.0
    %1059 = vmatpush1.msra.mxu0 0.0
    %1060 = vmatprep.subr.mxu0 0.0
    %1061 = vmatpush1.msra.mxu0 0.0
    %1062 = vmatprep.subr.mxu0 0.0
    %1063 = vmatpush1.msra.mxu0 0.0
    %1064 = vmatprep.subr.mxu0 0.0
    %1065 = vmatpush1.msra.mxu0 0.0
    %1066 = vmatprep.subr.mxu0 0.0
    %1067 = vmatpush1.msra.mxu0 0.0
    %1068 = vmatprep.subr.mxu0 0.0
    %1069 = vmatpush1.msra.mxu0 0.0
    %1070 = vmatprep.subr.mxu0 0.0
    %1071 = vmatpush1.msra.mxu0 0.0
    %1072 = vmatprep.subr.mxu0 0.0
    %1073 = vmatpush1.msra.mxu0 0.0
    %1074 = vmatprep.subr.mxu0 0.0
    %1075 = vmatpush1.msra.mxu0 0.0
    %1076 = vmatprep.subr.mxu0 0.0
    %1077 = vmatpush1.msra.mxu0 0.0
    %1078 = vmatprep.subr.mxu0 0.0
    %1079 = vmatpush1.msra.mxu0 0.0
    %1080 = vmatprep.subr.mxu0 0.0
    %1081 = vmatpush1.msra.mxu0 0.0
    %1082 = vmatprep.subr.mxu0 0.0
    %1083 = vmatpush1.msra.mxu0 0.0
    %1084 = vmatprep.subr.mxu0 0.0
    %1085 = vmatpush1.msra.mxu0 0.0
    %1086 = vmatprep.subr.mxu0 0.0
    %1087 = vmatpush1.msra.mxu0 0.0
    %1088 = vmatprep.subr.mxu0 0.0
    %1089 = vmatpush1.msra.mxu0 0.0
    %1090 = vmatprep.subr.mxu0 0.0
    %1091 = vmatpush1.msra.mxu0 0.0
    %1092 = vmatprep.subr.mxu0 0.0
    %1093 = vmatpush1.msra.mxu0 0.0
    %1094 = vmatprep.subr.mxu0 0.0
    %1095 = vmatpush1.msra.mxu0 0.0
    %1096 = vmatprep.subr.mxu0 0.0
    %1097 = vmatpush1.msra.mxu0 0.0
    %1098 = vmatprep.subr.mxu0 0.0
    %1099 = vmatpush1.msra.mxu0 0.0
    %1100 = vmatprep.subr.mxu0 0.0
    %1101 = vmatpush1.msra.mxu0 0.0
    %1102 = vmatprep.subr.mxu0 0.0
    %1103 = vmatpush1.msra.mxu0 0.0
    %1104 = vmatprep.subr.mxu0 0.0
    %1105 = vmatpush1.msra.mxu0 0.0
    %1106 = vmatprep.subr.mxu0 0.0
    %1107 = vmatpush1.msra.mxu0 0.0
    %1108 = vmatprep.subr.mxu0 0.0
    %1109 = vmatpush1.msra.mxu0 0.0
    %1110 = vmatprep.mubr.f32.mxu0 0.0
    %v1111 = vand.u32 %v630, 4294901760
    %1112 = vmatmul.mubr.f32.gmra.mrb[0].mxu0 %v1111
    %v1113 = vpop.f32.mrb[0].mxu0
    %v1114 = vadd.f32 %v1039, %v1113
    %v1115 = vpop.f32.mrb[0].mxu0
    %1116 = vdwg.mxu0
    %vm1117 = vcmask 523264
    %v1119 = vsel %vm1117, %v612, 0
    %1121 = vmatprep.subr.mxu0 0.0
    %v1122 = vand.u32 %v613, 4294901760
    %1123 = vmatpush1.msra.mxu0 %v1122
    %1124 = vmatprep.subr.mxu0 0.0
    %v1125 = vand.u32 %v614, 4294901760
    %1126 = vmatpush1.msra.mxu0 %v1125
    %1127 = vmatprep.subr.mxu0 0.0
    %v1128 = vand.u32 %v615, 4294901760
    %1129 = vmatpush1.msra.mxu0 %v1128
    %1130 = vmatprep.subr.mxu0 0.0
    %v1131 = vand.u32 %v616, 4294901760
    %1132 = vmatpush1.msra.mxu0 %v1131
    %1133 = vmatprep.subr.mxu0 0.0
    %v1134 = vand.u32 %v617, 4294901760
    %1135 = vmatpush1.msra.mxu0 %v1134
    %1136 = vmatprep.subr.mxu0 0.0
    %v1137 = vand.u32 %v618, 4294901760
    %1138 = vmatpush1.msra.mxu0 %v1137
    %1139 = vmatprep.subr.mxu0 0.0
    %v1140 = vand.u32 %v619, 4294901760
    %1141 = vmatpush1.msra.mxu0 %v1140
    %1142 = vmatprep.subr.mxu0 0.0
    %v1143 = vand.u32 %v620, 4294901760
    %1144 = vmatpush1.msra.mxu0 %v1143
    %1145 = vmatprep.subr.mxu0 0.0
    %1146 = vmatpush1.msra.mxu0 0.0
    %1147 = vmatprep.subr.mxu0 0.0
    %1148 = vmatpush1.msra.mxu0 0.0
    %1149 = vmatprep.subr.mxu0 0.0
    %1150 = vmatpush1.msra.mxu0 0.0
    %1151 = vmatprep.subr.mxu0 0.0
    %1152 = vmatpush1.msra.mxu0 0.0
    %1153 = vmatprep.subr.mxu0 0.0
    %1154 = vmatpush1.msra.mxu0 0.0
    %1155 = vmatprep.subr.mxu0 0.0
    %1156 = vmatpush1.msra.mxu0 0.0
    %1157 = vmatprep.subr.mxu0 0.0
    %1158 = vmatpush1.msra.mxu0 0.0
    %1159 = vmatprep.subr.mxu0 0.0
    %1160 = vmatpush1.msra.mxu0 0.0
    %1161 = vmatprep.subr.mxu0 0.0
    %1162 = vmatpush1.msra.mxu0 0.0
    %1163 = vmatprep.subr.mxu0 0.0
    %1164 = vmatpush1.msra.mxu0 0.0
    %1165 = vmatprep.subr.mxu0 0.0
    %1166 = vmatpush1.msra.mxu0 0.0
    %1167 = vmatprep.subr.mxu0 0.0
    %1168 = vmatpush1.msra.mxu0 0.0
    %1169 = vmatprep.subr.mxu0 0.0
    %1170 = vmatpush1.msra.mxu0 0.0
    %1171 = vmatprep.subr.mxu0 0.0
    %1172 = vmatpush1.msra.mxu0 0.0
    %1173 = vmatprep.subr.mxu0 0.0
    %1174 = vmatpush1.msra.mxu0 0.0
    %1175 = vmatprep.subr.mxu0 0.0
    %1176 = vmatpush1.msra.mxu0 0.0
    %1177 = vmatprep.subr.mxu0 0.0
    %1178 = vmatpush1.msra.mxu0 0.0
    %1179 = vmatprep.subr.mxu0 0.0
    %1180 = vmatpush1.msra.mxu0 0.0
    %1181 = vmatprep.subr.mxu0 0.0
    %1182 = vmatpush1.msra.mxu0 0.0
    %1183 = vmatprep.subr.mxu0 0.0
    %1184 = vmatpush1.msra.mxu0 0.0
    %1185 = vmatprep.subr.mxu0 0.0
    %1186 = vmatpush1.msra.mxu0 0.0
    %1187 = vmatprep.subr.mxu0 0.0
    %1188 = vmatpush1.msra.mxu0 0.0
    %1189 = vmatprep.subr.mxu0 0.0
    %1190 = vmatpush1.msra.mxu0 0.0
    %1191 = vmatprep.subr.mxu0 0.0
    %1192 = vmatpush1.msra.mxu0 0.0
    %1193 = vmatprep.mubr.f32.mxu0 0.0
    %v1194 = vand.u32 %v1119, 4294901760
    %v1195 = vsub.f32 %v1119, %v1194
    %v1196 = vand.u32 %v1195, 4294901760
    %v1197 = vsub.f32 %v1195, %v1196
    %v1198 = vand.u32 %v1197, 4294901760
    %1199 = vmatmul.mubr.f32.gmra.mrb[0].mxu0 %v1198
    %v1200 = vpop.f32.mrb[0].mxu0
    %v1201 = vadd.f32 %v1114, %v1200
    %v1202 = vpop.f32.mrb[0].mxu0
    %1203 = vdwg.mxu0
    %1204 = vmatprep.subr.mxu0 0.0
    %v1205 = vand.u32 %v613, 4294901760
    %v1206 = vsub.f32 %v613, %v1205
    %v1207 = vand.u32 %v1206, 4294901760
    %v1208 = vsub.f32 %v1206, %v1207
    %v1209 = vand.u32 %v1208, 4294901760
    %1210 = vmatpush1.msra.mxu0 %v1209
    %1211 = vmatprep.subr.mxu0 0.0
    %v1212 = vand.u32 %v614, 4294901760
    %v1213 = vsub.f32 %v614, %v1212
    %v1214 = vand.u32 %v1213, 4294901760
    %v1215 = vsub.f32 %v1213, %v1214
    %v1216 = vand.u32 %v1215, 4294901760
    %1217 = vmatpush1.msra.mxu0 %v1216
    %1218 = vmatprep.subr.mxu0 0.0
    %v1219 = vand.u32 %v615, 4294901760
    %v1220 = vsub.f32 %v615, %v1219
    %v1221 = vand.u32 %v1220, 4294901760
    %v1222 = vsub.f32 %v1220, %v1221
    %v1223 = vand.u32 %v1222, 4294901760
    %1224 = vmatpush1.msra.mxu0 %v1223
    %1225 = vmatprep.subr.mxu0 0.0
    %v1226 = vand.u32 %v616, 4294901760
    %v1227 = vsub.f32 %v616, %v1226
    %v1228 = vand.u32 %v1227, 4294901760
    %v1229 = vsub.f32 %v1227, %v1228
    %v1230 = vand.u32 %v1229, 4294901760
    %1231 = vmatpush1.msra.mxu0 %v1230
    %1232 = vmatprep.subr.mxu0 0.0
    %v1233 = vand.u32 %v617, 4294901760
    %v1234 = vsub.f32 %v617, %v1233
    %v1235 = vand.u32 %v1234, 4294901760
    %v1236 = vsub.f32 %v1234, %v1235
    %v1237 = vand.u32 %v1236, 4294901760
    %1238 = vmatpush1.msra.mxu0 %v1237
    %1239 = vmatprep.subr.mxu0 0.0
    %v1240 = vand.u32 %v618, 4294901760
    %v1241 = vsub.f32 %v618, %v1240
    %v1242 = vand.u32 %v1241, 4294901760
    %v1243 = vsub.f32 %v1241, %v1242
    %v1244 = vand.u32 %v1243, 4294901760
    %1245 = vmatpush1.msra.mxu0 %v1244
    %1246 = vmatprep.subr.mxu0 0.0
    %v1247 = vand.u32 %v619, 4294901760
    %v1248 = vsub.f32 %v619, %v1247
    %v1249 = vand.u32 %v1248, 4294901760
    %v1250 = vsub.f32 %v1248, %v1249
    %v1251 = vand.u32 %v1250, 4294901760
    %1252 = vmatpush1.msra.mxu0 %v1251
    %1253 = vmatprep.subr.mxu0 0.0
    %v1254 = vand.u32 %v620, 4294901760
    %v1255 = vsub.f32 %v620, %v1254
    %v1256 = vand.u32 %v1255, 4294901760
    %v1257 = vsub.f32 %v1255, %v1256
    %v1258 = vand.u32 %v1257, 4294901760
    %1259 = vmatpush1.msra.mxu0 %v1258
    %1260 = vmatprep.subr.mxu0 0.0
    %1261 = vmatpush1.msra.mxu0 0.0
    %1262 = vmatprep.subr.mxu0 0.0
    %1263 = vmatpush1.msra.mxu0 0.0
    %1264 = vmatprep.subr.mxu0 0.0
    %1265 = vmatpush1.msra.mxu0 0.0
    %1266 = vmatprep.subr.mxu0 0.0
    %1267 = vmatpush1.msra.mxu0 0.0
    %1268 = vmatprep.subr.mxu0 0.0
    %1269 = vmatpush1.msra.mxu0 0.0
    %1270 = vmatprep.subr.mxu0 0.0
    %1271 = vmatpush1.msra.mxu0 0.0
    %1272 = vmatprep.subr.mxu0 0.0
    %1273 = vmatpush1.msra.mxu0 0.0
    %1274 = vmatprep.subr.mxu0 0.0
    %1275 = vmatpush1.msra.mxu0 0.0
    %1276 = vmatprep.subr.mxu0 0.0
    %1277 = vmatpush1.msra.mxu0 0.0
    %1278 = vmatprep.subr.mxu0 0.0
    %1279 = vmatpush1.msra.mxu0 0.0
    %1280 = vmatprep.subr.mxu0 0.0
    %1281 = vmatpush1.msra.mxu0 0.0
    %1282 = vmatprep.subr.mxu0 0.0
    %1283 = vmatpush1.msra.mxu0 0.0
    %1284 = vmatprep.subr.mxu0 0.0
    %1285 = vmatpush1.msra.mxu0 0.0
    %1286 = vmatprep.subr.mxu0 0.0
    %1287 = vmatpush1.msra.mxu0 0.0
    %1288 = vmatprep.subr.mxu0 0.0
    %1289 = vmatpush1.msra.mxu0 0.0
    %1290 = vmatprep.subr.mxu0 0.0
    %1291 = vmatpush1.msra.mxu0 0.0
    %1292 = vmatprep.subr.mxu0 0.0
    %1293 = vmatpush1.msra.mxu0 0.0
    %1294 = vmatprep.subr.mxu0 0.0
    %1295 = vmatpush1.msra.mxu0 0.0
    %1296 = vmatprep.subr.mxu0 0.0
    %1297 = vmatpush1.msra.mxu0 0.0
    %1298 = vmatprep.subr.mxu0 0.0
    %1299 = vmatpush1.msra.mxu0 0.0
    %1300 = vmatprep.subr.mxu0 0.0
    %1301 = vmatpush1.msra.mxu0 0.0
    %1302 = vmatprep.subr.mxu0 0.0
    %1303 = vmatpush1.msra.mxu0 0.0
    %1304 = vmatprep.subr.mxu0 0.0
    %1305 = vmatpush1.msra.mxu0 0.0
    %1306 = vmatprep.subr.mxu0 0.0
    %1307 = vmatpush1.msra.mxu0 0.0
    %1308 = vmatprep.mubr.f32.mxu0 0.0
    %v1309 = vand.u32 %v1119, 4294901760
    %1310 = vmatmul.mubr.f32.gmra.mrb[0].mxu0 %v1309
    %v1311 = vpop.f32.mrb[0].mxu0
    %v1312 = vadd.f32 %v1201, %v1311
    %v1313 = vpop.f32.mrb[0].mxu0
    %1314 = vdwg.mxu0
    %1315 = vmatprep.subr.mxu0 0.0
    %v1316 = vand.u32 %v613, 4294901760
    %v1317 = vsub.f32 %v613, %v1316
    %1318 = vmatpush1.msra.mxu0 %v1317
    %1319 = vmatprep.subr.mxu0 0.0
    %v1320 = vand.u32 %v614, 4294901760
    %v1321 = vsub.f32 %v614, %v1320
    %1322 = vmatpush1.msra.mxu0 %v1321
    %1323 = vmatprep.subr.mxu0 0.0
    %v1324 = vand.u32 %v615, 4294901760
    %v1325 = vsub.f32 %v615, %v1324
    %1326 = vmatpush1.msra.mxu0 %v1325
    %1327 = vmatprep.subr.mxu0 0.0
    %v1328 = vand.u32 %v616, 4294901760
    %v1329 = vsub.f32 %v616, %v1328
    %1330 = vmatpush1.msra.mxu0 %v1329
    %1331 = vmatprep.subr.mxu0 0.0
    %v1332 = vand.u32 %v617, 4294901760
    %v1333 = vsub.f32 %v617, %v1332
    %1334 = vmatpush1.msra.mxu0 %v1333
    %1335 = vmatprep.subr.mxu0 0.0
    %v1336 = vand.u32 %v618, 4294901760
    %v1337 = vsub.f32 %v618, %v1336
    %1338 = vmatpush1.msra.mxu0 %v1337
    %1339 = vmatprep.subr.mxu0 0.0
    %v1340 = vand.u32 %v619, 4294901760
    %v1341 = vsub.f32 %v619, %v1340
    %1342 = vmatpush1.msra.mxu0 %v1341
    %1343 = vmatprep.subr.mxu0 0.0
    %v1344 = vand.u32 %v620, 4294901760
    %v1345 = vsub.f32 %v620, %v1344
    %1346 = vmatpush1.msra.mxu0 %v1345
    %1347 = vmatprep.subr.mxu0 0.0
    %1348 = vmatpush1.msra.mxu0 0.0
    %1349 = vmatprep.subr.mxu0 0.0
    %1350 = vmatpush1.msra.mxu0 0.0
    %1351 = vmatprep.subr.mxu0 0.0
    %1352 = vmatpush1.msra.mxu0 0.0
    %1353 = vmatprep.subr.mxu0 0.0
    %1354 = vmatpush1.msra.mxu0 0.0
    %1355 = vmatprep.subr.mxu0 0.0
    %1356 = vmatpush1.msra.mxu0 0.0
    %1357 = vmatprep.subr.mxu0 0.0
    %1358 = vmatpush1.msra.mxu0 0.0
    %1359 = vmatprep.subr.mxu0 0.0
    %1360 = vmatpush1.msra.mxu0 0.0
    %1361 = vmatprep.subr.mxu0 0.0
    %1362 = vmatpush1.msra.mxu0 0.0
    %1363 = vmatprep.subr.mxu0 0.0
    %1364 = vmatpush1.msra.mxu0 0.0
    %1365 = vmatprep.subr.mxu0 0.0
    %1366 = vmatpush1.msra.mxu0 0.0
    %1367 = vmatprep.subr.mxu0 0.0
    %1368 = vmatpush1.msra.mxu0 0.0
    %1369 = vmatprep.subr.mxu0 0.0
    %1370 = vmatpush1.msra.mxu0 0.0
    %1371 = vmatprep.subr.mxu0 0.0
    %1372 = vmatpush1.msra.mxu0 0.0
    %1373 = vmatprep.subr.mxu0 0.0
    %1374 = vmatpush1.msra.mxu0 0.0
    %1375 = vmatprep.subr.mxu0 0.0
    %1376 = vmatpush1.msra.mxu0 0.0
    %1377 = vmatprep.subr.mxu0 0.0
    %1378 = vmatpush1.msra.mxu0 0.0
    %1379 = vmatprep.subr.mxu0 0.0
    %1380 = vmatpush1.msra.mxu0 0.0
    %1381 = vmatprep.subr.mxu0 0.0
    %1382 = vmatpush1.msra.mxu0 0.0
    %1383 = vmatprep.subr.mxu0 0.0
    %1384 = vmatpush1.msra.mxu0 0.0
    %1385 = vmatprep.subr.mxu0 0.0
    %1386 = vmatpush1.msra.mxu0 0.0
    %1387 = vmatprep.subr.mxu0 0.0
    %1388 = vmatpush1.msra.mxu0 0.0
    %1389 = vmatprep.subr.mxu0 0.0
    %1390 = vmatpush1.msra.mxu0 0.0
    %1391 = vmatprep.subr.mxu0 0.0
    %1392 = vmatpush1.msra.mxu0 0.0
    %1393 = vmatprep.subr.mxu0 0.0
    %1394 = vmatpush1.msra.mxu0 0.0
    %1395 = vmatprep.mubr.f32.mxu0 0.0
    %v1396 = vand.u32 %v1119, 4294901760
    %v1397 = vsub.f32 %v1119, %v1396
    %1398 = vmatmul.mubr.f32.gmra.mrb[0].mxu0 %v1397
    %v1399 = vpop.f32.mrb[0].mxu0
    %v1400 = vadd.f32 %v1312, %v1399
    %v1401 = vpop.f32.mrb[0].mxu0
    %1402 = vdwg.mxu0
    %1403 = vmatprep.subr.mxu0 0.0
    %v1404 = vand.u32 %v613, 4294901760
    %1405 = vmatpush1.msra.mxu0 %v1404
    %1406 = vmatprep.subr.mxu0 0.0
    %v1407 = vand.u32 %v614, 4294901760
    %1408 = vmatpush1.msra.mxu0 %v1407
    %1409 = vmatprep.subr.mxu0 0.0
    %v1410 = vand.u32 %v615, 4294901760
    %1411 = vmatpush1.msra.mxu0 %v1410
    %1412 = vmatprep.subr.mxu0 0.0
    %v1413 = vand.u32 %v616, 4294901760
    %1414 = vmatpush1.msra.mxu0 %v1413
    %1415 = vmatprep.subr.mxu0 0.0
    %v1416 = vand.u32 %v617, 4294901760
    %1417 = vmatpush1.msra.mxu0 %v1416
    %1418 = vmatprep.subr.mxu0 0.0
    %v1419 = vand.u32 %v618, 4294901760
    %1420 = vmatpush1.msra.mxu0 %v1419
    %1421 = vmatprep.subr.mxu0 0.0
    %v1422 = vand.u32 %v619, 4294901760
    %1423 = vmatpush1.msra.mxu0 %v1422
    %1424 = vmatprep.subr.mxu0 0.0
    %v1425 = vand.u32 %v620, 4294901760
    %1426 = vmatpush1.msra.mxu0 %v1425
    %1427 = vmatprep.subr.mxu0 0.0
    %1428 = vmatpush1.msra.mxu0 0.0
    %1429 = vmatprep.subr.mxu0 0.0
    %1430 = vmatpush1.msra.mxu0 0.0
    %1431 = vmatprep.subr.mxu0 0.0
    %1432 = vmatpush1.msra.mxu0 0.0
    %1433 = vmatprep.subr.mxu0 0.0
    %1434 = vmatpush1.msra.mxu0 0.0
    %1435 = vmatprep.subr.mxu0 0.0
    %1436 = vmatpush1.msra.mxu0 0.0
    %1437 = vmatprep.subr.mxu0 0.0
    %1438 = vmatpush1.msra.mxu0 0.0
    %1439 = vmatprep.subr.mxu0 0.0
    %1440 = vmatpush1.msra.mxu0 0.0
    %1441 = vmatprep.subr.mxu0 0.0
    %1442 = vmatpush1.msra.mxu0 0.0
    %1443 = vmatprep.subr.mxu0 0.0
    %1444 = vmatpush1.msra.mxu0 0.0
    %1445 = vmatprep.subr.mxu0 0.0
    %1446 = vmatpush1.msra.mxu0 0.0
    %1447 = vmatprep.subr.mxu0 0.0
    %1448 = vmatpush1.msra.mxu0 0.0
    %1449 = vmatprep.subr.mxu0 0.0
    %1450 = vmatpush1.msra.mxu0 0.0
    %1451 = vmatprep.subr.mxu0 0.0
    %1452 = vmatpush1.msra.mxu0 0.0
    %1453 = vmatprep.subr.mxu0 0.0
    %1454 = vmatpush1.msra.mxu0 0.0
    %1455 = vmatprep.subr.mxu0 0.0
    %1456 = vmatpush1.msra.mxu0 0.0
    %1457 = vmatprep.subr.mxu0 0.0
    %1458 = vmatpush1.msra.mxu0 0.0
    %1459 = vmatprep.subr.mxu0 0.0
    %1460 = vmatpush1.msra.mxu0 0.0
    %1461 = vmatprep.subr.mxu0 0.0
    %1462 = vmatpush1.msra.mxu0 0.0
    %1463 = vmatprep.subr.mxu0 0.0
    %1464 = vmatpush1.msra.mxu0 0.0
    %1465 = vmatprep.subr.mxu0 0.0
    %1466 = vmatpush1.msra.mxu0 0.0
    %1467 = vmatprep.subr.mxu0 0.0
    %1468 = vmatpush1.msra.mxu0 0.0
    %1469 = vmatprep.subr.mxu0 0.0
    %1470 = vmatpush1.msra.mxu0 0.0
    %1471 = vmatprep.subr.mxu0 0.0
    %1472 = vmatpush1.msra.mxu0 0.0
    %1473 = vmatprep.subr.mxu0 0.0
    %1474 = vmatpush1.msra.mxu0 0.0
    %1475 = vmatprep.mubr.f32.mxu0 0.0
    %v1476 = vand.u32 %v1119, 4294901760
    %v1477 = vsub.f32 %v1119, %v1476
    %v1478 = vand.u32 %v1477, 4294901760
    %1479 = vmatmul.mubr.f32.gmra.mrb[0].mxu0 %v1478
    %v1480 = vpop.f32.mrb[0].mxu0
    %v1481 = vadd.f32 %v1400, %v1480
    %v1482 = vpop.f32.mrb[0].mxu0
    %1483 = vdwg.mxu0
    %1484 = vmatprep.subr.mxu0 0.0
    %v1485 = vand.u32 %v613, 4294901760
    %v1486 = vsub.f32 %v613, %v1485
    %v1487 = vand.u32 %v1486, 4294901760
    %1488 = vmatpush1.msra.mxu0 %v1487
    %1489 = vmatprep.subr.mxu0 0.0
    %v1490 = vand.u32 %v614, 4294901760
    %v1491 = vsub.f32 %v614, %v1490
    %v1492 = vand.u32 %v1491, 4294901760
    %1493 = vmatpush1.msra.mxu0 %v1492
    %1494 = vmatprep.subr.mxu0 0.0
    %v1495 = vand.u32 %v615, 4294901760
    %v1496 = vsub.f32 %v615, %v1495
    %v1497 = vand.u32 %v1496, 4294901760
    %1498 = vmatpush1.msra.mxu0 %v1497
    %1499 = vmatprep.subr.mxu0 0.0
    %v1500 = vand.u32 %v616, 4294901760
    %v1501 = vsub.f32 %v616, %v1500
    %v1502 = vand.u32 %v1501, 4294901760
    %1503 = vmatpush1.msra.mxu0 %v1502
    %1504 = vmatprep.subr.mxu0 0.0
    %v1505 = vand.u32 %v617, 4294901760
    %v1506 = vsub.f32 %v617, %v1505
    %v1507 = vand.u32 %v1506, 4294901760
    %1508 = vmatpush1.msra.mxu0 %v1507
    %1509 = vmatprep.subr.mxu0 0.0
    %v1510 = vand.u32 %v618, 4294901760
    %v1511 = vsub.f32 %v618, %v1510
    %v1512 = vand.u32 %v1511, 4294901760
    %1513 = vmatpush1.msra.mxu0 %v1512
    %1514 = vmatprep.subr.mxu0 0.0
    %v1515 = vand.u32 %v619, 4294901760
    %v1516 = vsub.f32 %v619, %v1515
    %v1517 = vand.u32 %v1516, 4294901760
    %1518 = vmatpush1.msra.mxu0 %v1517
    %1519 = vmatprep.subr.mxu0 0.0
    %v1520 = vand.u32 %v620, 4294901760
    %v1521 = vsub.f32 %v620, %v1520
    %v1522 = vand.u32 %v1521, 4294901760
    %1523 = vmatpush1.msra.mxu0 %v1522
    %1524 = vmatprep.subr.mxu0 0.0
    %1525 = vmatpush1.msra.mxu0 0.0
    %1526 = vmatprep.subr.mxu0 0.0
    %1527 = vmatpush1.msra.mxu0 0.0
    %1528 = vmatprep.subr.mxu0 0.0
    %1529 = vmatpush1.msra.mxu0 0.0
    %1530 = vmatprep.subr.mxu0 0.0
    %1531 = vmatpush1.msra.mxu0 0.0
    %1532 = vmatprep.subr.mxu0 0.0
    %1533 = vmatpush1.msra.mxu0 0.0
    %1534 = vmatprep.subr.mxu0 0.0
    %1535 = vmatpush1.msra.mxu0 0.0
    %1536 = vmatprep.subr.mxu0 0.0
    %1537 = vmatpush1.msra.mxu0 0.0
    %1538 = vmatprep.subr.mxu0 0.0
    %1539 = vmatpush1.msra.mxu0 0.0
    %1540 = vmatprep.subr.mxu0 0.0
    %1541 = vmatpush1.msra.mxu0 0.0
    %1542 = vmatprep.subr.mxu0 0.0
    %1543 = vmatpush1.msra.mxu0 0.0
    %1544 = vmatprep.subr.mxu0 0.0
    %1545 = vmatpush1.msra.mxu0 0.0
    %1546 = vmatprep.subr.mxu0 0.0
    %1547 = vmatpush1.msra.mxu0 0.0
    %1548 = vmatprep.subr.mxu0 0.0
    %1549 = vmatpush1.msra.mxu0 0.0
    %1550 = vmatprep.subr.mxu0 0.0
    %1551 = vmatpush1.msra.mxu0 0.0
    %1552 = vmatprep.subr.mxu0 0.0
    %1553 = vmatpush1.msra.mxu0 0.0
    %1554 = vmatprep.subr.mxu0 0.0
    %1555 = vmatpush1.msra.mxu0 0.0
    %1556 = vmatprep.subr.mxu0 0.0
    %1557 = vmatpush1.msra.mxu0 0.0
    %1558 = vmatprep.subr.mxu0 0.0
    %1559 = vmatpush1.msra.mxu0 0.0
    %1560 = vmatprep.subr.mxu0 0.0
    %1561 = vmatpush1.msra.mxu0 0.0
    %1562 = vmatprep.subr.mxu0 0.0
    %1563 = vmatpush1.msra.mxu0 0.0
    %1564 = vmatprep.subr.mxu0 0.0
    %1565 = vmatpush1.msra.mxu0 0.0
    %1566 = vmatprep.subr.mxu0 0.0
    %1567 = vmatpush1.msra.mxu0 0.0
    %1568 = vmatprep.subr.mxu0 0.0
    %1569 = vmatpush1.msra.mxu0 0.0
    %1570 = vmatprep.subr.mxu0 0.0
    %1571 = vmatpush1.msra.mxu0 0.0
    %1572 = vmatprep.mubr.f32.mxu0 0.0
    %v1573 = vand.u32 %v1119, 4294901760
    %1574 = vmatmul.mubr.f32.gmra.mrb[0].mxu0 %v1573
    %v1575 = vpop.f32.mrb[0].mxu0
    %v1576 = vadd.f32 %v1481, %v1575
    %v1577 = vpop.f32.mrb[0].mxu0
    %1578 = vdwg.mxu0
    %1579 = vmatprep.subr.mxu0 0.0
    %v1580 = vand.u32 %v613, 4294901760
    %1581 = vmatpush1.msra.mxu0 %v1580
    %1582 = vmatprep.subr.mxu0 0.0
    %v1583 = vand.u32 %v614, 4294901760
    %1584 = vmatpush1.msra.mxu0 %v1583
    %1585 = vmatprep.subr.mxu0 0.0
    %v1586 = vand.u32 %v615, 4294901760
    %1587 = vmatpush1.msra.mxu0 %v1586
    %1588 = vmatprep.subr.mxu0 0.0
    %v1589 = vand.u32 %v616, 4294901760
    %1590 = vmatpush1.msra.mxu0 %v1589
    %1591 = vmatprep.subr.mxu0 0.0
    %v1592 = vand.u32 %v617, 4294901760
    %1593 = vmatpush1.msra.mxu0 %v1592
    %1594 = vmatprep.subr.mxu0 0.0
    %v1595 = vand.u32 %v618, 4294901760
    %1596 = vmatpush1.msra.mxu0 %v1595
    %1597 = vmatprep.subr.mxu0 0.0
    %v1598 = vand.u32 %v619, 4294901760
    %1599 = vmatpush1.msra.mxu0 %v1598
    %1600 = vmatprep.subr.mxu0 0.0
    %v1601 = vand.u32 %v620, 4294901760
    %1602 = vmatpush1.msra.mxu0 %v1601
    %1603 = vmatprep.subr.mxu0 0.0
    %1604 = vmatpush1.msra.mxu0 0.0
    %1605 = vmatprep.subr.mxu0 0.0
    %1606 = vmatpush1.msra.mxu0 0.0
    %1607 = vmatprep.subr.mxu0 0.0
    %1608 = vmatpush1.msra.mxu0 0.0
    %1609 = vmatprep.subr.mxu0 0.0
    %1610 = vmatpush1.msra.mxu0 0.0
    %1611 = vmatprep.subr.mxu0 0.0
    %1612 = vmatpush1.msra.mxu0 0.0
    %1613 = vmatprep.subr.mxu0 0.0
    %1614 = vmatpush1.msra.mxu0 0.0
    %1615 = vmatprep.subr.mxu0 0.0
    %1616 = vmatpush1.msra.mxu0 0.0
    %1617 = vmatprep.subr.mxu0 0.0
    %1618 = vmatpush1.msra.mxu0 0.0
    %1619 = vmatprep.subr.mxu0 0.0
    %1620 = vmatpush1.msra.mxu0 0.0
    %1621 = vmatprep.subr.mxu0 0.0
    %1622 = vmatpush1.msra.mxu0 0.0
    %1623 = vmatprep.subr.mxu0 0.0
    %1624 = vmatpush1.msra.mxu0 0.0
    %1625 = vmatprep.subr.mxu0 0.0
    %1626 = vmatpush1.msra.mxu0 0.0
    %1627 = vmatprep.subr.mxu0 0.0
    %1628 = vmatpush1.msra.mxu0 0.0
    %1629 = vmatprep.subr.mxu0 0.0
    %1630 = vmatpush1.msra.mxu0 0.0
    %1631 = vmatprep.subr.mxu0 0.0
    %1632 = vmatpush1.msra.mxu0 0.0
    %1633 = vmatprep.subr.mxu0 0.0
    %1634 = vmatpush1.msra.mxu0 0.0
    %1635 = vmatprep.subr.mxu0 0.0
    %1636 = vmatpush1.msra.mxu0 0.0
    %1637 = vmatprep.subr.mxu0 0.0
    %1638 = vmatpush1.msra.mxu0 0.0
    %1639 = vmatprep.subr.mxu0 0.0
    %1640 = vmatpush1.msra.mxu0 0.0
    %1641 = vmatprep.subr.mxu0 0.0
    %1642 = vmatpush1.msra.mxu0 0.0
    %1643 = vmatprep.subr.mxu0 0.0
    %1644 = vmatpush1.msra.mxu0 0.0
    %1645 = vmatprep.subr.mxu0 0.0
    %1646 = vmatpush1.msra.mxu0 0.0
    %1647 = vmatprep.subr.mxu0 0.0
    %1648 = vmatpush1.msra.mxu0 0.0
    %1649 = vmatprep.subr.mxu0 0.0
    %1650 = vmatpush1.msra.mxu0 0.0
    %1651 = vmatprep.mubr.f32.mxu0 0.0
    %v1652 = vand.u32 %v1119, 4294901760
    %1653 = vmatmul.mubr.f32.gmra.mrb[0].mxu0 %v1652
    %v1654 = vpop.f32.mrb[0].mxu0
    %v1655 = vadd.f32 %v1576, %v1654
    %v1656 = vpop.f32.mrb[0].mxu0
    %1657 = vdwg.mxu0
    %vm1658 = vcmp.ge.f32.partialorder %v607, 0.0
    %vm1659 = vcmp.ge.f32.partialorder %v608, 0.0
    %v1660 = vmul.f32 %v607, 0.01
    %v1661 = vmul.f32 %v608, 0.01
    %v1662 = vsel %vm1658, %v607, %v1660
    %v1663 = vsel %vm1659, %v608, %v1661
    %v1664 = vld [vmem:[%s7] sm:$0xff]
    %v1665 = vld [vmem:[%s7 + $0x8] sm:$0xff]
    %v1666 = vld [vmem:[%s7 + $0x10] sm:$0xff]
    %v1667 = vld [vmem:[%s7 + $0x18] sm:$0xff]
    %v1668 = vld [vmem:[%s7 + $0x20] sm:$0xff]
    %v1669 = vld [vmem:[%s7 + $0x28] sm:$0xff]
    %v1670 = vld [vmem:[%s7 + $0x30] sm:$0xff]
    %v1671 = vld [vmem:[%s7 + $0x38] sm:$0xff]
    %v1672 = vld [vmem:[%s7 + $0x40] sm:$0xff]
    %v1673 = vld [vmem:[%s7 + $0x48] sm:$0xff]
    %v1674 = vld [vmem:[%s7 + $0x50] sm:$0xff]
    %v1675 = vld [vmem:[%s7 + $0x58] sm:$0xff]
    %v1676 = vld [vmem:[%s7 + $0x60] sm:$0xff]
    %v1677 = vld [vmem:[%s7 + $0x68] sm:$0xff]
    %v1678 = vld [vmem:[%s7 + $0x70] sm:$0xff]
    %v1679 = vld [vmem:[%s7 + $0x78] sm:$0xff]
    %v1680 = vld [vmem:[%s7 + $0x80] sm:$0xff]
    %v1681 = vld [vmem:[%s7 + $0x88] sm:$0xff]
    %v1682 = vld [vmem:[%s7 + $0x90] sm:$0xff]
    %v1683 = vld [vmem:[%s7 + $0x98] sm:$0xff]
    %v1684 = vld [vmem:[%s7 + $0xa0] sm:$0xff]
    %v1685 = vld [vmem:[%s7 + $0xa8] sm:$0xff]
    %v1686 = vld [vmem:[%s7 + $0xb0] sm:$0xff]
    %v1687 = vld [vmem:[%s7 + $0xb8] sm:$0xff]
    %v1688 = vld [vmem:[%s7 + $0xc0] sm:$0xff]
    %v1689 = vld [vmem:[%s7 + $0xc8] sm:$0xff]
    %v1690 = vld [vmem:[%s7 + $0xd0] sm:$0xff]
    %v1691 = vld [vmem:[%s7 + $0xd8] sm:$0xff]
    %v1692 = vld [vmem:[%s7 + $0xe0] sm:$0xff]
    %v1693 = vld [vmem:[%s7 + $0xe8] sm:$0xff]
    %v1694 = vld [vmem:[%s7 + $0xf0] sm:$0xff]
    %v1695 = vld [vmem:[%s7 + $0xf8] sm:$0xff]
    %1696 = vmatprep.subr.mxu0 0.0
    %v1697 = vand.u32 %v1664, 4294901760
    %1698 = vmatpush1.msra.mxu0 %v1697
    %1699 = vmatprep.subr.mxu0 0.0
    %v1700 = vand.u32 %v1665, 4294901760
    %1701 = vmatpush1.msra.mxu0 %v1700
    %1702 = vmatprep.subr.mxu0 0.0
    %v1703 = vand.u32 %v1666, 4294901760
    %1704 = vmatpush1.msra.mxu0 %v1703
    %1705 = vmatprep.subr.mxu0 0.0
    %v1706 = vand.u32 %v1667, 4294901760
    %1707 = vmatpush1.msra.mxu0 %v1706
    %1708 = vmatprep.subr.mxu0 0.0
    %v1709 = vand.u32 %v1668, 4294901760
    %1710 = vmatpush1.msra.mxu0 %v1709
    %1711 = vmatprep.subr.mxu0 0.0
    %v1712 = vand.u32 %v1669, 4294901760
    %1713 = vmatpush1.msra.mxu0 %v1712
    %1714 = vmatprep.subr.mxu0 0.0
    %v1715 = vand.u32 %v1670, 4294901760
    %1716 = vmatpush1.msra.mxu0 %v1715
    %1717 = vmatprep.subr.mxu0 0.0
    %v1718 = vand.u32 %v1671, 4294901760
    %1719 = vmatpush1.msra.mxu0 %v1718
    %1720 = vmatprep.subr.mxu0 0.0
    %v1721 = vand.u32 %v1672, 4294901760
    %1722 = vmatpush1.msra.mxu0 %v1721
    %1723 = vmatprep.subr.mxu0 0.0
    %v1724 = vand.u32 %v1673, 4294901760
    %1725 = vmatpush1.msra.mxu0 %v1724
    %1726 = vmatprep.subr.mxu0 0.0
    %v1727 = vand.u32 %v1674, 4294901760
    %1728 = vmatpush1.msra.mxu0 %v1727
    %1729 = vmatprep.subr.mxu0 0.0
    %v1730 = vand.u32 %v1675, 4294901760
    %1731 = vmatpush1.msra.mxu0 %v1730
    %1732 = vmatprep.subr.mxu0 0.0
    %v1733 = vand.u32 %v1676, 4294901760
    %1734 = vmatpush1.msra.mxu0 %v1733
    %1735 = vmatprep.subr.mxu0 0.0
    %v1736 = vand.u32 %v1677, 4294901760
    %1737 = vmatpush1.msra.mxu0 %v1736
    %1738 = vmatprep.subr.mxu0 0.0
    %v1739 = vand.u32 %v1678, 4294901760
    %1740 = vmatpush1.msra.mxu0 %v1739
    %1741 = vmatprep.subr.mxu0 0.0
    %v1742 = vand.u32 %v1679, 4294901760
    %1743 = vmatpush1.msra.mxu0 %v1742
    %1744 = vmatprep.subr.mxu0 0.0
    %v1745 = vand.u32 %v1680, 4294901760
    %1746 = vmatpush1.msra.mxu0 %v1745
    %1747 = vmatprep.subr.mxu0 0.0
    %v1748 = vand.u32 %v1681, 4294901760
    %1749 = vmatpush1.msra.mxu0 %v1748
    %1750 = vmatprep.subr.mxu0 0.0
    %v1751 = vand.u32 %v1682, 4294901760
    %1752 = vmatpush1.msra.mxu0 %v1751
    %1753 = vmatprep.subr.mxu0 0.0
    %v1754 = vand.u32 %v1683, 4294901760
    %1755 = vmatpush1.msra.mxu0 %v1754
    %1756 = vmatprep.subr.mxu0 0.0
    %v1757 = vand.u32 %v1684, 4294901760
    %1758 = vmatpush1.msra.mxu0 %v1757
    %1759 = vmatprep.subr.mxu0 0.0
    %v1760 = vand.u32 %v1685, 4294901760
    %1761 = vmatpush1.msra.mxu0 %v1760
    %1762 = vmatprep.subr.mxu0 0.0
    %v1763 = vand.u32 %v1686, 4294901760
    %1764 = vmatpush1.msra.mxu0 %v1763
    %1765 = vmatprep.subr.mxu0 0.0
    %v1766 = vand.u32 %v1687, 4294901760
    %1767 = vmatpush1.msra.mxu0 %v1766
    %1768 = vmatprep.subr.mxu0 0.0
    %v1769 = vand.u32 %v1688, 4294901760
    %1770 = vmatpush1.msra.mxu0 %v1769
    %1771 = vmatprep.subr.mxu0 0.0
    %v1772 = vand.u32 %v1689, 4294901760
    %1773 = vmatpush1.msra.mxu0 %v1772
    %1774 = vmatprep.subr.mxu0 0.0
    %v1775 = vand.u32 %v1690, 4294901760
    %1776 = vmatpush1.msra.mxu0 %v1775
    %1777 = vmatprep.subr.mxu0 0.0
    %v1778 = vand.u32 %v1691, 4294901760
    %1779 = vmatpush1.msra.mxu0 %v1778
    %1780 = vmatprep.subr.mxu0 0.0
    %v1781 = vand.u32 %v1692, 4294901760
    %1782 = vmatpush1.msra.mxu0 %v1781
    %1783 = vmatprep.subr.mxu0 0.0
    %v1784 = vand.u32 %v1693, 4294901760
    %1785 = vmatpush1.msra.mxu0 %v1784
    %1786 = vmatprep.subr.mxu0 0.0
    %v1787 = vand.u32 %v1694, 4294901760
    %1788 = vmatpush1.msra.mxu0 %v1787
    %1789 = vmatprep.subr.mxu0 0.0
    %v1790 = vand.u32 %v1695, 4294901760
    %1791 = vmatpush1.msra.mxu0 %v1790
    %v1792 = vand.u32 %v1663, 4294901760
    %v1793 = vsub.f32 %v1663, %v1792
    %v1794 = vand.u32 %v1793, 4294901760
    %v1795 = vsub.f32 %v1793, %v1794
    %v1796 = vand.u32 %v1795, 4294901760
    %1797 = vmatprep.mubr.f32.mxu0 %v1796
    %v1798 = vand.u32 %v1662, 4294901760
    %v1799 = vsub.f32 %v1662, %v1798
    %v1800 = vand.u32 %v1799, 4294901760
    %v1801 = vsub.f32 %v1799, %v1800
    %v1802 = vand.u32 %v1801, 4294901760
    %1803 = vmatmul.mubr.f32.gmra.mrb[0].mxu0 %v1802
    %v1804 = vpop.f32.mrb[0].mxu0
    %v1805 = vadd.f32 0.0, %v1804
    %v1806 = vpop.f32.mrb[0].mxu0
    %1807 = vdwg.mxu0
    %1808 = vmatprep.subr.mxu0 0.0
    %v1809 = vand.u32 %v1664, 4294901760
    %v1810 = vsub.f32 %v1664, %v1809
    %v1811 = vand.u32 %v1810, 4294901760
    %v1812 = vsub.f32 %v1810, %v1811
    %v1813 = vand.u32 %v1812, 4294901760
    %1814 = vmatpush1.msra.mxu0 %v1813
    %1815 = vmatprep.subr.mxu0 0.0
    %v1816 = vand.u32 %v1665, 4294901760
    %v1817 = vsub.f32 %v1665, %v1816
    %v1818 = vand.u32 %v1817, 4294901760
    %v1819 = vsub.f32 %v1817, %v1818
    %v1820 = vand.u32 %v1819, 4294901760
    %1821 = vmatpush1.msra.mxu0 %v1820
    %1822 = vmatprep.subr.mxu0 0.0
    %v1823 = vand.u32 %v1666, 4294901760
    %v1824 = vsub.f32 %v1666, %v1823
    %v1825 = vand.u32 %v1824, 4294901760
    %v1826 = vsub.f32 %v1824, %v1825
    %v1827 = vand.u32 %v1826, 4294901760
    %1828 = vmatpush1.msra.mxu0 %v1827
    %1829 = vmatprep.subr.mxu0 0.0
    %v1830 = vand.u32 %v1667, 4294901760
    %v1831 = vsub.f32 %v1667, %v1830
    %v1832 = vand.u32 %v1831, 4294901760
    %v1833 = vsub.f32 %v1831, %v1832
    %v1834 = vand.u32 %v1833, 4294901760
    %1835 = vmatpush1.msra.mxu0 %v1834
    %1836 = vmatprep.subr.mxu0 0.0
    %v1837 = vand.u32 %v1668, 4294901760
    %v1838 = vsub.f32 %v1668, %v1837
    %v1839 = vand.u32 %v1838, 4294901760
    %v1840 = vsub.f32 %v1838, %v1839
    %v1841 = vand.u32 %v1840, 4294901760
    %1842 = vmatpush1.msra.mxu0 %v1841
    %1843 = vmatprep.subr.mxu0 0.0
    %v1844 = vand.u32 %v1669, 4294901760
    %v1845 = vsub.f32 %v1669, %v1844
    %v1846 = vand.u32 %v1845, 4294901760
    %v1847 = vsub.f32 %v1845, %v1846
    %v1848 = vand.u32 %v1847, 4294901760
    %1849 = vmatpush1.msra.mxu0 %v1848
    %1850 = vmatprep.subr.mxu0 0.0
    %v1851 = vand.u32 %v1670, 4294901760
    %v1852 = vsub.f32 %v1670, %v1851
    %v1853 = vand.u32 %v1852, 4294901760
    %v1854 = vsub.f32 %v1852, %v1853
    %v1855 = vand.u32 %v1854, 4294901760
    %1856 = vmatpush1.msra.mxu0 %v1855
    %1857 = vmatprep.subr.mxu0 0.0
    %v1858 = vand.u32 %v1671, 4294901760
    %v1859 = vsub.f32 %v1671, %v1858
    %v1860 = vand.u32 %v1859, 4294901760
    %v1861 = vsub.f32 %v1859, %v1860
    %v1862 = vand.u32 %v1861, 4294901760
    %1863 = vmatpush1.msra.mxu0 %v1862
    %1864 = vmatprep.subr.mxu0 0.0
    %v1865 = vand.u32 %v1672, 4294901760
    %v1866 = vsub.f32 %v1672, %v1865
    %v1867 = vand.u32 %v1866, 4294901760
    %v1868 = vsub.f32 %v1866, %v1867
    %v1869 = vand.u32 %v1868, 4294901760
    %1870 = vmatpush1.msra.mxu0 %v1869
    %1871 = vmatprep.subr.mxu0 0.0
    %v1872 = vand.u32 %v1673, 4294901760
    %v1873 = vsub.f32 %v1673, %v1872
    %v1874 = vand.u32 %v1873, 4294901760
    %v1875 = vsub.f32 %v1873, %v1874
    %v1876 = vand.u32 %v1875, 4294901760
    %1877 = vmatpush1.msra.mxu0 %v1876
    %1878 = vmatprep.subr.mxu0 0.0
    %v1879 = vand.u32 %v1674, 4294901760
    %v1880 = vsub.f32 %v1674, %v1879
    %v1881 = vand.u32 %v1880, 4294901760
    %v1882 = vsub.f32 %v1880, %v1881
    %v1883 = vand.u32 %v1882, 4294901760
    %1884 = vmatpush1.msra.mxu0 %v1883
    %1885 = vmatprep.subr.mxu0 0.0
    %v1886 = vand.u32 %v1675, 4294901760
    %v1887 = vsub.f32 %v1675, %v1886
    %v1888 = vand.u32 %v1887, 4294901760
    %v1889 = vsub.f32 %v1887, %v1888
    %v1890 = vand.u32 %v1889, 4294901760
    %1891 = vmatpush1.msra.mxu0 %v1890
    %1892 = vmatprep.subr.mxu0 0.0
    %v1893 = vand.u32 %v1676, 4294901760
    %v1894 = vsub.f32 %v1676, %v1893
    %v1895 = vand.u32 %v1894, 4294901760
    %v1896 = vsub.f32 %v1894, %v1895
    %v1897 = vand.u32 %v1896, 4294901760
    %1898 = vmatpush1.msra.mxu0 %v1897
    %1899 = vmatprep.subr.mxu0 0.0
    %v1900 = vand.u32 %v1677, 4294901760
    %v1901 = vsub.f32 %v1677, %v1900
    %v1902 = vand.u32 %v1901, 4294901760
    %v1903 = vsub.f32 %v1901, %v1902
    %v1904 = vand.u32 %v1903, 4294901760
    %1905 = vmatpush1.msra.mxu0 %v1904
    %1906 = vmatprep.subr.mxu0 0.0
    %v1907 = vand.u32 %v1678, 4294901760
    %v1908 = vsub.f32 %v1678, %v1907
    %v1909 = vand.u32 %v1908, 4294901760
    %v1910 = vsub.f32 %v1908, %v1909
    %v1911 = vand.u32 %v1910, 4294901760
    %1912 = vmatpush1.msra.mxu0 %v1911
    %1913 = vmatprep.subr.mxu0 0.0
    %v1914 = vand.u32 %v1679, 4294901760
    %v1915 = vsub.f32 %v1679, %v1914
    %v1916 = vand.u32 %v1915, 4294901760
    %v1917 = vsub.f32 %v1915, %v1916
    %v1918 = vand.u32 %v1917, 4294901760
    %1919 = vmatpush1.msra.mxu0 %v1918
    %1920 = vmatprep.subr.mxu0 0.0
    %v1921 = vand.u32 %v1680, 4294901760
    %v1922 = vsub.f32 %v1680, %v1921
    %v1923 = vand.u32 %v1922, 4294901760
    %v1924 = vsub.f32 %v1922, %v1923
    %v1925 = vand.u32 %v1924, 4294901760
    %1926 = vmatpush1.msra.mxu0 %v1925
    %1927 = vmatprep.subr.mxu0 0.0
    %v1928 = vand.u32 %v1681, 4294901760
    %v1929 = vsub.f32 %v1681, %v1928
    %v1930 = vand.u32 %v1929, 4294901760
    %v1931 = vsub.f32 %v1929, %v1930
    %v1932 = vand.u32 %v1931, 4294901760
    %1933 = vmatpush1.msra.mxu0 %v1932
    %1934 = vmatprep.subr.mxu0 0.0
    %v1935 = vand.u32 %v1682, 4294901760
    %v1936 = vsub.f32 %v1682, %v1935
    %v1937 = vand.u32 %v1936, 4294901760
    %v1938 = vsub.f32 %v1936, %v1937
    %v1939 = vand.u32 %v1938, 4294901760
    %1940 = vmatpush1.msra.mxu0 %v1939
    %1941 = vmatprep.subr.mxu0 0.0
    %v1942 = vand.u32 %v1683, 4294901760
    %v1943 = vsub.f32 %v1683, %v1942
    %v1944 = vand.u32 %v1943, 4294901760
    %v1945 = vsub.f32 %v1943, %v1944
    %v1946 = vand.u32 %v1945, 4294901760
    %1947 = vmatpush1.msra.mxu0 %v1946
    %1948 = vmatprep.subr.mxu0 0.0
    %v1949 = vand.u32 %v1684, 4294901760
    %v1950 = vsub.f32 %v1684, %v1949
    %v1951 = vand.u32 %v1950, 4294901760
    %v1952 = vsub.f32 %v1950, %v1951
    %v1953 = vand.u32 %v1952, 4294901760
    %1954 = vmatpush1.msra.mxu0 %v1953
    %1955 = vmatprep.subr.mxu0 0.0
    %v1956 = vand.u32 %v1685, 4294901760
    %v1957 = vsub.f32 %v1685, %v1956
    %v1958 = vand.u32 %v1957, 4294901760
    %v1959 = vsub.f32 %v1957, %v1958
    %v1960 = vand.u32 %v1959, 4294901760
    %1961 = vmatpush1.msra.mxu0 %v1960
    %1962 = vmatprep.subr.mxu0 0.0
    %v1963 = vand.u32 %v1686, 4294901760
    %v1964 = vsub.f32 %v1686, %v1963
    %v1965 = vand.u32 %v1964, 4294901760
    %v1966 = vsub.f32 %v1964, %v1965
    %v1967 = vand.u32 %v1966, 4294901760
    %1968 = vmatpush1.msra.mxu0 %v1967
    %1969 = vmatprep.subr.mxu0 0.0
    %v1970 = vand.u32 %v1687, 4294901760
    %v1971 = vsub.f32 %v1687, %v1970
    %v1972 = vand.u32 %v1971, 4294901760
    %v1973 = vsub.f32 %v1971, %v1972
    %v1974 = vand.u32 %v1973, 4294901760
    %1975 = vmatpush1.msra.mxu0 %v1974
    %1976 = vmatprep.subr.mxu0 0.0
    %v1977 = vand.u32 %v1688, 4294901760
    %v1978 = vsub.f32 %v1688, %v1977
    %v1979 = vand.u32 %v1978, 4294901760
    %v1980 = vsub.f32 %v1978, %v1979
    %v1981 = vand.u32 %v1980, 4294901760
    %1982 = vmatpush1.msra.mxu0 %v1981
    %1983 = vmatprep.subr.mxu0 0.0
    %v1984 = vand.u32 %v1689, 4294901760
    %v1985 = vsub.f32 %v1689, %v1984
    %v1986 = vand.u32 %v1985, 4294901760
    %v1987 = vsub.f32 %v1985, %v1986
    %v1988 = vand.u32 %v1987, 4294901760
    %1989 = vmatpush1.msra.mxu0 %v1988
    %1990 = vmatprep.subr.mxu0 0.0
    %v1991 = vand.u32 %v1690, 4294901760
    %v1992 = vsub.f32 %v1690, %v1991
    %v1993 = vand.u32 %v1992, 4294901760
    %v1994 = vsub.f32 %v1992, %v1993
    %v1995 = vand.u32 %v1994, 4294901760
    %1996 = vmatpush1.msra.mxu0 %v1995
    %1997 = vmatprep.subr.mxu0 0.0
    %v1998 = vand.u32 %v1691, 4294901760
    %v1999 = vsub.f32 %v1691, %v1998
    %v2000 = vand.u32 %v1999, 4294901760
    %v2001 = vsub.f32 %v1999, %v2000
    %v2002 = vand.u32 %v2001, 4294901760
    %2003 = vmatpush1.msra.mxu0 %v2002
    %2004 = vmatprep.subr.mxu0 0.0
    %v2005 = vand.u32 %v1692, 4294901760
    %v2006 = vsub.f32 %v1692, %v2005
    %v2007 = vand.u32 %v2006, 4294901760
    %v2008 = vsub.f32 %v2006, %v2007
    %v2009 = vand.u32 %v2008, 4294901760
    %2010 = vmatpush1.msra.mxu0 %v2009
    %2011 = vmatprep.subr.mxu0 0.0
    %v2012 = vand.u32 %v1693, 4294901760
    %v2013 = vsub.f32 %v1693, %v2012
    %v2014 = vand.u32 %v2013, 4294901760
    %v2015 = vsub.f32 %v2013, %v2014
    %v2016 = vand.u32 %v2015, 4294901760
    %2017 = vmatpush1.msra.mxu0 %v2016
    %2018 = vmatprep.subr.mxu0 0.0
    %v2019 = vand.u32 %v1694, 4294901760
    %v2020 = vsub.f32 %v1694, %v2019
    %v2021 = vand.u32 %v2020, 4294901760
    %v2022 = vsub.f32 %v2020, %v2021
    %v2023 = vand.u32 %v2022, 4294901760
    %2024 = vmatpush1.msra.mxu0 %v2023
    %2025 = vmatprep.subr.mxu0 0.0
    %v2026 = vand.u32 %v1695, 4294901760
    %v2027 = vsub.f32 %v1695, %v2026
    %v2028 = vand.u32 %v2027, 4294901760
    %v2029 = vsub.f32 %v2027, %v2028
    %v2030 = vand.u32 %v2029, 4294901760
    %2031 = vmatpush1.msra.mxu0 %v2030
    %v2032 = vand.u32 %v1663, 4294901760
    %2033 = vmatprep.mubr.f32.mxu0 %v2032
    %v2034 = vand.u32 %v1662, 4294901760
    %2035 = vmatmul.mubr.f32.gmra.mrb[0].mxu0 %v2034
    %v2036 = vpop.f32.mrb[0].mxu0
    %v2037 = vadd.f32 %v1805, %v2036
    %v2038 = vpop.f32.mrb[0].mxu0
    %2039 = vdwg.mxu0
    %2040 = vmatprep.subr.mxu0 0.0
    %v2041 = vand.u32 %v1664, 4294901760
    %v2042 = vsub.f32 %v1664, %v2041
    %2043 = vmatpush1.msra.mxu0 %v2042
    %2044 = vmatprep.subr.mxu0 0.0
    %v2045 = vand.u32 %v1665, 4294901760
    %v2046 = vsub.f32 %v1665, %v2045
    %2047 = vmatpush1.msra.mxu0 %v2046
    %2048 = vmatprep.subr.mxu0 0.0
    %v2049 = vand.u32 %v1666, 4294901760
    %v2050 = vsub.f32 %v1666, %v2049
    %2051 = vmatpush1.msra.mxu0 %v2050
    %2052 = vmatprep.subr.mxu0 0.0
    %v2053 = vand.u32 %v1667, 4294901760
    %v2054 = vsub.f32 %v1667, %v2053
    %2055 = vmatpush1.msra.mxu0 %v2054
    %2056 = vmatprep.subr.mxu0 0.0
    %v2057 = vand.u32 %v1668, 4294901760
    %v2058 = vsub.f32 %v1668, %v2057
    %2059 = vmatpush1.msra.mxu0 %v2058
    %2060 = vmatprep.subr.mxu0 0.0
    %v2061 = vand.u32 %v1669, 4294901760
    %v2062 = vsub.f32 %v1669, %v2061
    %2063 = vmatpush1.msra.mxu0 %v2062
    %2064 = vmatprep.subr.mxu0 0.0
    %v2065 = vand.u32 %v1670, 4294901760
    %v2066 = vsub.f32 %v1670, %v2065
    %2067 = vmatpush1.msra.mxu0 %v2066
    %2068 = vmatprep.subr.mxu0 0.0
    %v2069 = vand.u32 %v1671, 4294901760
    %v2070 = vsub.f32 %v1671, %v2069
    %2071 = vmatpush1.msra.mxu0 %v2070
    %2072 = vmatprep.subr.mxu0 0.0
    %v2073 = vand.u32 %v1672, 4294901760
    %v2074 = vsub.f32 %v1672, %v2073
    %2075 = vmatpush1.msra.mxu0 %v2074
    %2076 = vmatprep.subr.mxu0 0.0
    %v2077 = vand.u32 %v1673, 4294901760
    %v2078 = vsub.f32 %v1673, %v2077
    %2079 = vmatpush1.msra.mxu0 %v2078
    %2080 = vmatprep.subr.mxu0 0.0
    %v2081 = vand.u32 %v1674, 4294901760
    %v2082 = vsub.f32 %v1674, %v2081
    %2083 = vmatpush1.msra.mxu0 %v2082
    %2084 = vmatprep.subr.mxu0 0.0
    %v2085 = vand.u32 %v1675, 4294901760
    %v2086 = vsub.f32 %v1675, %v2085
    %2087 = vmatpush1.msra.mxu0 %v2086
    %2088 = vmatprep.subr.mxu0 0.0
    %v2089 = vand.u32 %v1676, 4294901760
    %v2090 = vsub.f32 %v1676, %v2089
    %2091 = vmatpush1.msra.mxu0 %v2090
    %2092 = vmatprep.subr.mxu0 0.0
    %v2093 = vand.u32 %v1677, 4294901760
    %v2094 = vsub.f32 %v1677, %v2093
    %2095 = vmatpush1.msra.mxu0 %v2094
    %2096 = vmatprep.subr.mxu0 0.0
    %v2097 = vand.u32 %v1678, 4294901760
    %v2098 = vsub.f32 %v1678, %v2097
    %2099 = vmatpush1.msra.mxu0 %v2098
    %2100 = vmatprep.subr.mxu0 0.0
    %v2101 = vand.u32 %v1679, 4294901760
    %v2102 = vsub.f32 %v1679, %v2101
    %2103 = vmatpush1.msra.mxu0 %v2102
    %2104 = vmatprep.subr.mxu0 0.0
    %v2105 = vand.u32 %v1680, 4294901760
    %v2106 = vsub.f32 %v1680, %v2105
    %2107 = vmatpush1.msra.mxu0 %v2106
    %2108 = vmatprep.subr.mxu0 0.0
    %v2109 = vand.u32 %v1681, 4294901760
    %v2110 = vsub.f32 %v1681, %v2109
    %2111 = vmatpush1.msra.mxu0 %v2110
    %2112 = vmatprep.subr.mxu0 0.0
    %v2113 = vand.u32 %v1682, 4294901760
    %v2114 = vsub.f32 %v1682, %v2113
    %2115 = vmatpush1.msra.mxu0 %v2114
    %2116 = vmatprep.subr.mxu0 0.0
    %v2117 = vand.u32 %v1683, 4294901760
    %v2118 = vsub.f32 %v1683, %v2117
    %2119 = vmatpush1.msra.mxu0 %v2118
    %2120 = vmatprep.subr.mxu0 0.0
    %v2121 = vand.u32 %v1684, 4294901760
    %v2122 = vsub.f32 %v1684, %v2121
    %2123 = vmatpush1.msra.mxu0 %v2122
    %2124 = vmatprep.subr.mxu0 0.0
    %v2125 = vand.u32 %v1685, 4294901760
    %v2126 = vsub.f32 %v1685, %v2125
    %2127 = vmatpush1.msra.mxu0 %v2126
    %2128 = vmatprep.subr.mxu0 0.0
    %v2129 = vand.u32 %v1686, 4294901760
    %v2130 = vsub.f32 %v1686, %v2129
    %2131 = vmatpush1.msra.mxu0 %v2130
    %2132 = vmatprep.subr.mxu0 0.0
    %v2133 = vand.u32 %v1687, 4294901760
    %v2134 = vsub.f32 %v1687, %v2133
    %2135 = vmatpush1.msra.mxu0 %v2134
    %2136 = vmatprep.subr.mxu0 0.0
    %v2137 = vand.u32 %v1688, 4294901760
    %v2138 = vsub.f32 %v1688, %v2137
    %2139 = vmatpush1.msra.mxu0 %v2138
    %2140 = vmatprep.subr.mxu0 0.0
    %v2141 = vand.u32 %v1689, 4294901760
    %v2142 = vsub.f32 %v1689, %v2141
    %2143 = vmatpush1.msra.mxu0 %v2142
    %2144 = vmatprep.subr.mxu0 0.0
    %v2145 = vand.u32 %v1690, 4294901760
    %v2146 = vsub.f32 %v1690, %v2145
    %2147 = vmatpush1.msra.mxu0 %v2146
    %2148 = vmatprep.subr.mxu0 0.0
    %v2149 = vand.u32 %v1691, 4294901760
    %v2150 = vsub.f32 %v1691, %v2149
    %2151 = vmatpush1.msra.mxu0 %v2150
    %2152 = vmatprep.subr.mxu0 0.0
    %v2153 = vand.u32 %v1692, 4294901760
    %v2154 = vsub.f32 %v1692, %v2153
    %2155 = vmatpush1.msra.mxu0 %v2154
    %2156 = vmatprep.subr.mxu0 0.0
    %v2157 = vand.u32 %v1693, 4294901760
    %v2158 = vsub.f32 %v1693, %v2157
    %2159 = vmatpush1.msra.mxu0 %v2158
    %2160 = vmatprep.subr.mxu0 0.0
    %v2161 = vand.u32 %v1694, 4294901760
    %v2162 = vsub.f32 %v1694, %v2161
    %2163 = vmatpush1.msra.mxu0 %v2162
    %2164 = vmatprep.subr.mxu0 0.0
    %v2165 = vand.u32 %v1695, 4294901760
    %v2166 = vsub.f32 %v1695, %v2165
    %2167 = vmatpush1.msra.mxu0 %v2166
    %v2168 = vand.u32 %v1663, 4294901760
    %v2169 = vsub.f32 %v1663, %v2168
    %2170 = vmatprep.mubr.f32.mxu0 %v2169
    %v2171 = vand.u32 %v1662, 4294901760
    %v2172 = vsub.f32 %v1662, %v2171
    %2173 = vmatmul.mubr.f32.gmra.mrb[0].mxu0 %v2172
    %v2174 = vpop.f32.mrb[0].mxu0
    %v2175 = vadd.f32 %v2037, %v2174
    %v2176 = vpop.f32.mrb[0].mxu0
    %2177 = vdwg.mxu0
    %2178 = vmatprep.subr.mxu0 0.0
    %v2179 = vand.u32 %v1664, 4294901760
    %2180 = vmatpush1.msra.mxu0 %v2179
    %2181 = vmatprep.subr.mxu0 0.0
    %v2182 = vand.u32 %v1665, 4294901760
    %2183 = vmatpush1.msra.mxu0 %v2182
    %2184 = vmatprep.subr.mxu0 0.0
    %v2185 = vand.u32 %v1666, 4294901760
    %2186 = vmatpush1.msra.mxu0 %v2185
    %2187 = vmatprep.subr.mxu0 0.0
    %v2188 = vand.u32 %v1667, 4294901760
    %2189 = vmatpush1.msra.mxu0 %v2188
    %2190 = vmatprep.subr.mxu0 0.0
    %v2191 = vand.u32 %v1668, 4294901760
    %2192 = vmatpush1.msra.mxu0 %v2191
    %2193 = vmatprep.subr.mxu0 0.0
    %v2194 = vand.u32 %v1669, 4294901760
    %2195 = vmatpush1.msra.mxu0 %v2194
    %2196 = vmatprep.subr.mxu0 0.0
    %v2197 = vand.u32 %v1670, 4294901760
    %2198 = vmatpush1.msra.mxu0 %v2197
    %2199 = vmatprep.subr.mxu0 0.0
    %v2200 = vand.u32 %v1671, 4294901760
    %2201 = vmatpush1.msra.mxu0 %v2200
    %2202 = vmatprep.subr.mxu0 0.0
    %v2203 = vand.u32 %v1672, 4294901760
    %2204 = vmatpush1.msra.mxu0 %v2203
    %2205 = vmatprep.subr.mxu0 0.0
    %v2206 = vand.u32 %v1673, 4294901760
    %2207 = vmatpush1.msra.mxu0 %v2206
    %2208 = vmatprep.subr.mxu0 0.0
    %v2209 = vand.u32 %v1674, 4294901760
    %2210 = vmatpush1.msra.mxu0 %v2209
    %2211 = vmatprep.subr.mxu0 0.0
    %v2212 = vand.u32 %v1675, 4294901760
    %2213 = vmatpush1.msra.mxu0 %v2212
    %2214 = vmatprep.subr.mxu0 0.0
    %v2215 = vand.u32 %v1676, 4294901760
    %2216 = vmatpush1.msra.mxu0 %v2215
    %2217 = vmatprep.subr.mxu0 0.0
    %v2218 = vand.u32 %v1677, 4294901760
    %2219 = vmatpush1.msra.mxu0 %v2218
    %2220 = vmatprep.subr.mxu0 0.0
    %v2221 = vand.u32 %v1678, 4294901760
    %2222 = vmatpush1.msra.mxu0 %v2221
    %2223 = vmatprep.subr.mxu0 0.0
    %v2224 = vand.u32 %v1679, 4294901760
    %2225 = vmatpush1.msra.mxu0 %v2224
    %2226 = vmatprep.subr.mxu0 0.0
    %v2227 = vand.u32 %v1680, 4294901760
    %2228 = vmatpush1.msra.mxu0 %v2227
    %2229 = vmatprep.subr.mxu0 0.0
    %v2230 = vand.u32 %v1681, 4294901760
    %2231 = vmatpush1.msra.mxu0 %v2230
    %2232 = vmatprep.subr.mxu0 0.0
    %v2233 = vand.u32 %v1682, 4294901760
    %2234 = vmatpush1.msra.mxu0 %v2233
    %2235 = vmatprep.subr.mxu0 0.0
    %v2236 = vand.u32 %v1683, 4294901760
    %2237 = vmatpush1.msra.mxu0 %v2236
    %2238 = vmatprep.subr.mxu0 0.0
    %v2239 = vand.u32 %v1684, 4294901760
    %2240 = vmatpush1.msra.mxu0 %v2239
    %2241 = vmatprep.subr.mxu0 0.0
    %v2242 = vand.u32 %v1685, 4294901760
    %2243 = vmatpush1.msra.mxu0 %v2242
    %2244 = vmatprep.subr.mxu0 0.0
    %v2245 = vand.u32 %v1686, 4294901760
    %2246 = vmatpush1.msra.mxu0 %v2245
    %2247 = vmatprep.subr.mxu0 0.0
    %v2248 = vand.u32 %v1687, 4294901760
    %2249 = vmatpush1.msra.mxu0 %v2248
    %2250 = vmatprep.subr.mxu0 0.0
    %v2251 = vand.u32 %v1688, 4294901760
    %2252 = vmatpush1.msra.mxu0 %v2251
    %2253 = vmatprep.subr.mxu0 0.0
    %v2254 = vand.u32 %v1689, 4294901760
    %2255 = vmatpush1.msra.mxu0 %v2254
    %2256 = vmatprep.subr.mxu0 0.0
    %v2257 = vand.u32 %v1690, 4294901760
    %2258 = vmatpush1.msra.mxu0 %v2257
    %2259 = vmatprep.subr.mxu0 0.0
    %v2260 = vand.u32 %v1691, 4294901760
    %2261 = vmatpush1.msra.mxu0 %v2260
    %2262 = vmatprep.subr.mxu0 0.0
    %v2263 = vand.u32 %v1692, 4294901760
    %2264 = vmatpush1.msra.mxu0 %v2263
    %2265 = vmatprep.subr.mxu0 0.0
    %v2266 = vand.u32 %v1693, 4294901760
    %2267 = vmatpush1.msra.mxu0 %v2266
    %2268 = vmatprep.subr.mxu0 0.0
    %v2269 = vand.u32 %v1694, 4294901760
    %2270 = vmatpush1.msra.mxu0 %v2269
    %2271 = vmatprep.subr.mxu0 0.0
    %v2272 = vand.u32 %v1695, 4294901760
    %2273 = vmatpush1.msra.mxu0 %v2272
    %v2274 = vand.u32 %v1663, 4294901760
    %v2275 = vsub.f32 %v1663, %v2274
    %v2276 = vand.u32 %v2275, 4294901760
    %2277 = vmatprep.mubr.f32.mxu0 %v2276
    %v2278 = vand.u32 %v1662, 4294901760
    %v2279 = vsub.f32 %v1662, %v2278
    %v2280 = vand.u32 %v2279, 4294901760
    %2281 = vmatmul.mubr.f32.gmra.mrb[0].mxu0 %v2280
    %v2282 = vpop.f32.mrb[0].mxu0
    %v2283 = vadd.f32 %v2175, %v2282
    %v2284 = vpop.f32.mrb[0].mxu0
    %2285 = vdwg.mxu0
    %2286 = vmatprep.subr.mxu0 0.0
    %v2287 = vand.u32 %v1664, 4294901760
    %v2288 = vsub.f32 %v1664, %v2287
    %v2289 = vand.u32 %v2288, 4294901760
    %2290 = vmatpush1.msra.mxu0 %v2289
    %2291 = vmatprep.subr.mxu0 0.0
    %v2292 = vand.u32 %v1665, 4294901760
    %v2293 = vsub.f32 %v1665, %v2292
    %v2294 = vand.u32 %v2293, 4294901760
    %2295 = vmatpush1.msra.mxu0 %v2294
    %2296 = vmatprep.subr.mxu0 0.0
    %v2297 = vand.u32 %v1666, 4294901760
    %v2298 = vsub.f32 %v1666, %v2297
    %v2299 = vand.u32 %v2298, 4294901760
    %2300 = vmatpush1.msra.mxu0 %v2299
    %2301 = vmatprep.subr.mxu0 0.0
    %v2302 = vand.u32 %v1667, 4294901760
    %v2303 = vsub.f32 %v1667, %v2302
    %v2304 = vand.u32 %v2303, 4294901760
    %2305 = vmatpush1.msra.mxu0 %v2304
    %2306 = vmatprep.subr.mxu0 0.0
    %v2307 = vand.u32 %v1668, 4294901760
    %v2308 = vsub.f32 %v1668, %v2307
    %v2309 = vand.u32 %v2308, 4294901760
    %2310 = vmatpush1.msra.mxu0 %v2309
    %2311 = vmatprep.subr.mxu0 0.0
    %v2312 = vand.u32 %v1669, 4294901760
    %v2313 = vsub.f32 %v1669, %v2312
    %v2314 = vand.u32 %v2313, 4294901760
    %2315 = vmatpush1.msra.mxu0 %v2314
    %2316 = vmatprep.subr.mxu0 0.0
    %v2317 = vand.u32 %v1670, 4294901760
    %v2318 = vsub.f32 %v1670, %v2317
    %v2319 = vand.u32 %v2318, 4294901760
    %2320 = vmatpush1.msra.mxu0 %v2319
    %2321 = vmatprep.subr.mxu0 0.0
    %v2322 = vand.u32 %v1671, 4294901760
    %v2323 = vsub.f32 %v1671, %v2322
    %v2324 = vand.u32 %v2323, 4294901760
    %2325 = vmatpush1.msra.mxu0 %v2324
    %2326 = vmatprep.subr.mxu0 0.0
    %v2327 = vand.u32 %v1672, 4294901760
    %v2328 = vsub.f32 %v1672, %v2327
    %v2329 = vand.u32 %v2328, 4294901760
    %2330 = vmatpush1.msra.mxu0 %v2329
    %2331 = vmatprep.subr.mxu0 0.0
    %v2332 = vand.u32 %v1673, 4294901760
    %v2333 = vsub.f32 %v1673, %v2332
    %v2334 = vand.u32 %v2333, 4294901760
    %2335 = vmatpush1.msra.mxu0 %v2334
    %2336 = vmatprep.subr.mxu0 0.0
    %v2337 = vand.u32 %v1674, 4294901760
    %v2338 = vsub.f32 %v1674, %v2337
    %v2339 = vand.u32 %v2338, 4294901760
    %2340 = vmatpush1.msra.mxu0 %v2339
    %2341 = vmatprep.subr.mxu0 0.0
    %v2342 = vand.u32 %v1675, 4294901760
    %v2343 = vsub.f32 %v1675, %v2342
    %v2344 = vand.u32 %v2343, 4294901760
    %2345 = vmatpush1.msra.mxu0 %v2344
    %2346 = vmatprep.subr.mxu0 0.0
    %v2347 = vand.u32 %v1676, 4294901760
    %v2348 = vsub.f32 %v1676, %v2347
    %v2349 = vand.u32 %v2348, 4294901760
    %2350 = vmatpush1.msra.mxu0 %v2349
    %2351 = vmatprep.subr.mxu0 0.0
    %v2352 = vand.u32 %v1677, 4294901760
    %v2353 = vsub.f32 %v1677, %v2352
    %v2354 = vand.u32 %v2353, 4294901760
    %2355 = vmatpush1.msra.mxu0 %v2354
    %2356 = vmatprep.subr.mxu0 0.0
    %v2357 = vand.u32 %v1678, 4294901760
    %v2358 = vsub.f32 %v1678, %v2357
    %v2359 = vand.u32 %v2358, 4294901760
    %2360 = vmatpush1.msra.mxu0 %v2359
    %2361 = vmatprep.subr.mxu0 0.0
    %v2362 = vand.u32 %v1679, 4294901760
    %v2363 = vsub.f32 %v1679, %v2362
    %v2364 = vand.u32 %v2363, 4294901760
    %2365 = vmatpush1.msra.mxu0 %v2364
    %2366 = vmatprep.subr.mxu0 0.0
    %v2367 = vand.u32 %v1680, 4294901760
    %v2368 = vsub.f32 %v1680, %v2367
    %v2369 = vand.u32 %v2368, 4294901760
    %2370 = vmatpush1.msra.mxu0 %v2369
    %2371 = vmatprep.subr.mxu0 0.0
    %v2372 = vand.u32 %v1681, 4294901760
    %v2373 = vsub.f32 %v1681, %v2372
    %v2374 = vand.u32 %v2373, 4294901760
    %2375 = vmatpush1.msra.mxu0 %v2374
    %2376 = vmatprep.subr.mxu0 0.0
    %v2377 = vand.u32 %v1682, 4294901760
    %v2378 = vsub.f32 %v1682, %v2377
    %v2379 = vand.u32 %v2378, 4294901760
    %2380 = vmatpush1.msra.mxu0 %v2379
    %2381 = vmatprep.subr.mxu0 0.0
    %v2382 = vand.u32 %v1683, 4294901760
    %v2383 = vsub.f32 %v1683, %v2382
    %v2384 = vand.u32 %v2383, 4294901760
    %2385 = vmatpush1.msra.mxu0 %v2384
    %2386 = vmatprep.subr.mxu0 0.0
    %v2387 = vand.u32 %v1684, 4294901760
    %v2388 = vsub.f32 %v1684, %v2387
    %v2389 = vand.u32 %v2388, 4294901760
    %2390 = vmatpush1.msra.mxu0 %v2389
    %2391 = vmatprep.subr.mxu0 0.0
    %v2392 = vand.u32 %v1685, 4294901760
    %v2393 = vsub.f32 %v1685, %v2392
    %v2394 = vand.u32 %v2393, 4294901760
    %2395 = vmatpush1.msra.mxu0 %v2394
    %2396 = vmatprep.subr.mxu0 0.0
    %v2397 = vand.u32 %v1686, 4294901760
    %v2398 = vsub.f32 %v1686, %v2397
    %v2399 = vand.u32 %v2398, 4294901760
    %2400 = vmatpush1.msra.mxu0 %v2399
    %2401 = vmatprep.subr.mxu0 0.0
    %v2402 = vand.u32 %v1687, 4294901760
    %v2403 = vsub.f32 %v1687, %v2402
    %v2404 = vand.u32 %v2403, 4294901760
    %2405 = vmatpush1.msra.mxu0 %v2404
    %2406 = vmatprep.subr.mxu0 0.0
    %v2407 = vand.u32 %v1688, 4294901760
    %v2408 = vsub.f32 %v1688, %v2407
    %v2409 = vand.u32 %v2408, 4294901760
    %2410 = vmatpush1.msra.mxu0 %v2409
    %2411 = vmatprep.subr.mxu0 0.0
    %v2412 = vand.u32 %v1689, 4294901760
    %v2413 = vsub.f32 %v1689, %v2412
    %v2414 = vand.u32 %v2413, 4294901760
    %2415 = vmatpush1.msra.mxu0 %v2414
    %2416 = vmatprep.subr.mxu0 0.0
    %v2417 = vand.u32 %v1690, 4294901760
    %v2418 = vsub.f32 %v1690, %v2417
    %v2419 = vand.u32 %v2418, 4294901760
    %2420 = vmatpush1.msra.mxu0 %v2419
    %2421 = vmatprep.subr.mxu0 0.0
    %v2422 = vand.u32 %v1691, 4294901760
    %v2423 = vsub.f32 %v1691, %v2422
    %v2424 = vand.u32 %v2423, 4294901760
    %2425 = vmatpush1.msra.mxu0 %v2424
    %2426 = vmatprep.subr.mxu0 0.0
    %v2427 = vand.u32 %v1692, 4294901760
    %v2428 = vsub.f32 %v1692, %v2427
    %v2429 = vand.u32 %v2428, 4294901760
    %2430 = vmatpush1.msra.mxu0 %v2429
    %2431 = vmatprep.subr.mxu0 0.0
    %v2432 = vand.u32 %v1693, 4294901760
    %v2433 = vsub.f32 %v1693, %v2432
    %v2434 = vand.u32 %v2433, 4294901760
    %2435 = vmatpush1.msra.mxu0 %v2434
    %2436 = vmatprep.subr.mxu0 0.0
    %v2437 = vand.u32 %v1694, 4294901760
    %v2438 = vsub.f32 %v1694, %v2437
    %v2439 = vand.u32 %v2438, 4294901760
    %2440 = vmatpush1.msra.mxu0 %v2439
    %2441 = vmatprep.subr.mxu0 0.0
    %v2442 = vand.u32 %v1695, 4294901760
    %v2443 = vsub.f32 %v1695, %v2442
    %v2444 = vand.u32 %v2443, 4294901760
    %2445 = vmatpush1.msra.mxu0 %v2444
    %v2446 = vand.u32 %v1663, 4294901760
    %2447 = vmatprep.mubr.f32.mxu0 %v2446
    %v2448 = vand.u32 %v1662, 4294901760
    %2449 = vmatmul.mubr.f32.gmra.mrb[0].mxu0 %v2448
    %v2450 = vpop.f32.mrb[0].mxu0
    %v2451 = vadd.f32 %v2283, %v2450
    %v2452 = vpop.f32.mrb[0].mxu0
    %2453 = vdwg.mxu0
    %2454 = vmatprep.subr.mxu0 0.0
    %v2455 = vand.u32 %v1664, 4294901760
    %2456 = vmatpush1.msra.mxu0 %v2455
    %2457 = vmatprep.subr.mxu0 0.0
    %v2458 = vand.u32 %v1665, 4294901760
    %2459 = vmatpush1.msra.mxu0 %v2458
    %2460 = vmatprep.subr.mxu0 0.0
    %v2461 = vand.u32 %v1666, 4294901760
    %2462 = vmatpush1.msra.mxu0 %v2461
    %2463 = vmatprep.subr.mxu0 0.0
    %v2464 = vand.u32 %v1667, 4294901760
    %2465 = vmatpush1.msra.mxu0 %v2464
    %2466 = vmatprep.subr.mxu0 0.0
    %v2467 = vand.u32 %v1668, 4294901760
    %2468 = vmatpush1.msra.mxu0 %v2467
    %2469 = vmatprep.subr.mxu0 0.0
    %v2470 = vand.u32 %v1669, 4294901760
    %2471 = vmatpush1.msra.mxu0 %v2470
    %2472 = vmatprep.subr.mxu0 0.0
    %v2473 = vand.u32 %v1670, 4294901760
    %2474 = vmatpush1.msra.mxu0 %v2473
    %2475 = vmatprep.subr.mxu0 0.0
    %v2476 = vand.u32 %v1671, 4294901760
    %2477 = vmatpush1.msra.mxu0 %v2476
    %2478 = vmatprep.subr.mxu0 0.0
    %v2479 = vand.u32 %v1672, 4294901760
    %2480 = vmatpush1.msra.mxu0 %v2479
    %2481 = vmatprep.subr.mxu0 0.0
    %v2482 = vand.u32 %v1673, 4294901760
    %2483 = vmatpush1.msra.mxu0 %v2482
    %2484 = vmatprep.subr.mxu0 0.0
    %v2485 = vand.u32 %v1674, 4294901760
    %2486 = vmatpush1.msra.mxu0 %v2485
    %2487 = vmatprep.subr.mxu0 0.0
    %v2488 = vand.u32 %v1675, 4294901760
    %2489 = vmatpush1.msra.mxu0 %v2488
    %2490 = vmatprep.subr.mxu0 0.0
    %v2491 = vand.u32 %v1676, 4294901760
    %2492 = vmatpush1.msra.mxu0 %v2491
    %2493 = vmatprep.subr.mxu0 0.0
    %v2494 = vand.u32 %v1677, 4294901760
    %2495 = vmatpush1.msra.mxu0 %v2494
    %2496 = vmatprep.subr.mxu0 0.0
    %v2497 = vand.u32 %v1678, 4294901760
    %2498 = vmatpush1.msra.mxu0 %v2497
    %2499 = vmatprep.subr.mxu0 0.0
    %v2500 = vand.u32 %v1679, 4294901760
    %2501 = vmatpush1.msra.mxu0 %v2500
    %2502 = vmatprep.subr.mxu0 0.0
    %v2503 = vand.u32 %v1680, 4294901760
    %2504 = vmatpush1.msra.mxu0 %v2503
    %2505 = vmatprep.subr.mxu0 0.0
    %v2506 = vand.u32 %v1681, 4294901760
    %2507 = vmatpush1.msra.mxu0 %v2506
    %2508 = vmatprep.subr.mxu0 0.0
    %v2509 = vand.u32 %v1682, 4294901760
    %2510 = vmatpush1.msra.mxu0 %v2509
    %2511 = vmatprep.subr.mxu0 0.0
    %v2512 = vand.u32 %v1683, 4294901760
    %2513 = vmatpush1.msra.mxu0 %v2512
    %2514 = vmatprep.subr.mxu0 0.0
    %v2515 = vand.u32 %v1684, 4294901760
    %2516 = vmatpush1.msra.mxu0 %v2515
    %2517 = vmatprep.subr.mxu0 0.0
    %v2518 = vand.u32 %v1685, 4294901760
    %2519 = vmatpush1.msra.mxu0 %v2518
    %2520 = vmatprep.subr.mxu0 0.0
    %v2521 = vand.u32 %v1686, 4294901760
    %2522 = vmatpush1.msra.mxu0 %v2521
    %2523 = vmatprep.subr.mxu0 0.0
    %v2524 = vand.u32 %v1687, 4294901760
    %2525 = vmatpush1.msra.mxu0 %v2524
    %2526 = vmatprep.subr.mxu0 0.0
    %v2527 = vand.u32 %v1688, 4294901760
    %2528 = vmatpush1.msra.mxu0 %v2527
    %2529 = vmatprep.subr.mxu0 0.0
    %v2530 = vand.u32 %v1689, 4294901760
    %2531 = vmatpush1.msra.mxu0 %v2530
    %2532 = vmatprep.subr.mxu0 0.0
    %v2533 = vand.u32 %v1690, 4294901760
    %2534 = vmatpush1.msra.mxu0 %v2533
    %2535 = vmatprep.subr.mxu0 0.0
    %v2536 = vand.u32 %v1691, 4294901760
    %2537 = vmatpush1.msra.mxu0 %v2536
    %2538 = vmatprep.subr.mxu0 0.0
    %v2539 = vand.u32 %v1692, 4294901760
    %2540 = vmatpush1.msra.mxu0 %v2539
    %2541 = vmatprep.subr.mxu0 0.0
    %v2542 = vand.u32 %v1693, 4294901760
    %2543 = vmatpush1.msra.mxu0 %v2542
    %2544 = vmatprep.subr.mxu0 0.0
    %v2545 = vand.u32 %v1694, 4294901760
    %2546 = vmatpush1.msra.mxu0 %v2545
    %2547 = vmatprep.subr.mxu0 0.0
    %v2548 = vand.u32 %v1695, 4294901760
    %2549 = vmatpush1.msra.mxu0 %v2548
    %v2550 = vand.u32 %v1663, 4294901760
    %2551 = vmatprep.mubr.f32.mxu0 %v2550
    %v2552 = vand.u32 %v1662, 4294901760
    %2553 = vmatmul.mubr.f32.gmra.mrb[0].mxu0 %v2552
    %v2554 = vpop.f32.mrb[0].mxu0
    %v2555 = vadd.f32 %v2451, %v2554
    %v2556 = vpop.f32.mrb[0].mxu0
    %2557 = vdwg.mxu0
    %v2558 = vadd.f32 %v1655, %v2555
    %v2559 = vld [vmem:[%s8] sm:$0x1]
    %v2561 = vlaneseq
    %v2562 = vshrl.u32 %v2561, 7
    %v2563 = vsub.s32 0, %v2562
    %v2564 = vrot.slane %v2559, %v2563
    %v2566 = vadd.f32 %v2558, %v2564
    %vm2567 = vcmp.ge.f32.partialorder %v2566, 0.0
    %v2568 = vmul.f32 %v2566, 0.01
    %v2569 = vsel %vm2567, %v2566, %v2568
    %v2570 = vld [vmem:[%s9] sm:$0xff]
    %v2571 = vld [vmem:[%s9 + $0x8] sm:$0xff]
    %v2572 = vld [vmem:[%s9 + $0x10] sm:$0xff]
    %v2573 = vld [vmem:[%s9 + $0x18] sm:$0xff]
    %v2574 = vld [vmem:[%s10] sm:$0x1]
    %v2576 = vlaneseq
    %v2577 = vshrl.u32 %v2576, 7
    %v2578 = vsub.s32 0, %v2577
    %v2579 = vrot.slane %v2574, %v2578
    %v2582 = vsel %vm60, %v2569, 0
    %2584 = vmatprep.subr.mxu0 0.0
    %v2585 = vand.u32 %v2570, 4294901760
    %2586 = vmatpush1.msra.mxu0 %v2585
    %2587 = vmatprep.subr.mxu0 0.0
    %v2588 = vand.u32 %v2571, 4294901760
    %2589 = vmatpush1.msra.mxu0 %v2588
    %2590 = vmatprep.subr.mxu0 0.0
    %v2591 = vand.u32 %v2572, 4294901760
    %2592 = vmatpush1.msra.mxu0 %v2591
    %2593 = vmatprep.subr.mxu0 0.0
    %v2594 = vand.u32 %v2573, 4294901760
    %2595 = vmatpush1.msra.mxu0 %v2594
    %2596 = vmatprep.subr.mxu0 0.0
    %2597 = vmatpush1.msra.mxu0 0.0
    %2598 = vmatprep.subr.mxu0 0.0
    %2599 = vmatpush1.msra.mxu0 0.0
    %2600 = vmatprep.subr.mxu0 0.0
    %2601 = vmatpush1.msra.mxu0 0.0
    %2602 = vmatprep.subr.mxu0 0.0
    %2603 = vmatpush1.msra.mxu0 0.0
    %2604 = vmatprep.subr.mxu0 0.0
    %2605 = vmatpush1.msra.mxu0 0.0
    %2606 = vmatprep.subr.mxu0 0.0
    %2607 = vmatpush1.msra.mxu0 0.0
    %2608 = vmatprep.subr.mxu0 0.0
    %2609 = vmatpush1.msra.mxu0 0.0
    %2610 = vmatprep.subr.mxu0 0.0
    %2611 = vmatpush1.msra.mxu0 0.0
    %2612 = vmatprep.subr.mxu0 0.0
    %2613 = vmatpush1.msra.mxu0 0.0
    %2614 = vmatprep.subr.mxu0 0.0
    %2615 = vmatpush1.msra.mxu0 0.0
    %2616 = vmatprep.subr.mxu0 0.0
    %2617 = vmatpush1.msra.mxu0 0.0
    %2618 = vmatprep.subr.mxu0 0.0
    %2619 = vmatpush1.msra.mxu0 0.0
    %2620 = vmatprep.subr.mxu0 0.0
    %2621 = vmatpush1.msra.mxu0 0.0
    %2622 = vmatprep.subr.mxu0 0.0
    %2623 = vmatpush1.msra.mxu0 0.0
    %2624 = vmatprep.subr.mxu0 0.0
    %2625 = vmatpush1.msra.mxu0 0.0
    %2626 = vmatprep.subr.mxu0 0.0
    %2627 = vmatpush1.msra.mxu0 0.0
    %2628 = vmatprep.subr.mxu0 0.0
    %2629 = vmatpush1.msra.mxu0 0.0
    %2630 = vmatprep.subr.mxu0 0.0
    %2631 = vmatpush1.msra.mxu0 0.0
    %2632 = vmatprep.subr.mxu0 0.0
    %2633 = vmatpush1.msra.mxu0 0.0
    %2634 = vmatprep.subr.mxu0 0.0
    %2635 = vmatpush1.msra.mxu0 0.0
    %2636 = vmatprep.subr.mxu0 0.0
    %2637 = vmatpush1.msra.mxu0 0.0
    %2638 = vmatprep.subr.mxu0 0.0
    %2639 = vmatpush1.msra.mxu0 0.0
    %2640 = vmatprep.subr.mxu0 0.0
    %2641 = vmatpush1.msra.mxu0 0.0
    %2642 = vmatprep.subr.mxu0 0.0
    %2643 = vmatpush1.msra.mxu0 0.0
    %2644 = vmatprep.subr.mxu0 0.0
    %2645 = vmatpush1.msra.mxu0 0.0
    %2646 = vmatprep.subr.mxu0 0.0
    %2647 = vmatpush1.msra.mxu0 0.0
    %2648 = vmatprep.subr.mxu0 0.0
    %2649 = vmatpush1.msra.mxu0 0.0
    %2650 = vmatprep.subr.mxu0 0.0
    %2651 = vmatpush1.msra.mxu0 0.0
    %2652 = vmatprep.mubr.f32.mxu0 0.0
    %v2653 = vand.u32 %v2582, 4294901760
    %v2654 = vsub.f32 %v2582, %v2653
    %v2655 = vand.u32 %v2654, 4294901760
    %v2656 = vsub.f32 %v2654, %v2655
    %v2657 = vand.u32 %v2656, 4294901760
    %2658 = vmatmul.mubr.f32.gmra.mrb[0].mxu0 %v2657
    %v2659 = vpop.f32.mrb[0].mxu0
    %v2660 = vadd.f32 %v2579, %v2659
    %v2661 = vpop.f32.mrb[0].mxu0
    %2662 = vdwg.mxu0
    %2663 = vmatprep.subr.mxu0 0.0
    %v2664 = vand.u32 %v2570, 4294901760
    %v2665 = vsub.f32 %v2570, %v2664
    %v2666 = vand.u32 %v2665, 4294901760
    %v2667 = vsub.f32 %v2665, %v2666
    %v2668 = vand.u32 %v2667, 4294901760
    %2669 = vmatpush1.msra.mxu0 %v2668
    %2670 = vmatprep.subr.mxu0 0.0
    %v2671 = vand.u32 %v2571, 4294901760
    %v2672 = vsub.f32 %v2571, %v2671
    %v2673 = vand.u32 %v2672, 4294901760
    %v2674 = vsub.f32 %v2672, %v2673
    %v2675 = vand.u32 %v2674, 4294901760
    %2676 = vmatpush1.msra.mxu0 %v2675
    %2677 = vmatprep.subr.mxu0 0.0
    %v2678 = vand.u32 %v2572, 4294901760
    %v2679 = vsub.f32 %v2572, %v2678
    %v2680 = vand.u32 %v2679, 4294901760
    %v2681 = vsub.f32 %v2679, %v2680
    %v2682 = vand.u32 %v2681, 4294901760
    %2683 = vmatpush1.msra.mxu0 %v2682
    %2684 = vmatprep.subr.mxu0 0.0
    %v2685 = vand.u32 %v2573, 4294901760
    %v2686 = vsub.f32 %v2573, %v2685
    %v2687 = vand.u32 %v2686, 4294901760
    %v2688 = vsub.f32 %v2686, %v2687
    %v2689 = vand.u32 %v2688, 4294901760
    %2690 = vmatpush1.msra.mxu0 %v2689
    %2691 = vmatprep.subr.mxu0 0.0
    %2692 = vmatpush1.msra.mxu0 0.0
    %2693 = vmatprep.subr.mxu0 0.0
    %2694 = vmatpush1.msra.mxu0 0.0
    %2695 = vmatprep.subr.mxu0 0.0
    %2696 = vmatpush1.msra.mxu0 0.0
    %2697 = vmatprep.subr.mxu0 0.0
    %2698 = vmatpush1.msra.mxu0 0.0
    %2699 = vmatprep.subr.mxu0 0.0
    %2700 = vmatpush1.msra.mxu0 0.0
    %2701 = vmatprep.subr.mxu0 0.0
    %2702 = vmatpush1.msra.mxu0 0.0
    %2703 = vmatprep.subr.mxu0 0.0
    %2704 = vmatpush1.msra.mxu0 0.0
    %2705 = vmatprep.subr.mxu0 0.0
    %2706 = vmatpush1.msra.mxu0 0.0
    %2707 = vmatprep.subr.mxu0 0.0
    %2708 = vmatpush1.msra.mxu0 0.0
    %2709 = vmatprep.subr.mxu0 0.0
    %2710 = vmatpush1.msra.mxu0 0.0
    %2711 = vmatprep.subr.mxu0 0.0
    %2712 = vmatpush1.msra.mxu0 0.0
    %2713 = vmatprep.subr.mxu0 0.0
    %2714 = vmatpush1.msra.mxu0 0.0
    %2715 = vmatprep.subr.mxu0 0.0
    %2716 = vmatpush1.msra.mxu0 0.0
    %2717 = vmatprep.subr.mxu0 0.0
    %2718 = vmatpush1.msra.mxu0 0.0
    %2719 = vmatprep.subr.mxu0 0.0
    %2720 = vmatpush1.msra.mxu0 0.0
    %2721 = vmatprep.subr.mxu0 0.0
    %2722 = vmatpush1.msra.mxu0 0.0
    %2723 = vmatprep.subr.mxu0 0.0
    %2724 = vmatpush1.msra.mxu0 0.0
    %2725 = vmatprep.subr.mxu0 0.0
    %2726 = vmatpush1.msra.mxu0 0.0
    %2727 = vmatprep.subr.mxu0 0.0
    %2728 = vmatpush1.msra.mxu0 0.0
    %2729 = vmatprep.subr.mxu0 0.0
    %2730 = vmatpush1.msra.mxu0 0.0
    %2731 = vmatprep.subr.mxu0 0.0
    %2732 = vmatpush1.msra.mxu0 0.0
    %2733 = vmatprep.subr.mxu0 0.0
    %2734 = vmatpush1.msra.mxu0 0.0
    %2735 = vmatprep.subr.mxu0 0.0
    %2736 = vmatpush1.msra.mxu0 0.0
    %2737 = vmatprep.subr.mxu0 0.0
    %2738 = vmatpush1.msra.mxu0 0.0
    %2739 = vmatprep.subr.mxu0 0.0
    %2740 = vmatpush1.msra.mxu0 0.0
    %2741 = vmatprep.subr.mxu0 0.0
    %2742 = vmatpush1.msra.mxu0 0.0
    %2743 = vmatprep.subr.mxu0 0.0
    %2744 = vmatpush1.msra.mxu0 0.0
    %2745 = vmatprep.subr.mxu0 0.0
    %2746 = vmatpush1.msra.mxu0 0.0
    %2747 = vmatprep.mubr.f32.mxu0 0.0
    %v2748 = vand.u32 %v2582, 4294901760
    %2749 = vmatmul.mubr.f32.gmra.mrb[0].mxu0 %v2748
    %v2750 = vpop.f32.mrb[0].mxu0
    %v2751 = vadd.f32 %v2660, %v2750
    %v2752 = vpop.f32.mrb[0].mxu0
    %2753 = vdwg.mxu0
    %2754 = vmatprep.subr.mxu0 0.0
    %v2755 = vand.u32 %v2570, 4294901760
    %v2756 = vsub.f32 %v2570, %v2755
    %2757 = vmatpush1.msra.mxu0 %v2756
    %2758 = vmatprep.subr.mxu0 0.0
    %v2759 = vand.u32 %v2571, 4294901760
    %v2760 = vsub.f32 %v2571, %v2759
    %2761 = vmatpush1.msra.mxu0 %v2760
    %2762 = vmatprep.subr.mxu0 0.0
    %v2763 = vand.u32 %v2572, 4294901760
    %v2764 = vsub.f32 %v2572, %v2763
    %2765 = vmatpush1.msra.mxu0 %v2764
    %2766 = vmatprep.subr.mxu0 0.0
    %v2767 = vand.u32 %v2573, 4294901760
    %v2768 = vsub.f32 %v2573, %v2767
    %2769 = vmatpush1.msra.mxu0 %v2768
    %2770 = vmatprep.subr.mxu0 0.0
    %2771 = vmatpush1.msra.mxu0 0.0
    %2772 = vmatprep.subr.mxu0 0.0
    %2773 = vmatpush1.msra.mxu0 0.0
    %2774 = vmatprep.subr.mxu0 0.0
    %2775 = vmatpush1.msra.mxu0 0.0
    %2776 = vmatprep.subr.mxu0 0.0
    %2777 = vmatpush1.msra.mxu0 0.0
    %2778 = vmatprep.subr.mxu0 0.0
    %2779 = vmatpush1.msra.mxu0 0.0
    %2780 = vmatprep.subr.mxu0 0.0
    %2781 = vmatpush1.msra.mxu0 0.0
    %2782 = vmatprep.subr.mxu0 0.0
    %2783 = vmatpush1.msra.mxu0 0.0
    %2784 = vmatprep.subr.mxu0 0.0
    %2785 = vmatpush1.msra.mxu0 0.0
    %2786 = vmatprep.subr.mxu0 0.0
    %2787 = vmatpush1.msra.mxu0 0.0
    %2788 = vmatprep.subr.mxu0 0.0
    %2789 = vmatpush1.msra.mxu0 0.0
    %2790 = vmatprep.subr.mxu0 0.0
    %2791 = vmatpush1.msra.mxu0 0.0
    %2792 = vmatprep.subr.mxu0 0.0
    %2793 = vmatpush1.msra.mxu0 0.0
    %2794 = vmatprep.subr.mxu0 0.0
    %2795 = vmatpush1.msra.mxu0 0.0
    %2796 = vmatprep.subr.mxu0 0.0
    %2797 = vmatpush1.msra.mxu0 0.0
    %2798 = vmatprep.subr.mxu0 0.0
    %2799 = vmatpush1.msra.mxu0 0.0
    %2800 = vmatprep.subr.mxu0 0.0
    %2801 = vmatpush1.msra.mxu0 0.0
    %2802 = vmatprep.subr.mxu0 0.0
    %2803 = vmatpush1.msra.mxu0 0.0
    %2804 = vmatprep.subr.mxu0 0.0
    %2805 = vmatpush1.msra.mxu0 0.0
    %2806 = vmatprep.subr.mxu0 0.0
    %2807 = vmatpush1.msra.mxu0 0.0
    %2808 = vmatprep.subr.mxu0 0.0
    %2809 = vmatpush1.msra.mxu0 0.0
    %2810 = vmatprep.subr.mxu0 0.0
    %2811 = vmatpush1.msra.mxu0 0.0
    %2812 = vmatprep.subr.mxu0 0.0
    %2813 = vmatpush1.msra.mxu0 0.0
    %2814 = vmatprep.subr.mxu0 0.0
    %2815 = vmatpush1.msra.mxu0 0.0
    %2816 = vmatprep.subr.mxu0 0.0
    %2817 = vmatpush1.msra.mxu0 0.0
    %2818 = vmatprep.subr.mxu0 0.0
    %2819 = vmatpush1.msra.mxu0 0.0
    %2820 = vmatprep.subr.mxu0 0.0
    %2821 = vmatpush1.msra.mxu0 0.0
    %2822 = vmatprep.subr.mxu0 0.0
    %2823 = vmatpush1.msra.mxu0 0.0
    %2824 = vmatprep.subr.mxu0 0.0
    %2825 = vmatpush1.msra.mxu0 0.0
    %2826 = vmatprep.mubr.f32.mxu0 0.0
    %v2827 = vand.u32 %v2582, 4294901760
    %v2828 = vsub.f32 %v2582, %v2827
    %2829 = vmatmul.mubr.f32.gmra.mrb[0].mxu0 %v2828
    %v2830 = vpop.f32.mrb[0].mxu0
    %v2831 = vadd.f32 %v2751, %v2830
    %v2832 = vpop.f32.mrb[0].mxu0
    %2833 = vdwg.mxu0
    %2834 = vmatprep.subr.mxu0 0.0
    %v2835 = vand.u32 %v2570, 4294901760
    %2836 = vmatpush1.msra.mxu0 %v2835
    %2837 = vmatprep.subr.mxu0 0.0
    %v2838 = vand.u32 %v2571, 4294901760
    %2839 = vmatpush1.msra.mxu0 %v2838
    %2840 = vmatprep.subr.mxu0 0.0
    %v2841 = vand.u32 %v2572, 4294901760
    %2842 = vmatpush1.msra.mxu0 %v2841
    %2843 = vmatprep.subr.mxu0 0.0
    %v2844 = vand.u32 %v2573, 4294901760
    %2845 = vmatpush1.msra.mxu0 %v2844
    %2846 = vmatprep.subr.mxu0 0.0
    %2847 = vmatpush1.msra.mxu0 0.0
    %2848 = vmatprep.subr.mxu0 0.0
    %2849 = vmatpush1.msra.mxu0 0.0
    %2850 = vmatprep.subr.mxu0 0.0
    %2851 = vmatpush1.msra.mxu0 0.0
    %2852 = vmatprep.subr.mxu0 0.0
    %2853 = vmatpush1.msra.mxu0 0.0
    %2854 = vmatprep.subr.mxu0 0.0
    %2855 = vmatpush1.msra.mxu0 0.0
    %2856 = vmatprep.subr.mxu0 0.0
    %2857 = vmatpush1.msra.mxu0 0.0
    %2858 = vmatprep.subr.mxu0 0.0
    %2859 = vmatpush1.msra.mxu0 0.0
    %2860 = vmatprep.subr.mxu0 0.0
    %2861 = vmatpush1.msra.mxu0 0.0
    %2862 = vmatprep.subr.mxu0 0.0
    %2863 = vmatpush1.msra.mxu0 0.0
    %2864 = vmatprep.subr.mxu0 0.0
    %2865 = vmatpush1.msra.mxu0 0.0
    %2866 = vmatprep.subr.mxu0 0.0
    %2867 = vmatpush1.msra.mxu0 0.0
    %2868 = vmatprep.subr.mxu0 0.0
    %2869 = vmatpush1.msra.mxu0 0.0
    %2870 = vmatprep.subr.mxu0 0.0
    %2871 = vmatpush1.msra.mxu0 0.0
    %2872 = vmatprep.subr.mxu0 0.0
    %2873 = vmatpush1.msra.mxu0 0.0
    %2874 = vmatprep.subr.mxu0 0.0
    %2875 = vmatpush1.msra.mxu0 0.0
    %2876 = vmatprep.subr.mxu0 0.0
    %2877 = vmatpush1.msra.mxu0 0.0
    %2878 = vmatprep.subr.mxu0 0.0
    %2879 = vmatpush1.msra.mxu0 0.0
    %2880 = vmatprep.subr.mxu0 0.0
    %2881 = vmatpush1.msra.mxu0 0.0
    %2882 = vmatprep.subr.mxu0 0.0
    %2883 = vmatpush1.msra.mxu0 0.0
    %2884 = vmatprep.subr.mxu0 0.0
    %2885 = vmatpush1.msra.mxu0 0.0
    %2886 = vmatprep.subr.mxu0 0.0
    %2887 = vmatpush1.msra.mxu0 0.0
    %2888 = vmatprep.subr.mxu0 0.0
    %2889 = vmatpush1.msra.mxu0 0.0
    %2890 = vmatprep.subr.mxu0 0.0
    %2891 = vmatpush1.msra.mxu0 0.0
    %2892 = vmatprep.subr.mxu0 0.0
    %2893 = vmatpush1.msra.mxu0 0.0
    %2894 = vmatprep.subr.mxu0 0.0
    %2895 = vmatpush1.msra.mxu0 0.0
    %2896 = vmatprep.subr.mxu0 0.0
    %2897 = vmatpush1.msra.mxu0 0.0
    %2898 = vmatprep.subr.mxu0 0.0
    %2899 = vmatpush1.msra.mxu0 0.0
    %2900 = vmatprep.subr.mxu0 0.0
    %2901 = vmatpush1.msra.mxu0 0.0
    %2902 = vmatprep.mubr.f32.mxu0 0.0
    %v2903 = vand.u32 %v2582, 4294901760
    %v2904 = vsub.f32 %v2582, %v2903
    %v2905 = vand.u32 %v2904, 4294901760
    %2906 = vmatmul.mubr.f32.gmra.mrb[0].mxu0 %v2905
    %v2907 = vpop.f32.mrb[0].mxu0
    %v2908 = vadd.f32 %v2831, %v2907
    %v2909 = vpop.f32.mrb[0].mxu0
    %2910 = vdwg.mxu0
    %2911 = vmatprep.subr.mxu0 0.0
    %v2912 = vand.u32 %v2570, 4294901760
    %v2913 = vsub.f32 %v2570, %v2912
    %v2914 = vand.u32 %v2913, 4294901760
    %2915 = vmatpush1.msra.mxu0 %v2914
    %2916 = vmatprep.subr.mxu0 0.0
    %v2917 = vand.u32 %v2571, 4294901760
    %v2918 = vsub.f32 %v2571, %v2917
    %v2919 = vand.u32 %v2918, 4294901760
    %2920 = vmatpush1.msra.mxu0 %v2919
    %2921 = vmatprep.subr.mxu0 0.0
    %v2922 = vand.u32 %v2572, 4294901760
    %v2923 = vsub.f32 %v2572, %v2922
    %v2924 = vand.u32 %v2923, 4294901760
    %2925 = vmatpush1.msra.mxu0 %v2924
    %2926 = vmatprep.subr.mxu0 0.0
    %v2927 = vand.u32 %v2573, 4294901760
    %v2928 = vsub.f32 %v2573, %v2927
    %v2929 = vand.u32 %v2928, 4294901760
    %2930 = vmatpush1.msra.mxu0 %v2929
    %2931 = vmatprep.subr.mxu0 0.0
    %2932 = vmatpush1.msra.mxu0 0.0
    %2933 = vmatprep.subr.mxu0 0.0
    %2934 = vmatpush1.msra.mxu0 0.0
    %2935 = vmatprep.subr.mxu0 0.0
    %2936 = vmatpush1.msra.mxu0 0.0
    %2937 = vmatprep.subr.mxu0 0.0
    %2938 = vmatpush1.msra.mxu0 0.0
    %2939 = vmatprep.subr.mxu0 0.0
    %2940 = vmatpush1.msra.mxu0 0.0
    %2941 = vmatprep.subr.mxu0 0.0
    %2942 = vmatpush1.msra.mxu0 0.0
    %2943 = vmatprep.subr.mxu0 0.0
    %2944 = vmatpush1.msra.mxu0 0.0
    %2945 = vmatprep.subr.mxu0 0.0
    %2946 = vmatpush1.msra.mxu0 0.0
    %2947 = vmatprep.subr.mxu0 0.0
    %2948 = vmatpush1.msra.mxu0 0.0
    %2949 = vmatprep.subr.mxu0 0.0
    %2950 = vmatpush1.msra.mxu0 0.0
    %2951 = vmatprep.subr.mxu0 0.0
    %2952 = vmatpush1.msra.mxu0 0.0
    %2953 = vmatprep.subr.mxu0 0.0
    %2954 = vmatpush1.msra.mxu0 0.0
    %2955 = vmatprep.subr.mxu0 0.0
    %2956 = vmatpush1.msra.mxu0 0.0
    %2957 = vmatprep.subr.mxu0 0.0
    %2958 = vmatpush1.msra.mxu0 0.0
    %2959 = vmatprep.subr.mxu0 0.0
    %2960 = vmatpush1.msra.mxu0 0.0
    %2961 = vmatprep.subr.mxu0 0.0
    %2962 = vmatpush1.msra.mxu0 0.0
    %2963 = vmatprep.subr.mxu0 0.0
    %2964 = vmatpush1.msra.mxu0 0.0
    %2965 = vmatprep.subr.mxu0 0.0
    %2966 = vmatpush1.msra.mxu0 0.0
    %2967 = vmatprep.subr.mxu0 0.0
    %2968 = vmatpush1.msra.mxu0 0.0
    %2969 = vmatprep.subr.mxu0 0.0
    %2970 = vmatpush1.msra.mxu0 0.0
    %2971 = vmatprep.subr.mxu0 0.0
    %2972 = vmatpush1.msra.mxu0 0.0
    %2973 = vmatprep.subr.mxu0 0.0
    %2974 = vmatpush1.msra.mxu0 0.0
    %2975 = vmatprep.subr.mxu0 0.0
    %2976 = vmatpush1.msra.mxu0 0.0
    %2977 = vmatprep.subr.mxu0 0.0
    %2978 = vmatpush1.msra.mxu0 0.0
    %2979 = vmatprep.subr.mxu0 0.0
    %2980 = vmatpush1.msra.mxu0 0.0
    %2981 = vmatprep.subr.mxu0 0.0
    %2982 = vmatpush1.msra.mxu0 0.0
    %2983 = vmatprep.subr.mxu0 0.0
    %2984 = vmatpush1.msra.mxu0 0.0
    %2985 = vmatprep.subr.mxu0 0.0
    %2986 = vmatpush1.msra.mxu0 0.0
    %2987 = vmatprep.mubr.f32.mxu0 0.0
    %v2988 = vand.u32 %v2582, 4294901760
    %2989 = vmatmul.mubr.f32.gmra.mrb[0].mxu0 %v2988
    %v2990 = vpop.f32.mrb[0].mxu0
    %v2991 = vadd.f32 %v2908, %v2990
    %v2992 = vpop.f32.mrb[0].mxu0
    %2993 = vdwg.mxu0
    %2994 = vmatprep.subr.mxu0 0.0
    %v2995 = vand.u32 %v2570, 4294901760
    %2996 = vmatpush1.msra.mxu0 %v2995
    %2997 = vmatprep.subr.mxu0 0.0
    %v2998 = vand.u32 %v2571, 4294901760
    %2999 = vmatpush1.msra.mxu0 %v2998
    %3000 = vmatprep.subr.mxu0 0.0
    %v3001 = vand.u32 %v2572, 4294901760
    %3002 = vmatpush1.msra.mxu0 %v3001
    %3003 = vmatprep.subr.mxu0 0.0
    %v3004 = vand.u32 %v2573, 4294901760
    %3005 = vmatpush1.msra.mxu0 %v3004
    %3006 = vmatprep.subr.mxu0 0.0
    %3007 = vmatpush1.msra.mxu0 0.0
    %3008 = vmatprep.subr.mxu0 0.0
    %3009 = vmatpush1.msra.mxu0 0.0
    %3010 = vmatprep.subr.mxu0 0.0
    %3011 = vmatpush1.msra.mxu0 0.0
    %3012 = vmatprep.subr.mxu0 0.0
    %3013 = vmatpush1.msra.mxu0 0.0
    %3014 = vmatprep.subr.mxu0 0.0
    %3015 = vmatpush1.msra.mxu0 0.0
    %3016 = vmatprep.subr.mxu0 0.0
    %3017 = vmatpush1.msra.mxu0 0.0
    %3018 = vmatprep.subr.mxu0 0.0
    %3019 = vmatpush1.msra.mxu0 0.0
    %3020 = vmatprep.subr.mxu0 0.0
    %3021 = vmatpush1.msra.mxu0 0.0
    %3022 = vmatprep.subr.mxu0 0.0
    %3023 = vmatpush1.msra.mxu0 0.0
    %3024 = vmatprep.subr.mxu0 0.0
    %3025 = vmatpush1.msra.mxu0 0.0
    %3026 = vmatprep.subr.mxu0 0.0
    %3027 = vmatpush1.msra.mxu0 0.0
    %3028 = vmatprep.subr.mxu0 0.0
    %3029 = vmatpush1.msra.mxu0 0.0
    %3030 = vmatprep.subr.mxu0 0.0
    %3031 = vmatpush1.msra.mxu0 0.0
    %3032 = vmatprep.subr.mxu0 0.0
    %3033 = vmatpush1.msra.mxu0 0.0
    %3034 = vmatprep.subr.mxu0 0.0
    %3035 = vmatpush1.msra.mxu0 0.0
    %3036 = vmatprep.subr.mxu0 0.0
    %3037 = vmatpush1.msra.mxu0 0.0
    %3038 = vmatprep.subr.mxu0 0.0
    %3039 = vmatpush1.msra.mxu0 0.0
    %3040 = vmatprep.subr.mxu0 0.0
    %3041 = vmatpush1.msra.mxu0 0.0
    %3042 = vmatprep.subr.mxu0 0.0
    %3043 = vmatpush1.msra.mxu0 0.0
    %3044 = vmatprep.subr.mxu0 0.0
    %3045 = vmatpush1.msra.mxu0 0.0
    %3046 = vmatprep.subr.mxu0 0.0
    %3047 = vmatpush1.msra.mxu0 0.0
    %3048 = vmatprep.subr.mxu0 0.0
    %3049 = vmatpush1.msra.mxu0 0.0
    %3050 = vmatprep.subr.mxu0 0.0
    %3051 = vmatpush1.msra.mxu0 0.0
    %3052 = vmatprep.subr.mxu0 0.0
    %3053 = vmatpush1.msra.mxu0 0.0
    %3054 = vmatprep.subr.mxu0 0.0
    %3055 = vmatpush1.msra.mxu0 0.0
    %3056 = vmatprep.subr.mxu0 0.0
    %3057 = vmatpush1.msra.mxu0 0.0
    %3058 = vmatprep.subr.mxu0 0.0
    %3059 = vmatpush1.msra.mxu0 0.0
    %3060 = vmatprep.subr.mxu0 0.0
    %3061 = vmatpush1.msra.mxu0 0.0
    %3062 = vmatprep.mubr.f32.mxu0 0.0
    %v3063 = vand.u32 %v2582, 4294901760
    %3064 = vmatmul.mubr.f32.gmra.mrb[0].mxu0 %v3063
    %v3065 = vpop.f32.mrb[0].mxu0
    %v3066 = vadd.f32 %v2991, %v3065
    %v3067 = vpop.f32.mrb[0].mxu0
    %3068 = vdwg.mxu0
    %3069 = vst.msk [vmem:[#allocation2] sm:$0xff] %vm1117, %v3066
    // Predicated region
    $region46: #{tpu_custom_call.1} parent=1 // pred_check
      _
    $region47: #{tpu_custom_call.1} parent=1 // pred_check_branch
      %3071 = sbr.rel (0) target = $region49
    $region48: #{tpu_custom_call.1} parent=1 // pred_region
      %s3073 = ssub.s32 128, 128
      %3074 = vsyncadd [#allocation3], %s3073
      %s3076 = sshll.u32 [#allocation2], 4
      %s3077 = int_to_ptr.vmem [resolvable:$true] %s3076
      %3079 = dma.vmem_to_hbm [thread:$0]  %s3077, 128, %s11, [#allocation3]
    $region49: #{tpu_custom_call.1} parent=1 // pred_fallthru
      _
    // Predicated region
    $region50: #{tpu_custom_call.1} parent=1 // pred_check
      _
    $region51: #{tpu_custom_call.1} parent=1 // pred_check_branch
      %3081 = sbr.rel (0) target = $region53
    $region52: #{tpu_custom_call.1} parent=1 // pred_region
      %3082 = dma.done [#allocation3], 128
    $region53: #{tpu_custom_call.1} parent=1 // pred_fallthru
      _
    %3083 = vsyncpa [#allocation3], 1

</llo_original>
